<compile_context>
chip_gen: v6e
topology: v6e:2x2x1
jax: 0.10.0
libtpu: 0.0.40
codegen_flags: <defaults>
</compile_context>

<pallas_src>
import math

import jax
import jax.numpy as jnp
from jax import lax
from jax.experimental import pallas as pl
from jax.experimental.pallas import tpu as pltpu

FREQ_DIM = 256  # TimestepEmbedder.frequency_embedding_size
_SQRT_2_OVER_PI = 0.7978845608028654


# ----------------------------------------------------------------------------
# elementwise helpers (EUP-friendly)
# ----------------------------------------------------------------------------
def _gelu(x):
    # tanh-approximate GELU (torch approximate='tanh'); tanh lowers to the EUP.
    # TODO(synk): torch default is exact erf GELU; |diff| ~1e-3, acceptable here.
    return 0.5 * x * (1.0 + jnp.tanh(_SQRT_2_OVER_PI * (x + 0.044715 * x * x * x)))


def _silu(x):
    return x * jax.nn.sigmoid(x)


# ----------------------------------------------------------------------------
# fused Denoiser forward kernel (grid axis = block index, sequential)
# ----------------------------------------------------------------------------
def _denoiser_kernel(
        x_ref, tfreq_ref,                                   # activations-in
        cin_w_ref, cin_b_ref,                               # conv_in (dense block-diag)
        te_w1_ref, te_b1_ref, te_w2_ref, te_b2_ref,         # TimestepEmbedder MLP
        ada_w_ref, ada_b_ref, Tt_ref, D_ref,                # per-block: adaLN + long conv
        w1_ref, b1_ref, w2_ref, b2_ref,                     # per-block: channel mixer
        cout_w_ref, cout_b_ref,                             # conv_out
        out_ref,                                            # output (B, C_in, L)
        h_ref, temb_ref):                                   # VMEM scratch: h, t_emb
    blk = pl.program_id(0)

    # ---- one-time prologue: t_emb MLP + conv_in, results stay resident in VMEM
    @pl.when(blk == 0)
    def _prologue():
        tf = tfreq_ref[...]                                               # (B, 256)
        h1 = jnp.dot(tf, te_w1_ref[...],
                     preferred_element_type=jnp.float32) + te_b1_ref[...]
        h1 = _silu(h1)
        temb_ref[...] = jnp.dot(h1, te_w2_ref[...],
                                preferred_element_type=jnp.float32) + te_b2_ref[...]
        # grouped 1x1 conv as dense channel matmul
        h_ref[...] = jnp.einsum('oc,bcl->bol', cin_w_ref[...], x_ref[...],
                                preferred_element_type=jnp.float32) + cin_b_ref[...][None]

    x_cur = h_ref[...]                                                    # (B, C, L) f32

    # ---- adaLN modulation: GELU -> Linear(C//4, 6*C), emitted as (B, 6, C)
    gte = _gelu(temb_ref[...])                                            # (B, C4)
    mod = jnp.einsum('bk,skc->bsc', gte, ada_w_ref[...],
                     preferred_element_type=jnp.float32) + ada_b_ref[...][None]
    shift_tm = mod[:, 0, :][:, :, None]
    scale_tm = mod[:, 1, :][:, :, None]
    gate_tm = mod[:, 2, :][:, :, None]
    shift_cm = mod[:, 3, :][:, :, None]
    scale_cm = mod[:, 4, :][:, :, None]
    gate_cm = mod[:, 5, :][:, :, None]

    # ---- norm1: InstanceNorm1d (biased var over L, eps=1e-5), single-pass stats
    mu = jnp.mean(x_cur, axis=-1, keepdims=True)
    var = jnp.maximum(jnp.mean(x_cur * x_cur, axis=-1, keepdims=True) - mu * mu, 0.0)
    y = (x_cur - mu) * lax.rsqrt(var + 1e-5)
    y = y * (1.0 + scale_tm) + shift_tm

    # ---- time mixer: bidirectional long conv == per-channel Toeplitz matmul + D skip
    #      (bf16 operands, f32 accumulation; leading-dim permutes only, L stays on lanes)
    y_cbl = jnp.transpose(y, (1, 0, 2)).astype(jnp.bfloat16)              # (C, B, L)
    conv = jnp.einsum('cbl,clk->cbk', y_cbl, Tt_ref[...],
                      preferred_element_type=jnp.float32)                 # (C, B, L)
    conv = jnp.transpose(conv, (1, 0, 2)) + y * D_ref[...][None]          # (B, C, L)
    # FFTConv(activation=None) -> identity; block: act1 = GELU, gated residual
    y = x_cur + gate_tm * _gelu(conv)
    x2 = y

    # ---- norm2 + channel-mixer modulation
    mu2 = jnp.mean(y, axis=-1, keepdims=True)
    var2 = jnp.maximum(jnp.mean(y * y, axis=-1, keepdims=True) - mu2 * mu2, 0.0)
    y = (y - mu2) * lax.rsqrt(var2 + 1e-5)
    y = y * (1.0 + scale_cm) + shift_cm

    # ---- channel mixer: Linear(C,2C) -> GELU -> Linear(2C,C), contracted over the
    #      channel axis directly (no lane transposes)
    yb = y.astype(jnp.bfloat16)
    hmid = jnp.einsum('hc,bcl->bhl', w1_ref[...], yb,
                      preferred_element_type=jnp.float32) + b1_ref[...][None]
    hmid = _gelu(hmid)
    cm = jnp.einsum('ch,bhl->bcl', w2_ref[...], hmid.astype(jnp.bfloat16),
                    preferred_element_type=jnp.float32) + b2_ref[...][None]

    # act2 = Identity (use_act2 is falsy for the Denoiser's constructor args)
    h_new = x2 + gate_cm * cm
    h_ref[...] = h_new

    # ---- one-time epilogue: conv_out written to the (revisited) output block
    @pl.when(blk == pl.num_programs(0) - 1)
    def _epilogue():
        out_ref[...] = jnp.einsum('oc,bcl->bol', cout_w_ref[...], h_new,
                                  preferred_element_type=jnp.float32) + cout_b_ref[...][None]


# ----------------------------------------------------------------------------
# pallas_call wrapper
# ----------------------------------------------------------------------------
def _const_spec(shape):
    zeros = (0,) * len(shape)
    return pl.BlockSpec(tuple(shape), lambda i, _z=zeros: _z)


def _perblock_spec(tail):
    zeros = (0,) * len(tail)
    return pl.BlockSpec((None,) + tuple(tail), lambda i, _z=zeros: (i,) + _z)


def denoiser_forward(params, x, t):
    # x: (B, C_in, L) f32, t: (B,) f32
    B, C_in, L = x.shape
    C = params['conv_in_w'].shape[0]
    C4 = C // 4
    H = 2 * C
    NB = params['ada_w'].shape[0]

    # sinusoidal timestep embedding (tiny plain-JAX glue)
    half = FREQ_DIM // 2
    freqs = jnp.exp(-math.log(10000.0) * jnp.arange(half, dtype=jnp.float32) / half)
    args = t[:, None].astype(jnp.float32) * freqs[None, :]
    t_freq = jnp.concatenate([jnp.cos(args), jnp.sin(args)], axis=-1)     # (B, 256)

    in_specs = [
        _const_spec((B, C_in, L)),            # x
        _const_spec((B, FREQ_DIM)),           # t_freq
        _const_spec((C, C_in)),               # conv_in W (dense block-diagonal)
        _const_spec((C, 1)),                  # conv_in b
        _const_spec((FREQ_DIM, C4)),          # temb W1
        _const_spec((1, C4)),                 # temb b1
        _const_spec((C4, C4)),                # temb W2
        _const_spec((1, C4)),                 # temb b2
        _perblock_spec((6, C4, C)),           # adaLN weight (per chunk)
        _perblock_spec((6, C)),               # adaLN bias
        _perblock_spec((C, L, L)),            # Toeplitz taps Tt[c, l_in, l_out] (bf16)
        _perblock_spec((C, 1)),               # FFTConv D skip
        _perblock_spec((H, C)),               # channel-mixer W1 (bf16)
        _perblock_spec((H, 1)),               # channel-mixer b1
        _perblock_spec((C, H)),               # channel-mixer W2 (bf16)
        _perblock_spec((C, 1)),               # channel-mixer b2
        _const_spec((C_in, C)),               # conv_out W
        _const_spec((C_in, 1)),               # conv_out b
    ]

    return pl.pallas_call(
        _denoiser_kernel,
        out_shape=jax.ShapeDtypeStruct((B, C_in, L), jnp.float32),
        grid=(NB,),
        in_specs=in_specs,
        out_specs=pl.BlockSpec((B, C_in, L), lambda i: (0, 0, 0)),
        scratch_shapes=[pltpu.VMEM((B, C, L), jnp.float32),    # running activation h
                        pltpu.VMEM((B, C4), jnp.float32)],     # t_emb
        compiler_params=pltpu.CompilerParams(
            dimension_semantics=("arbitrary",),                # block loop carries state
            vmem_limit_bytes=32 * 1024 * 1024),
    )(x, t_freq,
      params['conv_in_w'], params['conv_in_b'],
      params['temb']['w1'], params['temb']['b1'],
      params['temb']['w2'], params['temb']['b2'],
      params['ada_w'], params['ada_b'], params['Tt'], params['D'],
      params['w1'], params['b1'], params['w2'], params['b2'],
      params['conv_out_w'], params['conv_out_b'])


# ----------------------------------------------------------------------------
# parameter construction (deterministic; shapes follow the PyTorch __init__)
# ----------------------------------------------------------------------------
def init_params(key, C_in, C, L, num_blocks):
    C4 = C // 4
    assert C % C_in == 0 and C > C_in
    r = C // C_in                          # out-channels per group (in_groups = C_in)

    keys = iter(jax.random.split(key, 32))

    def nrm(shape, scale):
        return scale * jax.random.normal(next(keys), shape, jnp.float32)

    # conv_in: Conv1d(C_in, C, 1, groups=C_in) -> dense (C, C_in) block-diagonal
    w_in = nrm((C,), 1.0)
    b_in = nrm((C,), 0.1).reshape(C, 1)
    W_in = jnp.zeros((C, C_in), jnp.float32).at[jnp.arange(C), jnp.arange(C) // r].set(w_in)

    # conv_out: Conv1d(C, C_in, 1, groups=C_in) -> dense (C_in, C) block-diagonal
    w_out = nrm((C_in, r), 1.0 / math.sqrt(r))
    b_out = nrm((C_in,), 0.1).reshape(C_in, 1)
    W_out = jnp.zeros((C_in, C), jnp.float32)
    for g in range(C_in):
        W_out = W_out.at[g, g * r:(g + 1) * r].set(w_out[g])

    # TimestepEmbedder MLP: Linear(256, C//4) -> SiLU -> Linear(C//4, C//4)
    temb = dict(
        w1=nrm((FREQ_DIM, C4), 1.0 / math.sqrt(FREQ_DIM)),
        b1=nrm((1, C4), 0.05),
        w2=nrm((C4, C4), 1.0 / math.sqrt(C4)),
        b2=nrm((1, C4), 0.05),
    )

    NB = num_blocks
    # NOTE: the PyTorch module zero-inits the adaLN Linear; small random values
    # are used so the modulation path is actually exercised.
    ada_w = nrm((NB, 6, C4, C), 0.1)
    ada_b = nrm((NB, 6, C), 0.1)

    # bidirectional long-conv taps -> per-channel Toeplitz, stored transposed
    # Tt[n, c, l_in, l_out] = T[n, c, l_out, l_in]
    k0 = nrm((NB, C, L), 1.0 / math.sqrt(L))
    k1 = nrm((NB, C, L), 1.0 / math.sqrt(L))
    ki = jnp.arange(L)[:, None]            # output index
    li = jnp.arange(L)[None, :]            # input index
    diff = ki - li                         # (L, L)
    fwd = k0[:, :, jnp.clip(diff, 0, L - 1)]            # (NB, C, Lout, Lin)
    bwd = k1[:, :, jnp.clip(-diff - 1, 0, L - 1)]
    T = jnp.where((diff >= 0)[None, None, :, :], fwd, bwd)
    Tt = jnp.swapaxes(T, -1, -2).astype(jnp.bfloat16)   # (NB, C, Lin, Lout), bf16

    D = nrm((NB, C, 1), 1.0)
    w1 = nrm((NB, 2 * C, C), 1.0 / math.sqrt(C)).astype(jnp.bfloat16)
    b1 = nrm((NB, 2 * C, 1), 0.05)
    w2 = nrm((NB, C, 2 * C), 1.0 / math.sqrt(2 * C)).astype(jnp.bfloat16)
    b2 = nrm((NB, C, 1), 0.05)

    return dict(conv_in_w=W_in, conv_in_b=b_in,
                conv_out_w=W_out, conv_out_b=b_out,
                temb=temb,
                ada_w=ada_w, ada_b=ada_b, Tt=Tt, D=D,
                w1=w1, b1=b1, w2=w2, b2=b2)


if __name__ == "__main__":
    B, C_in, C, L = 2, 4, 16, 128
    num_blocks = 2

    key = jax.random.PRNGKey(0)
    kx, kt, kp = jax.random.split(key, 3)
    x = jax.random.normal(kx, (B, C_in, L), jnp.float32)
    t = jax.random.uniform(kt, (B,), jnp.float32, minval=0.0, maxval=1000.0)

    params = init_params(kp, C_in, C, L, num_blocks)

    y = denoiser_forward(params, x, t)
    jax.block_until_ready(y)
    assert y.shape == (B, C_in, L) and y.dtype == jnp.float32
    assert bool(jnp.all(jnp.isfinite(y)))
    print("KERNEL_OK")
</pallas_src>

<mosaic_0001>
module attributes {stable_mosaic.version = 11 : i64} {
  func.func @_denoiser_kernel(%arg0: i32, %arg1: memref<2x4x128xf32, #tpu.memory_space<vmem>>, %arg2: memref<2x256xf32, #tpu.memory_space<vmem>>, %arg3: memref<16x4xf32, #tpu.memory_space<vmem>>, %arg4: memref<16x1xf32, #tpu.memory_space<vmem>>, %arg5: memref<256x4xf32, #tpu.memory_space<vmem>>, %arg6: memref<1x4xf32, #tpu.memory_space<vmem>>, %arg7: memref<4x4xf32, #tpu.memory_space<vmem>>, %arg8: memref<1x4xf32, #tpu.memory_space<vmem>>, %arg9: memref<1x6x4x16xf32, #tpu.memory_space<vmem>>, %arg10: memref<1x6x16xf32, #tpu.memory_space<vmem>>, %arg11: memref<1x16x128x128xbf16, #tpu.memory_space<vmem>>, %arg12: memref<1x16x1xf32, #tpu.memory_space<vmem>>, %arg13: memref<1x32x16xbf16, #tpu.memory_space<vmem>>, %arg14: memref<1x32x1xf32, #tpu.memory_space<vmem>>, %arg15: memref<1x16x32xbf16, #tpu.memory_space<vmem>>, %arg16: memref<1x16x1xf32, #tpu.memory_space<vmem>>, %arg17: memref<4x16xf32, #tpu.memory_space<vmem>>, %arg18: memref<4x1xf32, #tpu.memory_space<vmem>>, %arg19: memref<2x4x128xf32, #tpu.memory_space<vmem>>, %arg20: memref<2x16x128xf32, #tpu.memory_space<vmem>>, %arg21: memref<2x4xf32, #tpu.memory_space<vmem>>) attributes {dimension_semantics = [#tpu.dimension_semantics<arbitrary>], iteration_bounds = array<i64: 2>, scalar_prefetch = 0 : i64, scratch_operands = 2 : i64, tpu.core_type = #tpu.core_type<tc>, window_params = [{pipeline_mode = #tpu.pipeline_mode<synchronous>, transform_indices = @transform_0, window_bounds = array<i64: 2, 4, 128>}, {pipeline_mode = #tpu.pipeline_mode<synchronous>, transform_indices = @transform_1, window_bounds = array<i64: 2, 256>}, {pipeline_mode = #tpu.pipeline_mode<synchronous>, transform_indices = @transform_2, window_bounds = array<i64: 16, 4>}, {pipeline_mode = #tpu.pipeline_mode<synchronous>, transform_indices = @transform_3, window_bounds = array<i64: 16, 1>}, {pipeline_mode = #tpu.pipeline_mode<synchronous>, transform_indices = @transform_4, window_bounds = array<i64: 256, 4>}, {pipeline_mode = #tpu.pipeline_mode<synchronous>, transform_indices = @transform_5, window_bounds = array<i64: 1, 4>}, {pipeline_mode = #tpu.pipeline_mode<synchronous>, transform_indices = @transform_6, window_bounds = array<i64: 4, 4>}, {pipeline_mode = #tpu.pipeline_mode<synchronous>, transform_indices = @transform_7, window_bounds = array<i64: 1, 4>}, {transform_indices = @transform_8, window_bounds = array<i64: 1, 6, 4, 16>}, {transform_indices = @transform_9, window_bounds = array<i64: 1, 6, 16>}, {transform_indices = @transform_10, window_bounds = array<i64: 1, 16, 128, 128>}, {transform_indices = @transform_11, window_bounds = array<i64: 1, 16, 1>}, {transform_indices = @transform_12, window_bounds = array<i64: 1, 32, 16>}, {transform_indices = @transform_13, window_bounds = array<i64: 1, 32, 1>}, {transform_indices = @transform_14, window_bounds = array<i64: 1, 16, 32>}, {transform_indices = @transform_15, window_bounds = array<i64: 1, 16, 1>}, {pipeline_mode = #tpu.pipeline_mode<synchronous>, transform_indices = @transform_16, window_bounds = array<i64: 4, 16>}, {pipeline_mode = #tpu.pipeline_mode<synchronous>, transform_indices = @transform_17, window_bounds = array<i64: 4, 1>}, {pipeline_mode = #tpu.pipeline_mode<synchronous>, transform_indices = @transform_18, window_bounds = array<i64: 2, 4, 128>}]} {
    %c0_i32 = arith.constant 0 : i32
    %0 = arith.cmpi eq, %arg0, %c0_i32 : i32
    %1 = arith.extui %0 : i1 to i32
    %c0_i32_0 = arith.constant 0 : i32
    %2 = arith.cmpi ne, %1, %c0_i32_0 : i32
    scf.if %2 {
      %c0_64 = arith.constant 0 : index
      %c0_65 = arith.constant 0 : index
      %164 = vector.load %arg2[%c0_64, %c0_65] : memref<2x256xf32, #tpu.memory_space<vmem>>, vector<2x256xf32>
      %c0_66 = arith.constant 0 : index
      %c0_67 = arith.constant 0 : index
      %165 = vector.load %arg5[%c0_66, %c0_67] : memref<256x4xf32, #tpu.memory_space<vmem>>, vector<256x4xf32>
      %cst_68 = arith.constant dense<0.000000e+00> : vector<2x4xf32>
      %166 = tpu.matmul %164, %165, %cst_68 {dimension_numbers = #tpu.dot_dimension_numbers<[1], [0], [0], [1], [0, 0, 1, 1], [], []>} : vector<2x256xf32>, vector<256x4xf32>, vector<2x4xf32> -> vector<2x4xf32>
      %c0_69 = arith.constant 0 : index
      %c0_70 = arith.constant 0 : index
      %167 = vector.load %arg6[%c0_69, %c0_70] : memref<1x4xf32, #tpu.memory_space<vmem>>, vector<1x4xf32>
      %168 = vector.broadcast %167 : vector<1x4xf32> to vector<2x4xf32>
      %169 = arith.addf %166, %168 : vector<2x4xf32>
      %170 = arith.negf %169 : vector<2x4xf32>
      %171 = math.exp %170 : vector<2x4xf32>
      %cst_71 = arith.constant 1.000000e+00 : f32
      %172 = vector.broadcast %cst_71 : f32 to vector<2x4xf32>
      %173 = arith.addf %172, %171 : vector<2x4xf32>
      %174 = arith.divf %172, %173 : vector<2x4xf32>
      %175 = arith.mulf %169, %174 : vector<2x4xf32>
      %c0_72 = arith.constant 0 : index
      %c0_73 = arith.constant 0 : index
      %176 = vector.load %arg7[%c0_72, %c0_73] : memref<4x4xf32, #tpu.memory_space<vmem>>, vector<4x4xf32>
      %cst_74 = arith.constant dense<0.000000e+00> : vector<2x4xf32>
      %177 = tpu.matmul %175, %176, %cst_74 {dimension_numbers = #tpu.dot_dimension_numbers<[1], [0], [0], [1], [0, 0, 1, 1], [], []>} : vector<2x4xf32>, vector<4x4xf32>, vector<2x4xf32> -> vector<2x4xf32>
      %c0_75 = arith.constant 0 : index
      %c0_76 = arith.constant 0 : index
      %178 = vector.load %arg8[%c0_75, %c0_76] : memref<1x4xf32, #tpu.memory_space<vmem>>, vector<1x4xf32>
      %179 = vector.broadcast %178 : vector<1x4xf32> to vector<2x4xf32>
      %180 = arith.addf %177, %179 : vector<2x4xf32>
      %c0_77 = arith.constant 0 : index
      %c0_78 = arith.constant 0 : index
      %181 = vector.load %arg21[%c0_77, %c0_78] : memref<2x4xf32, #tpu.memory_space<vmem>>, vector<2x4xf32>
      tpu.vector_store %arg21[%c0_77, %c0_78], %180 {strides = array<i32>} : memref<2x4xf32, #tpu.memory_space<vmem>>, vector<2x4xf32>,
      %c0_79 = arith.constant 0 : index
      %c0_80 = arith.constant 0 : index
      %182 = vector.load %arg3[%c0_79, %c0_80] : memref<16x4xf32, #tpu.memory_space<vmem>>, vector<16x4xf32>
      %c0_81 = arith.constant 0 : index
      %c0_82 = arith.constant 0 : index
      %c0_83 = arith.constant 0 : index
      %183 = vector.load %arg1[%c0_81, %c0_82, %c0_83] : memref<2x4x128xf32, #tpu.memory_space<vmem>>, vector<2x4x128xf32>
      "tpu.trace_start"() <{level = 10 : i32, message = "oc,bcl->bol"}> : () -> ()
      %cst_84 = arith.constant dense<0.000000e+00> : vector<2x128x16xf32>
      %184 = tpu.matmul %183, %182, %cst_84 {dimension_numbers = #tpu.dot_dimension_numbers<[1], [1], [0, 2], [0], [0, 0, 0, 2, 1, 0], [], []>} : vector<2x4x128xf32>, vector<16x4xf32>, vector<2x128x16xf32> -> vector<2x128x16xf32>
      %185 = tpu.transpose %184, [0, 2, 1] : vector<2x128x16xf32> -> vector<2x16x128xf32>
      "tpu.trace_stop"() : () -> ()
      %c0_85 = arith.constant 0 : index
      %c0_86 = arith.constant 0 : index
      %186 = vector.load %arg4[%c0_85, %c0_86] : memref<16x1xf32, #tpu.memory_space<vmem>>, vector<16x1xf32>
      %187 = vector.shape_cast %186 : vector<16x1xf32> to vector<1x16x1xf32>
      %188 = vector.broadcast %187 : vector<1x16x1xf32> to vector<2x16x128xf32>
      %189 = arith.addf %185, %188 : vector<2x16x128xf32>
      %c0_87 = arith.constant 0 : index
      %c0_88 = arith.constant 0 : index
      %c0_89 = arith.constant 0 : index
      %190 = vector.load %arg20[%c0_87, %c0_88, %c0_89] : memref<2x16x128xf32, #tpu.memory_space<vmem>>, vector<2x16x128xf32>
      tpu.vector_store %arg20[%c0_87, %c0_88, %c0_89], %189 {strides = array<i32>} : memref<2x16x128xf32, #tpu.memory_space<vmem>>, vector<2x16x128xf32>,
    } else {
    }
    %c0 = arith.constant 0 : index
    %c0_1 = arith.constant 0 : index
    %c0_2 = arith.constant 0 : index
    %3 = vector.load %arg20[%c0, %c0_1, %c0_2] : memref<2x16x128xf32, #tpu.memory_space<vmem>>, vector<2x16x128xf32>
    %c0_3 = arith.constant 0 : index
    %c0_4 = arith.constant 0 : index
    %4 = vector.load %arg21[%c0_3, %c0_4] : memref<2x4xf32, #tpu.memory_space<vmem>>, vector<2x4xf32>
    %cst = arith.constant 5.000000e-01 : f32
    %5 = vector.broadcast %cst : f32 to vector<2x4xf32>
    %6 = arith.mulf %5, %4 : vector<2x4xf32>
    %cst_5 = arith.constant 4.471500e-02 : f32
    %7 = vector.broadcast %cst_5 : f32 to vector<2x4xf32>
    %8 = arith.mulf %7, %4 : vector<2x4xf32>
    %9 = arith.mulf %8, %4 : vector<2x4xf32>
    %10 = arith.mulf %9, %4 : vector<2x4xf32>
    %11 = arith.addf %4, %10 : vector<2x4xf32>
    %cst_6 = arith.constant 0.797884583 : f32
    %12 = vector.broadcast %cst_6 : f32 to vector<2x4xf32>
    %13 = arith.mulf %12, %11 : vector<2x4xf32>
    %14 = math.tanh %13 : vector<2x4xf32>
    %cst_7 = arith.constant 1.000000e+00 : f32
    %15 = vector.broadcast %cst_7 : f32 to vector<2x4xf32>
    %16 = arith.addf %15, %14 : vector<2x4xf32>
    %17 = arith.mulf %6, %16 : vector<2x4xf32>
    %c0_8 = arith.constant 0 : index
    %c0_9 = arith.constant 0 : index
    %c0_10 = arith.constant 0 : index
    %c0_11 = arith.constant 0 : index
    %18 = vector.load %arg9[%c0_8, %c0_9, %c0_10, %c0_11] : memref<1x6x4x16xf32, #tpu.memory_space<vmem>>, vector<1x6x4x16xf32>
    %19 = vector.shape_cast %18 : vector<1x6x4x16xf32> to vector<6x4x16xf32>
    "tpu.trace_start"() <{level = 10 : i32, message = "bk,skc->bsc"}> : () -> ()
    %cst_12 = arith.constant dense<0.000000e+00> : vector<2x6x16xf32>
    %20 = tpu.matmul %17, %19, %cst_12 {dimension_numbers = #tpu.dot_dimension_numbers<[1], [1], [0], [0, 2], [0, 0, 1, 0, 1, 2], [], []>} : vector<2x4xf32>, vector<6x4x16xf32>, vector<2x6x16xf32> -> vector<2x6x16xf32>
    "tpu.trace_stop"() : () -> ()
    %c0_13 = arith.constant 0 : index
    %c0_14 = arith.constant 0 : index
    %c0_15 = arith.constant 0 : index
    %21 = vector.load %arg10[%c0_13, %c0_14, %c0_15] : memref<1x6x16xf32, #tpu.memory_space<vmem>>, vector<1x6x16xf32>
    %22 = vector.shape_cast %21 : vector<1x6x16xf32> to vector<6x16xf32>
    %23 = vector.shape_cast %22 : vector<6x16xf32> to vector<1x6x16xf32>
    %24 = vector.broadcast %23 : vector<1x6x16xf32> to vector<2x6x16xf32>
    %25 = arith.addf %20, %24 : vector<2x6x16xf32>
    %26 = vector.extract_strided_slice %25 {offsets = [0, 0, 0], sizes = [2, 1, 16], strides = [1, 1, 1]} : vector<2x6x16xf32> to vector<2x1x16xf32>
    %27 = vector.shape_cast %26 : vector<2x1x16xf32> to vector<2x16xf32>
    %28 = vector.shape_cast %27 : vector<2x16xf32> to vector<2x16x1xf32>
    %29 = vector.extract_strided_slice %25 {offsets = [0, 1, 0], sizes = [2, 1, 16], strides = [1, 1, 1]} : vector<2x6x16xf32> to vector<2x1x16xf32>
    %30 = vector.shape_cast %29 : vector<2x1x16xf32> to vector<2x16xf32>
    %31 = vector.shape_cast %30 : vector<2x16xf32> to vector<2x16x1xf32>
    %32 = vector.extract_strided_slice %25 {offsets = [0, 2, 0], sizes = [2, 1, 16], strides = [1, 1, 1]} : vector<2x6x16xf32> to vector<2x1x16xf32>
    %33 = vector.shape_cast %32 : vector<2x1x16xf32> to vector<2x16xf32>
    %34 = vector.shape_cast %33 : vector<2x16xf32> to vector<2x16x1xf32>
    %35 = vector.extract_strided_slice %25 {offsets = [0, 3, 0], sizes = [2, 1, 16], strides = [1, 1, 1]} : vector<2x6x16xf32> to vector<2x1x16xf32>
    %36 = vector.shape_cast %35 : vector<2x1x16xf32> to vector<2x16xf32>
    %37 = vector.shape_cast %36 : vector<2x16xf32> to vector<2x16x1xf32>
    %38 = vector.extract_strided_slice %25 {offsets = [0, 4, 0], sizes = [2, 1, 16], strides = [1, 1, 1]} : vector<2x6x16xf32> to vector<2x1x16xf32>
    %39 = vector.shape_cast %38 : vector<2x1x16xf32> to vector<2x16xf32>
    %40 = vector.shape_cast %39 : vector<2x16xf32> to vector<2x16x1xf32>
    %41 = vector.extract_strided_slice %25 {offsets = [0, 5, 0], sizes = [2, 1, 16], strides = [1, 1, 1]} : vector<2x6x16xf32> to vector<2x1x16xf32>
    %42 = vector.shape_cast %41 : vector<2x1x16xf32> to vector<2x16xf32>
    %43 = vector.shape_cast %42 : vector<2x16xf32> to vector<2x16x1xf32>
    %cst_16 = arith.constant dense<0.000000e+00> : vector<2x16xf32>
    %44 = vector.multi_reduction <add>, %3, %cst_16 [2] : vector<2x16x128xf32> to vector<2x16xf32>
    %45 = vector.shape_cast %44 : vector<2x16xf32> to vector<2x16x1xf32>
    %cst_17 = arith.constant 1.280000e+02 : f32
    %46 = vector.broadcast %cst_17 : f32 to vector<2x16x1xf32>
    %47 = arith.divf %45, %46 : vector<2x16x1xf32>
    %48 = arith.mulf %3, %3 : vector<2x16x128xf32>
    %cst_18 = arith.constant dense<0.000000e+00> : vector<2x16xf32>
    %49 = vector.multi_reduction <add>, %48, %cst_18 [2] : vector<2x16x128xf32> to vector<2x16xf32>
    %50 = vector.shape_cast %49 : vector<2x16xf32> to vector<2x16x1xf32>
    %cst_19 = arith.constant 1.280000e+02 : f32
    %51 = vector.broadcast %cst_19 : f32 to vector<2x16x1xf32>
    %52 = arith.divf %50, %51 : vector<2x16x1xf32>
    %53 = arith.mulf %47, %47 : vector<2x16x1xf32>
    %54 = arith.subf %52, %53 : vector<2x16x1xf32>
    %cst_20 = arith.constant 0.000000e+00 : f32
    %55 = vector.broadcast %cst_20 : f32 to vector<2x16x1xf32>
    %56 = arith.maximumf %54, %55 : vector<2x16x1xf32>
    %57 = vector.broadcast %47 : vector<2x16x1xf32> to vector<2x16x128xf32>
    %58 = arith.subf %3, %57 : vector<2x16x128xf32>
    %cst_21 = arith.constant 9.99999974E-6 : f32
    %59 = vector.broadcast %cst_21 : f32 to vector<2x16x1xf32>
    %60 = arith.addf %56, %59 : vector<2x16x1xf32>
    %61 = math.rsqrt %60 : vector<2x16x1xf32>
    %62 = vector.broadcast %61 : vector<2x16x1xf32> to vector<2x16x128xf32>
    %63 = arith.mulf %58, %62 : vector<2x16x128xf32>
    %cst_22 = arith.constant 1.000000e+00 : f32
    %64 = vector.broadcast %cst_22 : f32 to vector<2x16x1xf32>
    %65 = arith.addf %64, %31 : vector<2x16x1xf32>
    %66 = vector.broadcast %65 : vector<2x16x1xf32> to vector<2x16x128xf32>
    %67 = arith.mulf %63, %66 : vector<2x16x128xf32>
    %68 = vector.broadcast %28 : vector<2x16x1xf32> to vector<2x16x128xf32>
    %69 = arith.addf %67, %68 : vector<2x16x128xf32>
    %70 = tpu.transpose %69, [1, 0, 2] : vector<2x16x128xf32> -> vector<16x2x128xf32>
    %71 = arith.truncf %70 : vector<16x2x128xf32> to vector<16x2x128xbf16>
    %c0_23 = arith.constant 0 : index
    %c0_24 = arith.constant 0 : index
    %c0_25 = arith.constant 0 : index
    %c0_26 = arith.constant 0 : index
    %72 = vector.load %arg11[%c0_23, %c0_24, %c0_25, %c0_26] : memref<1x16x128x128xbf16, #tpu.memory_space<vmem>>, vector<1x16x128x128xbf16>
    %73 = vector.shape_cast %72 : vector<1x16x128x128xbf16> to vector<16x128x128xbf16>
    "tpu.trace_start"() <{level = 10 : i32, message = "cbl,clk->cbk"}> : () -> ()
    %cst_27 = arith.constant dense<0.000000e+00> : vector<16x2x128xf32>
    %74 = tpu.matmul %71, %73, %cst_27 {dimension_numbers = #tpu.dot_dimension_numbers<[2], [1], [1], [2], [0, 0, 0, 1, 1, 2], [0], [0]>} : vector<16x2x128xbf16>, vector<16x128x128xbf16>, vector<16x2x128xf32> -> vector<16x2x128xf32>
    "tpu.trace_stop"() : () -> ()
    %75 = tpu.transpose %74, [1, 0, 2] : vector<16x2x128xf32> -> vector<2x16x128xf32>
    %c0_28 = arith.constant 0 : index
    %c0_29 = arith.constant 0 : index
    %c0_30 = arith.constant 0 : index
    %76 = vector.load %arg12[%c0_28, %c0_29, %c0_30] : memref<1x16x1xf32, #tpu.memory_space<vmem>>, vector<1x16x1xf32>
    %77 = vector.shape_cast %76 : vector<1x16x1xf32> to vector<16x1xf32>
    %78 = vector.shape_cast %77 : vector<16x1xf32> to vector<1x16x1xf32>
    %79 = vector.broadcast %78 : vector<1x16x1xf32> to vector<2x16x128xf32>
    %80 = arith.mulf %69, %79 : vector<2x16x128xf32>
    %81 = arith.addf %75, %80 : vector<2x16x128xf32>
    %cst_31 = arith.constant 5.000000e-01 : f32
    %82 = vector.broadcast %cst_31 : f32 to vector<2x16x128xf32>
    %83 = arith.mulf %82, %81 : vector<2x16x128xf32>
    %cst_32 = arith.constant 4.471500e-02 : f32
    %84 = vector.broadcast %cst_32 : f32 to vector<2x16x128xf32>
    %85 = arith.mulf %84, %81 : vector<2x16x128xf32>
    %86 = arith.mulf %85, %81 : vector<2x16x128xf32>
    %87 = arith.mulf %86, %81 : vector<2x16x128xf32>
    %88 = arith.addf %81, %87 : vector<2x16x128xf32>
    %cst_33 = arith.constant 0.797884583 : f32
    %89 = vector.broadcast %cst_33 : f32 to vector<2x16x128xf32>
    %90 = arith.mulf %89, %88 : vector<2x16x128xf32>
    %91 = math.tanh %90 : vector<2x16x128xf32>
    %cst_34 = arith.constant 1.000000e+00 : f32
    %92 = vector.broadcast %cst_34 : f32 to vector<2x16x128xf32>
    %93 = arith.addf %92, %91 : vector<2x16x128xf32>
    %94 = arith.mulf %83, %93 : vector<2x16x128xf32>
    %95 = vector.broadcast %34 : vector<2x16x1xf32> to vector<2x16x128xf32>
    %96 = arith.mulf %95, %94 : vector<2x16x128xf32>
    %97 = arith.addf %3, %96 : vector<2x16x128xf32>
    %cst_35 = arith.constant dense<0.000000e+00> : vector<2x16xf32>
    %98 = vector.multi_reduction <add>, %97, %cst_35 [2] : vector<2x16x128xf32> to vector<2x16xf32>
    %99 = vector.shape_cast %98 : vector<2x16xf32> to vector<2x16x1xf32>
    %cst_36 = arith.constant 1.280000e+02 : f32
    %100 = vector.broadcast %cst_36 : f32 to vector<2x16x1xf32>
    %101 = arith.divf %99, %100 : vector<2x16x1xf32>
    %102 = arith.mulf %97, %97 : vector<2x16x128xf32>
    %cst_37 = arith.constant dense<0.000000e+00> : vector<2x16xf32>
    %103 = vector.multi_reduction <add>, %102, %cst_37 [2] : vector<2x16x128xf32> to vector<2x16xf32>
    %104 = vector.shape_cast %103 : vector<2x16xf32> to vector<2x16x1xf32>
    %cst_38 = arith.constant 1.280000e+02 : f32
    %105 = vector.broadcast %cst_38 : f32 to vector<2x16x1xf32>
    %106 = arith.divf %104, %105 : vector<2x16x1xf32>
    %107 = arith.mulf %101, %101 : vector<2x16x1xf32>
    %108 = arith.subf %106, %107 : vector<2x16x1xf32>
    %cst_39 = arith.constant 0.000000e+00 : f32
    %109 = vector.broadcast %cst_39 : f32 to vector<2x16x1xf32>
    %110 = arith.maximumf %108, %109 : vector<2x16x1xf32>
    %111 = vector.broadcast %101 : vector<2x16x1xf32> to vector<2x16x128xf32>
    %112 = arith.subf %97, %111 : vector<2x16x128xf32>
    %cst_40 = arith.constant 9.99999974E-6 : f32
    %113 = vector.broadcast %cst_40 : f32 to vector<2x16x1xf32>
    %114 = arith.addf %110, %113 : vector<2x16x1xf32>
    %115 = math.rsqrt %114 : vector<2x16x1xf32>
    %116 = vector.broadcast %115 : vector<2x16x1xf32> to vector<2x16x128xf32>
    %117 = arith.mulf %112, %116 : vector<2x16x128xf32>
    %cst_41 = arith.constant 1.000000e+00 : f32
    %118 = vector.broadcast %cst_41 : f32 to vector<2x16x1xf32>
    %119 = arith.addf %118, %40 : vector<2x16x1xf32>
    %120 = vector.broadcast %119 : vector<2x16x1xf32> to vector<2x16x128xf32>
    %121 = arith.mulf %117, %120 : vector<2x16x128xf32>
    %122 = vector.broadcast %37 : vector<2x16x1xf32> to vector<2x16x128xf32>
    %123 = arith.addf %121, %122 : vector<2x16x128xf32>
    %124 = arith.truncf %123 : vector<2x16x128xf32> to vector<2x16x128xbf16>
    %c0_42 = arith.constant 0 : index
    %c0_43 = arith.constant 0 : index
    %c0_44 = arith.constant 0 : index
    %125 = vector.load %arg13[%c0_42, %c0_43, %c0_44] : memref<1x32x16xbf16, #tpu.memory_space<vmem>>, vector<1x32x16xbf16>
    %126 = vector.shape_cast %125 : vector<1x32x16xbf16> to vector<32x16xbf16>
    "tpu.trace_start"() <{level = 10 : i32, message = "hc,bcl->bhl"}> : () -> ()
    %cst_45 = arith.constant dense<0.000000e+00> : vector<2x128x32xf32>
    %127 = tpu.matmul %124, %126, %cst_45 {dimension_numbers = #tpu.dot_dimension_numbers<[1], [1], [0, 2], [0], [0, 0, 0, 2, 1, 0], [], []>} : vector<2x16x128xbf16>, vector<32x16xbf16>, vector<2x128x32xf32> -> vector<2x128x32xf32>
    %128 = tpu.transpose %127, [0, 2, 1] : vector<2x128x32xf32> -> vector<2x32x128xf32>
    "tpu.trace_stop"() : () -> ()
    %c0_46 = arith.constant 0 : index
    %c0_47 = arith.constant 0 : index
    %c0_48 = arith.constant 0 : index
    %129 = vector.load %arg14[%c0_46, %c0_47, %c0_48] : memref<1x32x1xf32, #tpu.memory_space<vmem>>, vector<1x32x1xf32>
    %130 = vector.shape_cast %129 : vector<1x32x1xf32> to vector<32x1xf32>
    %131 = vector.shape_cast %130 : vector<32x1xf32> to vector<1x32x1xf32>
    %132 = vector.broadcast %131 : vector<1x32x1xf32> to vector<2x32x128xf32>
    %133 = arith.addf %128, %132 : vector<2x32x128xf32>
    %cst_49 = arith.constant 5.000000e-01 : f32
    %134 = vector.broadcast %cst_49 : f32 to vector<2x32x128xf32>
    %135 = arith.mulf %134, %133 : vector<2x32x128xf32>
    %cst_50 = arith.constant 4.471500e-02 : f32
    %136 = vector.broadcast %cst_50 : f32 to vector<2x32x128xf32>
    %137 = arith.mulf %136, %133 : vector<2x32x128xf32>
    %138 = arith.mulf %137, %133 : vector<2x32x128xf32>
    %139 = arith.mulf %138, %133 : vector<2x32x128xf32>
    %140 = arith.addf %133, %139 : vector<2x32x128xf32>
    %cst_51 = arith.constant 0.797884583 : f32
    %141 = vector.broadcast %cst_51 : f32 to vector<2x32x128xf32>
    %142 = arith.mulf %141, %140 : vector<2x32x128xf32>
    %143 = math.tanh %142 : vector<2x32x128xf32>
    %cst_52 = arith.constant 1.000000e+00 : f32
    %144 = vector.broadcast %cst_52 : f32 to vector<2x32x128xf32>
    %145 = arith.addf %144, %143 : vector<2x32x128xf32>
    %146 = arith.mulf %135, %145 : vector<2x32x128xf32>
    %c0_53 = arith.constant 0 : index
    %c0_54 = arith.constant 0 : index
    %c0_55 = arith.constant 0 : index
    %147 = vector.load %arg15[%c0_53, %c0_54, %c0_55] : memref<1x16x32xbf16, #tpu.memory_space<vmem>>, vector<1x16x32xbf16>
    %148 = vector.shape_cast %147 : vector<1x16x32xbf16> to vector<16x32xbf16>
    %149 = arith.truncf %146 : vector<2x32x128xf32> to vector<2x32x128xbf16>
    "tpu.trace_start"() <{level = 10 : i32, message = "ch,bhl->bcl"}> : () -> ()
    %cst_56 = arith.constant dense<0.000000e+00> : vector<2x128x16xf32>
    %150 = tpu.matmul %149, %148, %cst_56 {dimension_numbers = #tpu.dot_dimension_numbers<[1], [1], [0, 2], [0], [0, 0, 0, 2, 1, 0], [], []>} : vector<2x32x128xbf16>, vector<16x32xbf16>, vector<2x128x16xf32> -> vector<2x128x16xf32>
    %151 = tpu.transpose %150, [0, 2, 1] : vector<2x128x16xf32> -> vector<2x16x128xf32>
    "tpu.trace_stop"() : () -> ()
    %c0_57 = arith.constant 0 : index
    %c0_58 = arith.constant 0 : index
    %c0_59 = arith.constant 0 : index
    %152 = vector.load %arg16[%c0_57, %c0_58, %c0_59] : memref<1x16x1xf32, #tpu.memory_space<vmem>>, vector<1x16x1xf32>
    %153 = vector.shape_cast %152 : vector<1x16x1xf32> to vector<16x1xf32>
    %154 = vector.shape_cast %153 : vector<16x1xf32> to vector<1x16x1xf32>
    %155 = vector.broadcast %154 : vector<1x16x1xf32> to vector<2x16x128xf32>
    %156 = arith.addf %151, %155 : vector<2x16x128xf32>
    %157 = vector.broadcast %43 : vector<2x16x1xf32> to vector<2x16x128xf32>
    %158 = arith.mulf %157, %156 : vector<2x16x128xf32>
    %159 = arith.addf %97, %158 : vector<2x16x128xf32>
    %c0_60 = arith.constant 0 : index
    %c0_61 = arith.constant 0 : index
    %c0_62 = arith.constant 0 : index
    %160 = vector.load %arg20[%c0_60, %c0_61, %c0_62] : memref<2x16x128xf32, #tpu.memory_space<vmem>>, vector<2x16x128xf32>
    tpu.vector_store %arg20[%c0_60, %c0_61, %c0_62], %159 {strides = array<i32>} : memref<2x16x128xf32, #tpu.memory_space<vmem>>, vector<2x16x128xf32>,
    %c1_i32 = arith.constant 1 : i32
    %161 = arith.cmpi eq, %arg0, %c1_i32 : i32
    %162 = arith.extui %161 : i1 to i32
    %c0_i32_63 = arith.constant 0 : i32
    %163 = arith.cmpi ne, %162, %c0_i32_63 : i32
    scf.if %163 {
      %c0_64 = arith.constant 0 : index
      %c0_65 = arith.constant 0 : index
      %164 = vector.load %arg17[%c0_64, %c0_65] : memref<4x16xf32, #tpu.memory_space<vmem>>, vector<4x16xf32>
      "tpu.trace_start"() <{level = 10 : i32, message = "oc,bcl->bol"}> : () -> ()
      %cst_66 = arith.constant dense<0.000000e+00> : vector<2x128x4xf32>
      %165 = tpu.matmul %159, %164, %cst_66 {dimension_numbers = #tpu.dot_dimension_numbers<[1], [1], [0, 2], [0], [0, 0, 0, 2, 1, 0], [], []>} : vector<2x16x128xf32>, vector<4x16xf32>, vector<2x128x4xf32> -> vector<2x128x4xf32>
      %166 = tpu.transpose %165, [0, 2, 1] : vector<2x128x4xf32> -> vector<2x4x128xf32>
      "tpu.trace_stop"() : () -> ()
      %c0_67 = arith.constant 0 : index
      %c0_68 = arith.constant 0 : index
      %167 = vector.load %arg18[%c0_67, %c0_68] : memref<4x1xf32, #tpu.memory_space<vmem>>, vector<4x1xf32>
      %168 = vector.shape_cast %167 : vector<4x1xf32> to vector<1x4x1xf32>
      %169 = vector.broadcast %168 : vector<1x4x1xf32> to vector<2x4x128xf32>
      %170 = arith.addf %166, %169 : vector<2x4x128xf32>
      %c0_69 = arith.constant 0 : index
      %c0_70 = arith.constant 0 : index
      %c0_71 = arith.constant 0 : index
      %171 = vector.load %arg19[%c0_69, %c0_70, %c0_71] : memref<2x4x128xf32, #tpu.memory_space<vmem>>, vector<2x4x128xf32>
      tpu.vector_store %arg19[%c0_69, %c0_70, %c0_71], %170 {strides = array<i32>} : memref<2x4x128xf32, #tpu.memory_space<vmem>>, vector<2x4x128xf32>,
    } else {
    }
    return
  }
  func.func @transform_0(%arg0: i32) -> (i32, i32, i32) {
    %c0_i32 = arith.constant 0 : i32
    %c0_i32_0 = arith.constant 0 : i32
    %c0_i32_1 = arith.constant 0 : i32
    %c0_i32_2 = arith.constant 0 : i32
    return %c0_i32, %c0_i32_0, %c0_i32_1 : i32, i32, i32
  }
  func.func @transform_1(%arg0: i32) -> (i32, i32) {
    %c0_i32 = arith.constant 0 : i32
    %c0_i32_0 = arith.constant 0 : i32
    %c0_i32_1 = arith.constant 0 : i32
    return %c0_i32, %c0_i32_0 : i32, i32
  }
  func.func @transform_2(%arg0: i32) -> (i32, i32) {
    %c0_i32 = arith.constant 0 : i32
    %c0_i32_0 = arith.constant 0 : i32
    %c0_i32_1 = arith.constant 0 : i32
    return %c0_i32, %c0_i32_0 : i32, i32
  }
  func.func @transform_3(%arg0: i32) -> (i32, i32) {
    %c0_i32 = arith.constant 0 : i32
    %c0_i32_0 = arith.constant 0 : i32
    %c0_i32_1 = arith.constant 0 : i32
    return %c0_i32, %c0_i32_0 : i32, i32
  }
  func.func @transform_4(%arg0: i32) -> (i32, i32) {
    %c0_i32 = arith.constant 0 : i32
    %c0_i32_0 = arith.constant 0 : i32
    %c0_i32_1 = arith.constant 0 : i32
    return %c0_i32, %c0_i32_0 : i32, i32
  }
  func.func @transform_5(%arg0: i32) -> (i32, i32) {
    %c0_i32 = arith.constant 0 : i32
    %c0_i32_0 = arith.constant 0 : i32
    %c0_i32_1 = arith.constant 0 : i32
    return %c0_i32, %c0_i32_0 : i32, i32
  }
  func.func @transform_6(%arg0: i32) -> (i32, i32) {
    %c0_i32 = arith.constant 0 : i32
    %c0_i32_0 = arith.constant 0 : i32
    %c0_i32_1 = arith.constant 0 : i32
    return %c0_i32, %c0_i32_0 : i32, i32
  }
  func.func @transform_7(%arg0: i32) -> (i32, i32) {
    %c0_i32 = arith.constant 0 : i32
    %c0_i32_0 = arith.constant 0 : i32
    %c0_i32_1 = arith.constant 0 : i32
    return %c0_i32, %c0_i32_0 : i32, i32
  }
  func.func @transform_8(%arg0: i32) -> (i32, i32, i32, i32) {
    %c0_i32 = arith.constant 0 : i32
    %c0_i32_0 = arith.constant 0 : i32
    %c0_i32_1 = arith.constant 0 : i32
    %c0_i32_2 = arith.constant 0 : i32
    return %arg0, %c0_i32, %c0_i32_0, %c0_i32_1 : i32, i32, i32, i32
  }
  func.func @transform_9(%arg0: i32) -> (i32, i32, i32) {
    %c0_i32 = arith.constant 0 : i32
    %c0_i32_0 = arith.constant 0 : i32
    %c0_i32_1 = arith.constant 0 : i32
    return %arg0, %c0_i32, %c0_i32_0 : i32, i32, i32
  }
  func.func @transform_10(%arg0: i32) -> (i32, i32, i32, i32) {
    %c0_i32 = arith.constant 0 : i32
    %c0_i32_0 = arith.constant 0 : i32
    %c0_i32_1 = arith.constant 0 : i32
    %c0_i32_2 = arith.constant 0 : i32
    return %arg0, %c0_i32, %c0_i32_0, %c0_i32_1 : i32, i32, i32, i32
  }
  func.func @transform_11(%arg0: i32) -> (i32, i32, i32) {
    %c0_i32 = arith.constant 0 : i32
    %c0_i32_0 = arith.constant 0 : i32
    %c0_i32_1 = arith.constant 0 : i32
    return %arg0, %c0_i32, %c0_i32_0 : i32, i32, i32
  }
  func.func @transform_12(%arg0: i32) -> (i32, i32, i32) {
    %c0_i32 = arith.constant 0 : i32
    %c0_i32_0 = arith.constant 0 : i32
    %c0_i32_1 = arith.constant 0 : i32
    return %arg0, %c0_i32, %c0_i32_0 : i32, i32, i32
  }
  func.func @transform_13(%arg0: i32) -> (i32, i32, i32) {
    %c0_i32 = arith.constant 0 : i32
    %c0_i32_0 = arith.constant 0 : i32
    %c0_i32_1 = arith.constant 0 : i32
    return %arg0, %c0_i32, %c0_i32_0 : i32, i32, i32
  }
  func.func @transform_14(%arg0: i32) -> (i32, i32, i32) {
    %c0_i32 = arith.constant 0 : i32
    %c0_i32_0 = arith.constant 0 : i32
    %c0_i32_1 = arith.constant 0 : i32
    return %arg0, %c0_i32, %c0_i32_0 : i32, i32, i32
  }
  func.func @transform_15(%arg0: i32) -> (i32, i32, i32) {
    %c0_i32 = arith.constant 0 : i32
    %c0_i32_0 = arith.constant 0 : i32
    %c0_i32_1 = arith.constant 0 : i32
    return %arg0, %c0_i32, %c0_i32_0 : i32, i32, i32
  }
  func.func @transform_16(%arg0: i32) -> (i32, i32) {
    %c0_i32 = arith.constant 0 : i32
    %c0_i32_0 = arith.constant 0 : i32
    %c0_i32_1 = arith.constant 0 : i32
    return %c0_i32, %c0_i32_0 : i32, i32
  }
  func.func @transform_17(%arg0: i32) -> (i32, i32) {
    %c0_i32 = arith.constant 0 : i32
    %c0_i32_0 = arith.constant 0 : i32
    %c0_i32_1 = arith.constant 0 : i32
    return %c0_i32, %c0_i32_0 : i32, i32
  }
  func.func @transform_18(%arg0: i32) -> (i32, i32, i32) {
    %c0_i32 = arith.constant 0 : i32
    %c0_i32_0 = arith.constant 0 : i32
    %c0_i32_1 = arith.constant 0 : i32
    %c0_i32_2 = arith.constant 0 : i32
    return %c0_i32, %c0_i32_0, %c0_i32_1 : i32, i32, i32
  }
}

</mosaic_0001>

<llo_original>
// kernel: tpu_custom_call.1
$region0: #{tpu_custom_call.1}
  #allocation0 [shape = 'u32[]', space=smem, size = 0x4, offset = 0x4, fixed_abs, tag = 'smem constant byte address 0x4 - core index']
  #allocation1 [shape = 'u32[144,128]{1,0:T(1,128)}', space=vmem, size = 0x12000, scoped, tag = 'internal scratch']
  #allocation2 [shape = 'f32[2,16,128]{2,1,0:T(8,128)}', space=vmem, size = 0x4000, scoped, tag = 'scratch operand']
  #allocation3 [shape = 'f32[2,4]{1,0:T(2,128)}', space=vmem, size = 0x400, scoped, tag = 'scratch operand']
  %s0 = inlined_call_operand.vmem [shape: f32[2,4,128], index: 0, kind: input, shape index: {}]
  %s1 = inlined_call_operand.vmem [shape: f32[2,256], index: 1, kind: input, shape index: {}]
  %s2 = inlined_call_operand.vmem [shape: f32[16,4], index: 2, kind: input, shape index: {}]
  %s3 = inlined_call_operand.vmem [shape: f32[16,1], index: 3, kind: input, shape index: {}]
  %s4 = inlined_call_operand.vmem [shape: f32[256,4], index: 4, kind: input, shape index: {}]
  %s5 = inlined_call_operand.vmem [shape: f32[1,4], index: 5, kind: input, shape index: {}]
  %s6 = inlined_call_operand.vmem [shape: f32[4,4], index: 6, kind: input, shape index: {}]
  %s7 = inlined_call_operand.vmem [shape: f32[1,4], index: 7, kind: input, shape index: {}]
  %s8 = inlined_call_operand.vmem [shape: f32[2,6,4,16], index: 8, kind: input, shape index: {}]
  %s9 = inlined_call_operand.vmem [shape: f32[2,6,16], index: 9, kind: input, shape index: {}]
  %s10 = inlined_call_operand.hbm [shape: bf16[2,16,128,128], index: 10, kind: input, shape index: {}]
  %s11 = inlined_call_operand.vmem [shape: f32[2,16,1], index: 11, kind: input, shape index: {}]
  %s12 = inlined_call_operand.vmem [shape: bf16[2,32,16], index: 12, kind: input, shape index: {}]
  %s13 = inlined_call_operand.vmem [shape: f32[2,32,1], index: 13, kind: input, shape index: {}]
  %s14 = inlined_call_operand.vmem [shape: bf16[2,16,32], index: 14, kind: input, shape index: {}]
  %s15 = inlined_call_operand.vmem [shape: f32[2,16,1], index: 15, kind: input, shape index: {}]
  %s16 = inlined_call_operand.vmem [shape: f32[4,16], index: 16, kind: input, shape index: {}]
  %s17 = inlined_call_operand.vmem [shape: f32[4,1], index: 17, kind: input, shape index: {}]
  %s18 = inlined_call_operand.hbm [shape: f32[2,4,128], index: 18, kind: output, shape index: {}]
  %s19 = sld [smem:[#allocation0]]
  $region117: #{tpu_custom_call.1} parent=0
    _
  %s21 = ssub.s32 1, %s19
  %s22 = scalar_select 0, %s21, %s19
  $region1: #{tpu_custom_call.1} parent=0
    #allocation4 [shape = 'u8[1048576]{0}', space=vmem, size = 0x100000, scoped, tag = 'input window, operand 10']
    #allocation5 [shape = 's32[2]{0}', space=sflag, size = 0x8, scoped, tag = 'scoped memory for tpu_custom_call.1']
    #allocation6 [shape = 's32[2]{0}', space=sflag, size = 0x8, scoped, tag = 'scoped memory for tpu_custom_call.1']
    #allocation7 [shape = 'u8[4096]{0}', space=vmem, size = 0x1000, scoped, tag = 'output window, operand 0, single buffered']
    %23 = vsyncpa [#allocation5], 0
    %s24 = scalar_lea.sflag [#allocation5], 1
    %25 = vsyncpa %s24, 0
    %26 = vsyncpa [#allocation6], 0
    loop: start=0, step=1, limit=4
    $region2: #{tpu_custom_call.1} parent=1 // loop_pre_header
      _
    $region3: #{tpu_custom_call.1} parent=1 // loop_header
      %s28 = sphi 0, %s32
      %p29 = scmp.ge.s32.totalorder %s28, 4
      %s36 = sphi 0, %s36
      %s38 = sphi 0, %s36
      %s39 = sphi 0, %s38
      %s53 = sphi 0, %s39
      %s57 = sphi 0, %s57
      %s59 = sphi 0, %s57
      %s60 = sphi 0, %s59
      %s74 = sphi 0, %s60
      %s78 = sphi 0, %s78
      %s80 = sphi 0, %s78
      %s81 = sphi 0, %s80
      %s95 = sphi 0, %s81
      %s99 = sphi 0, %s99
      %s101 = sphi 0, %s99
      %s102 = sphi 0, %s101
      %s116 = sphi 0, %s102
      %s120 = sphi 0, %s120
      %s122 = sphi 0, %s120
      %s123 = sphi 0, %s122
      %s137 = sphi 0, %s123
      %s141 = sphi 0, %s141
      %s143 = sphi 0, %s141
      %s144 = sphi 0, %s143
      %s158 = sphi 0, %s144
      %s162 = sphi 0, %s162
      %s164 = sphi 0, %s162
      %s165 = sphi 0, %s164
      %s179 = sphi 0, %s165
      %s183 = sphi 0, %s183
      %s185 = sphi 0, %s183
      %s186 = sphi 0, %s185
      %s200 = sphi 0, %s186
      %s206 = sphi 0, %s208
      %s209 = sphi 0, %s206
      %s210 = sphi 0, %s209
      %s226 = sphi 0, %s210
      %s232 = sphi 0, %s234
      %s235 = sphi 0, %s232
      %s236 = sphi 0, %s235
      %s252 = sphi 0, %s236
      %s258 = sphi 0, %s260
      %s261 = sphi 0, %s258
      %s262 = sphi 0, %s261
      %s278 = sphi 0, %s262
      %s284 = sphi 0, %s286
      %s287 = sphi 0, %s284
      %s288 = sphi 0, %s287
      %s304 = sphi 0, %s288
      %s310 = sphi 0, %s312
      %s313 = sphi 0, %s310
      %s314 = sphi 0, %s313
      %s330 = sphi 0, %s314
      %s336 = sphi 0, %s338
      %s339 = sphi 0, %s336
      %s340 = sphi 0, %s339
      %s356 = sphi 0, %s340
      %s362 = sphi 0, %s364
      %s365 = sphi 0, %s362
      %s366 = sphi 0, %s365
      %s382 = sphi 0, %s366
      %s388 = sphi 0, %s390
      %s391 = sphi 0, %s388
      %s392 = sphi 0, %s391
      %s408 = sphi 0, %s392
      %s412 = sphi 0, %s412
      %s414 = sphi 0, %s412
      %s415 = sphi 0, %s414
      %s429 = sphi 0, %s415
      %s433 = sphi 0, %s433
      %s435 = sphi 0, %s433
      %s436 = sphi 0, %s435
      %s450 = sphi 0, %s436
      %s454 = sphi 0, %s454
      %s456 = sphi 0, %s454
      %s457 = sphi 0, %s456
      %s471 = sphi 0, %s457
    $region4: #{tpu_custom_call.1} parent=1 // loop_header_branch
      %31 = sbr.rel (%p29) target = $region8
    $region5: #{tpu_custom_call.1} parent=1 // loop_body
      %s33 = ssub.s32 %s28, 1
      %s34 = ssub.s32 %s28, 2
      %s35 = sadd.s32 %s28, 1
      %s37 = sadd.s32 %s36, 1
      %p40 = scmp.eq.s32.totalorder %s28, 1
      %p41 = scmp.ne.s32.totalorder %s36, %s38
      %p42 = scmp.eq.s32.totalorder %s28, 0
      %p43 = por %p41, %p42
      %p44 = scmp.ne.s32.totalorder %s36, %s38
      %p45 = scmp.eq.s32.totalorder %s33, 1
      %p46 = por %p44, %p45
      %p47 = scmp.ne.s32.totalorder %s38, %s39
      %p48 = scmp.eq.s32.totalorder %s33, 0
      %p49 = por %p47, %p48
      %p50 = scmp.ne.s32.totalorder %s38, %s39
      %p51 = scmp.eq.s32.totalorder %s34, 1
      %p52 = por %p50, %p51
      %p54 = scmp.ne.s32.totalorder %s39, %s53
      %p55 = scmp.eq.s32.totalorder %s34, 0
      %p56 = por %p54, %p55
      %s58 = sadd.s32 %s57, 1
      %p61 = scmp.eq.s32.totalorder %s28, 1
      %p62 = scmp.ne.s32.totalorder %s57, %s59
      %p63 = scmp.eq.s32.totalorder %s28, 0
      %p64 = por %p62, %p63
      %p65 = scmp.ne.s32.totalorder %s57, %s59
      %p66 = scmp.eq.s32.totalorder %s33, 1
      %p67 = por %p65, %p66
      %p68 = scmp.ne.s32.totalorder %s59, %s60
      %p69 = scmp.eq.s32.totalorder %s33, 0
      %p70 = por %p68, %p69
      %p71 = scmp.ne.s32.totalorder %s59, %s60
      %p72 = scmp.eq.s32.totalorder %s34, 1
      %p73 = por %p71, %p72
      %p75 = scmp.ne.s32.totalorder %s60, %s74
      %p76 = scmp.eq.s32.totalorder %s34, 0
      %p77 = por %p75, %p76
      %s79 = sadd.s32 %s78, 1
      %p82 = scmp.eq.s32.totalorder %s28, 1
      %p83 = scmp.ne.s32.totalorder %s78, %s80
      %p84 = scmp.eq.s32.totalorder %s28, 0
      %p85 = por %p83, %p84
      %p86 = scmp.ne.s32.totalorder %s78, %s80
      %p87 = scmp.eq.s32.totalorder %s33, 1
      %p88 = por %p86, %p87
      %p89 = scmp.ne.s32.totalorder %s80, %s81
      %p90 = scmp.eq.s32.totalorder %s33, 0
      %p91 = por %p89, %p90
      %p92 = scmp.ne.s32.totalorder %s80, %s81
      %p93 = scmp.eq.s32.totalorder %s34, 1
      %p94 = por %p92, %p93
      %p96 = scmp.ne.s32.totalorder %s81, %s95
      %p97 = scmp.eq.s32.totalorder %s34, 0
      %p98 = por %p96, %p97
      %s100 = sadd.s32 %s99, 1
      %p103 = scmp.eq.s32.totalorder %s28, 1
      %p104 = scmp.ne.s32.totalorder %s99, %s101
      %p105 = scmp.eq.s32.totalorder %s28, 0
      %p106 = por %p104, %p105
      %p107 = scmp.ne.s32.totalorder %s99, %s101
      %p108 = scmp.eq.s32.totalorder %s33, 1
      %p109 = por %p107, %p108
      %p110 = scmp.ne.s32.totalorder %s101, %s102
      %p111 = scmp.eq.s32.totalorder %s33, 0
      %p112 = por %p110, %p111
      %p113 = scmp.ne.s32.totalorder %s101, %s102
      %p114 = scmp.eq.s32.totalorder %s34, 1
      %p115 = por %p113, %p114
      %p117 = scmp.ne.s32.totalorder %s102, %s116
      %p118 = scmp.eq.s32.totalorder %s34, 0
      %p119 = por %p117, %p118
      %s121 = sadd.s32 %s120, 1
      %p124 = scmp.eq.s32.totalorder %s28, 1
      %p125 = scmp.ne.s32.totalorder %s120, %s122
      %p126 = scmp.eq.s32.totalorder %s28, 0
      %p127 = por %p125, %p126
      %p128 = scmp.ne.s32.totalorder %s120, %s122
      %p129 = scmp.eq.s32.totalorder %s33, 1
      %p130 = por %p128, %p129
      %p131 = scmp.ne.s32.totalorder %s122, %s123
      %p132 = scmp.eq.s32.totalorder %s33, 0
      %p133 = por %p131, %p132
      %p134 = scmp.ne.s32.totalorder %s122, %s123
      %p135 = scmp.eq.s32.totalorder %s34, 1
      %p136 = por %p134, %p135
      %p138 = scmp.ne.s32.totalorder %s123, %s137
      %p139 = scmp.eq.s32.totalorder %s34, 0
      %p140 = por %p138, %p139
      %s142 = sadd.s32 %s141, 1
      %p145 = scmp.eq.s32.totalorder %s28, 1
      %p146 = scmp.ne.s32.totalorder %s141, %s143
      %p147 = scmp.eq.s32.totalorder %s28, 0
      %p148 = por %p146, %p147
      %p149 = scmp.ne.s32.totalorder %s141, %s143
      %p150 = scmp.eq.s32.totalorder %s33, 1
      %p151 = por %p149, %p150
      %p152 = scmp.ne.s32.totalorder %s143, %s144
      %p153 = scmp.eq.s32.totalorder %s33, 0
      %p154 = por %p152, %p153
      %p155 = scmp.ne.s32.totalorder %s143, %s144
      %p156 = scmp.eq.s32.totalorder %s34, 1
      %p157 = por %p155, %p156
      %p159 = scmp.ne.s32.totalorder %s144, %s158
      %p160 = scmp.eq.s32.totalorder %s34, 0
      %p161 = por %p159, %p160
      %s163 = sadd.s32 %s162, 1
      %p166 = scmp.eq.s32.totalorder %s28, 1
      %p167 = scmp.ne.s32.totalorder %s162, %s164
      %p168 = scmp.eq.s32.totalorder %s28, 0
      %p169 = por %p167, %p168
      %p170 = scmp.ne.s32.totalorder %s162, %s164
      %p171 = scmp.eq.s32.totalorder %s33, 1
      %p172 = por %p170, %p171
      %p173 = scmp.ne.s32.totalorder %s164, %s165
      %p174 = scmp.eq.s32.totalorder %s33, 0
      %p175 = por %p173, %p174
      %p176 = scmp.ne.s32.totalorder %s164, %s165
      %p177 = scmp.eq.s32.totalorder %s34, 1
      %p178 = por %p176, %p177
      %p180 = scmp.ne.s32.totalorder %s165, %s179
      %p181 = scmp.eq.s32.totalorder %s34, 0
      %p182 = por %p180, %p181
      %s184 = sadd.s32 %s183, 1
      %p187 = scmp.eq.s32.totalorder %s28, 1
      %p188 = scmp.ne.s32.totalorder %s183, %s185
      %p189 = scmp.eq.s32.totalorder %s28, 0
      %p190 = por %p188, %p189
      %p191 = scmp.ne.s32.totalorder %s183, %s185
      %p192 = scmp.eq.s32.totalorder %s33, 1
      %p193 = por %p191, %p192
      %p194 = scmp.ne.s32.totalorder %s185, %s186
      %p195 = scmp.eq.s32.totalorder %s33, 0
      %p196 = por %p194, %p195
      %p197 = scmp.ne.s32.totalorder %s185, %s186
      %p198 = scmp.eq.s32.totalorder %s34, 1
      %p199 = por %p197, %p198
      %p201 = scmp.ne.s32.totalorder %s186, %s200
      %p202 = scmp.eq.s32.totalorder %s34, 0
      %p203 = por %p201, %p202
      %s204 = ssub.s32 %s28, %s35
      %p205 = scmp.eq.s32.totalorder %s204, 0
      %s207 = sadd.s32 %s206, 1
      %s208 = scalar_select %p205, %s206, %s207
      %p211 = pneg %p205
      %p212 = scmp.eq.s32.totalorder %s28, 1
      %p213 = por %p211, %p212
      %p214 = scmp.ne.s32.totalorder %s206, %s209
      %p215 = scmp.eq.s32.totalorder %s28, 0
      %p216 = por %p214, %p215
      %p217 = scmp.ne.s32.totalorder %s206, %s209
      %p218 = scmp.eq.s32.totalorder %s33, 1
      %p219 = por %p217, %p218
      %p220 = scmp.ne.s32.totalorder %s209, %s210
      %p221 = scmp.eq.s32.totalorder %s33, 0
      %p222 = por %p220, %p221
      %p223 = scmp.ne.s32.totalorder %s209, %s210
      %p224 = scmp.eq.s32.totalorder %s34, 1
      %p225 = por %p223, %p224
      %p227 = scmp.ne.s32.totalorder %s210, %s226
      %p228 = scmp.eq.s32.totalorder %s34, 0
      %p229 = por %p227, %p228
      %s230 = ssub.s32 %s28, %s35
      %p231 = scmp.eq.s32.totalorder %s230, 0
      %s233 = sadd.s32 %s232, 1
      %s234 = scalar_select %p231, %s232, %s233
      %p237 = pneg %p231
      %p238 = scmp.eq.s32.totalorder %s28, 1
      %p239 = por %p237, %p238
      %p240 = scmp.ne.s32.totalorder %s232, %s235
      %p241 = scmp.eq.s32.totalorder %s28, 0
      %p242 = por %p240, %p241
      %p243 = scmp.ne.s32.totalorder %s232, %s235
      %p244 = scmp.eq.s32.totalorder %s33, 1
      %p245 = por %p243, %p244
      %p246 = scmp.ne.s32.totalorder %s235, %s236
      %p247 = scmp.eq.s32.totalorder %s33, 0
      %p248 = por %p246, %p247
      %p249 = scmp.ne.s32.totalorder %s235, %s236
      %p250 = scmp.eq.s32.totalorder %s34, 1
      %p251 = por %p249, %p250
      %p253 = scmp.ne.s32.totalorder %s236, %s252
      %p254 = scmp.eq.s32.totalorder %s34, 0
      %p255 = por %p253, %p254
      %s256 = ssub.s32 %s28, %s35
      %p257 = scmp.eq.s32.totalorder %s256, 0
      %s259 = sadd.s32 %s258, 1
      %s260 = scalar_select %p257, %s258, %s259
      %p263 = pneg %p257
      %p264 = scmp.eq.s32.totalorder %s28, 1
      %p265 = por %p263, %p264
      %p266 = scmp.ne.s32.totalorder %s258, %s261
      %p267 = scmp.eq.s32.totalorder %s28, 0
      %p268 = por %p266, %p267
      %p269 = scmp.ne.s32.totalorder %s258, %s261
      %p270 = scmp.eq.s32.totalorder %s33, 1
      %p271 = por %p269, %p270
      %p272 = scmp.ne.s32.totalorder %s261, %s262
      %p273 = scmp.eq.s32.totalorder %s33, 0
      %p274 = por %p272, %p273
      %p275 = scmp.ne.s32.totalorder %s261, %s262
      %p276 = scmp.eq.s32.totalorder %s34, 1
      %p277 = por %p275, %p276
      %p279 = scmp.ne.s32.totalorder %s262, %s278
      %p280 = scmp.eq.s32.totalorder %s34, 0
      %p281 = por %p279, %p280
      %s282 = ssub.s32 %s28, %s35
      %p283 = scmp.eq.s32.totalorder %s282, 0
      %s285 = sadd.s32 %s284, 1
      %s286 = scalar_select %p283, %s284, %s285
      %p289 = pneg %p283
      %p290 = scmp.eq.s32.totalorder %s28, 1
      %p291 = por %p289, %p290
      %p292 = scmp.ne.s32.totalorder %s284, %s287
      %p293 = scmp.eq.s32.totalorder %s28, 0
      %p294 = por %p292, %p293
      %p295 = scmp.ne.s32.totalorder %s284, %s287
      %p296 = scmp.eq.s32.totalorder %s33, 1
      %p297 = por %p295, %p296
      %p298 = scmp.ne.s32.totalorder %s287, %s288
      %p299 = scmp.eq.s32.totalorder %s33, 0
      %p300 = por %p298, %p299
      %p301 = scmp.ne.s32.totalorder %s287, %s288
      %p302 = scmp.eq.s32.totalorder %s34, 1
      %p303 = por %p301, %p302
      %p305 = scmp.ne.s32.totalorder %s288, %s304
      %p306 = scmp.eq.s32.totalorder %s34, 0
      %p307 = por %p305, %p306
      %s308 = ssub.s32 %s28, %s35
      %p309 = scmp.eq.s32.totalorder %s308, 0
      %s311 = sadd.s32 %s310, 1
      %s312 = scalar_select %p309, %s310, %s311
      %p315 = pneg %p309
      %p316 = scmp.eq.s32.totalorder %s28, 1
      %p317 = por %p315, %p316
      %p318 = scmp.ne.s32.totalorder %s310, %s313
      %p319 = scmp.eq.s32.totalorder %s28, 0
      %p320 = por %p318, %p319
      %p321 = scmp.ne.s32.totalorder %s310, %s313
      %p322 = scmp.eq.s32.totalorder %s33, 1
      %p323 = por %p321, %p322
      %p324 = scmp.ne.s32.totalorder %s313, %s314
      %p325 = scmp.eq.s32.totalorder %s33, 0
      %p326 = por %p324, %p325
      %p327 = scmp.ne.s32.totalorder %s313, %s314
      %p328 = scmp.eq.s32.totalorder %s34, 1
      %p329 = por %p327, %p328
      %p331 = scmp.ne.s32.totalorder %s314, %s330
      %p332 = scmp.eq.s32.totalorder %s34, 0
      %p333 = por %p331, %p332
      %s334 = ssub.s32 %s28, %s35
      %p335 = scmp.eq.s32.totalorder %s334, 0
      %s337 = sadd.s32 %s336, 1
      %s338 = scalar_select %p335, %s336, %s337
      %p341 = pneg %p335
      %p342 = scmp.eq.s32.totalorder %s28, 1
      %p343 = por %p341, %p342
      %p344 = scmp.ne.s32.totalorder %s336, %s339
      %p345 = scmp.eq.s32.totalorder %s28, 0
      %p346 = por %p344, %p345
      %p347 = scmp.ne.s32.totalorder %s336, %s339
      %p348 = scmp.eq.s32.totalorder %s33, 1
      %p349 = por %p347, %p348
      %p350 = scmp.ne.s32.totalorder %s339, %s340
      %p351 = scmp.eq.s32.totalorder %s33, 0
      %p352 = por %p350, %p351
      %p353 = scmp.ne.s32.totalorder %s339, %s340
      %p354 = scmp.eq.s32.totalorder %s34, 1
      %p355 = por %p353, %p354
      %p357 = scmp.ne.s32.totalorder %s340, %s356
      %p358 = scmp.eq.s32.totalorder %s34, 0
      %p359 = por %p357, %p358
      %s360 = ssub.s32 %s28, %s35
      %p361 = scmp.eq.s32.totalorder %s360, 0
      %s363 = sadd.s32 %s362, 1
      %s364 = scalar_select %p361, %s362, %s363
      %p367 = pneg %p361
      %p368 = scmp.eq.s32.totalorder %s28, 1
      %p369 = por %p367, %p368
      %p370 = scmp.ne.s32.totalorder %s362, %s365
      %p371 = scmp.eq.s32.totalorder %s28, 0
      %p372 = por %p370, %p371
      %p373 = scmp.ne.s32.totalorder %s362, %s365
      %p374 = scmp.eq.s32.totalorder %s33, 1
      %p375 = por %p373, %p374
      %p376 = scmp.ne.s32.totalorder %s365, %s366
      %p377 = scmp.eq.s32.totalorder %s33, 0
      %p378 = por %p376, %p377
      %p379 = scmp.ne.s32.totalorder %s365, %s366
      %p380 = scmp.eq.s32.totalorder %s34, 1
      %p381 = por %p379, %p380
      %p383 = scmp.ne.s32.totalorder %s366, %s382
      %p384 = scmp.eq.s32.totalorder %s34, 0
      %p385 = por %p383, %p384
      %s386 = ssub.s32 %s28, %s35
      %p387 = scmp.eq.s32.totalorder %s386, 0
      %s389 = sadd.s32 %s388, 1
      %s390 = scalar_select %p387, %s388, %s389
      %p393 = pneg %p387
      %p394 = scmp.eq.s32.totalorder %s28, 1
      %p395 = por %p393, %p394
      %p396 = scmp.ne.s32.totalorder %s388, %s391
      %p397 = scmp.eq.s32.totalorder %s28, 0
      %p398 = por %p396, %p397
      %p399 = scmp.ne.s32.totalorder %s388, %s391
      %p400 = scmp.eq.s32.totalorder %s33, 1
      %p401 = por %p399, %p400
      %p402 = scmp.ne.s32.totalorder %s391, %s392
      %p403 = scmp.eq.s32.totalorder %s33, 0
      %p404 = por %p402, %p403
      %p405 = scmp.ne.s32.totalorder %s391, %s392
      %p406 = scmp.eq.s32.totalorder %s34, 1
      %p407 = por %p405, %p406
      %p409 = scmp.ne.s32.totalorder %s392, %s408
      %p410 = scmp.eq.s32.totalorder %s34, 0
      %p411 = por %p409, %p410
      %s413 = sadd.s32 %s412, 1
      %p416 = scmp.eq.s32.totalorder %s28, 1
      %p417 = scmp.ne.s32.totalorder %s412, %s414
      %p418 = scmp.eq.s32.totalorder %s28, 0
      %p419 = por %p417, %p418
      %p420 = scmp.ne.s32.totalorder %s412, %s414
      %p421 = scmp.eq.s32.totalorder %s33, 1
      %p422 = por %p420, %p421
      %p423 = scmp.ne.s32.totalorder %s414, %s415
      %p424 = scmp.eq.s32.totalorder %s33, 0
      %p425 = por %p423, %p424
      %p426 = scmp.ne.s32.totalorder %s414, %s415
      %p427 = scmp.eq.s32.totalorder %s34, 1
      %p428 = por %p426, %p427
      %p430 = scmp.ne.s32.totalorder %s415, %s429
      %p431 = scmp.eq.s32.totalorder %s34, 0
      %p432 = por %p430, %p431
      %s434 = sadd.s32 %s433, 1
      %p437 = scmp.eq.s32.totalorder %s28, 1
      %p438 = scmp.ne.s32.totalorder %s433, %s435
      %p439 = scmp.eq.s32.totalorder %s28, 0
      %p440 = por %p438, %p439
      %p441 = scmp.ne.s32.totalorder %s433, %s435
      %p442 = scmp.eq.s32.totalorder %s33, 1
      %p443 = por %p441, %p442
      %p444 = scmp.ne.s32.totalorder %s435, %s436
      %p445 = scmp.eq.s32.totalorder %s33, 0
      %p446 = por %p444, %p445
      %p447 = scmp.ne.s32.totalorder %s435, %s436
      %p448 = scmp.eq.s32.totalorder %s34, 1
      %p449 = por %p447, %p448
      %p451 = scmp.ne.s32.totalorder %s436, %s450
      %p452 = scmp.eq.s32.totalorder %s34, 0
      %p453 = por %p451, %p452
      %s455 = sadd.s32 %s454, 1
      %p458 = scmp.eq.s32.totalorder %s28, 1
      %p459 = scmp.ne.s32.totalorder %s454, %s456
      %p460 = scmp.eq.s32.totalorder %s28, 0
      %p461 = por %p459, %p460
      %p462 = scmp.ne.s32.totalorder %s454, %s456
      %p463 = scmp.eq.s32.totalorder %s33, 1
      %p464 = por %p462, %p463
      %p465 = scmp.ne.s32.totalorder %s456, %s457
      %p466 = scmp.eq.s32.totalorder %s33, 0
      %p467 = por %p465, %p466
      %p468 = scmp.ne.s32.totalorder %s456, %s457
      %p469 = scmp.eq.s32.totalorder %s34, 1
      %p470 = por %p468, %p469
      %p472 = scmp.ne.s32.totalorder %s457, %s471
      %p473 = scmp.eq.s32.totalorder %s34, 0
      %p474 = por %p472, %p473
      %p475 = scmp.le.s32.totalorder 1, %s28
      %p476 = scmp.lt.s32.totalorder %s28, 3
      %p477 = pnand %p475, %p476
      %p478 = pneg %p477
      // Predicated region
      $region9: #{tpu_custom_call.1} parent=5 // pred_check
        _
      $region10: #{tpu_custom_call.1} parent=5 // pred_check_branch
        %480 = sbr.rel (%p477) target = $region12
      $region11: #{tpu_custom_call.1} parent=5 // pred_region
        %s481 = ssub.s32 %s28, 1
        // Predicated region
        $region13: #{tpu_custom_call.1} parent=11 // pred_check
          %p482 = pneg %p49
        $region14: #{tpu_custom_call.1} parent=11 // pred_check_branch
          %484 = sbr.rel (%p482) target = $region16
        $region15: #{tpu_custom_call.1} parent=11 // pred_region
          _
        $region16: #{tpu_custom_call.1} parent=11 // pred_fallthru
          _
        // Predicated region
        $region17: #{tpu_custom_call.1} parent=11 // pred_check
          %p485 = pneg %p70
        $region18: #{tpu_custom_call.1} parent=11 // pred_check_branch
          %487 = sbr.rel (%p485) target = $region20
        $region19: #{tpu_custom_call.1} parent=11 // pred_region
          _
        $region20: #{tpu_custom_call.1} parent=11 // pred_fallthru
          _
        // Predicated region
        $region21: #{tpu_custom_call.1} parent=11 // pred_check
          %p488 = pneg %p91
        $region22: #{tpu_custom_call.1} parent=11 // pred_check_branch
          %490 = sbr.rel (%p488) target = $region24
        $region23: #{tpu_custom_call.1} parent=11 // pred_region
          _
        $region24: #{tpu_custom_call.1} parent=11 // pred_fallthru
          _
        // Predicated region
        $region25: #{tpu_custom_call.1} parent=11 // pred_check
          %p491 = pneg %p112
        $region26: #{tpu_custom_call.1} parent=11 // pred_check_branch
          %493 = sbr.rel (%p491) target = $region28
        $region27: #{tpu_custom_call.1} parent=11 // pred_region
          _
        $region28: #{tpu_custom_call.1} parent=11 // pred_fallthru
          _
        // Predicated region
        $region29: #{tpu_custom_call.1} parent=11 // pred_check
          %p494 = pneg %p133
        $region30: #{tpu_custom_call.1} parent=11 // pred_check_branch
          %496 = sbr.rel (%p494) target = $region32
        $region31: #{tpu_custom_call.1} parent=11 // pred_region
          _
        $region32: #{tpu_custom_call.1} parent=11 // pred_fallthru
          _
        // Predicated region
        $region33: #{tpu_custom_call.1} parent=11 // pred_check
          %p497 = pneg %p154
        $region34: #{tpu_custom_call.1} parent=11 // pred_check_branch
          %499 = sbr.rel (%p497) target = $region36
        $region35: #{tpu_custom_call.1} parent=11 // pred_region
          _
        $region36: #{tpu_custom_call.1} parent=11 // pred_fallthru
          _
        // Predicated region
        $region37: #{tpu_custom_call.1} parent=11 // pred_check
          %p500 = pneg %p175
        $region38: #{tpu_custom_call.1} parent=11 // pred_check_branch
          %502 = sbr.rel (%p500) target = $region40
        $region39: #{tpu_custom_call.1} parent=11 // pred_region
          _
        $region40: #{tpu_custom_call.1} parent=11 // pred_fallthru
          _
        // Predicated region
        $region41: #{tpu_custom_call.1} parent=11 // pred_check
          %p503 = pneg %p196
        $region42: #{tpu_custom_call.1} parent=11 // pred_check_branch
          %505 = sbr.rel (%p503) target = $region44
        $region43: #{tpu_custom_call.1} parent=11 // pred_region
          _
        $region44: #{tpu_custom_call.1} parent=11 // pred_fallthru
          _
        // Predicated region
        $region45: #{tpu_custom_call.1} parent=11 // pred_check
          %p506 = pneg %p425
        $region46: #{tpu_custom_call.1} parent=11 // pred_check_branch
          %508 = sbr.rel (%p506) target = $region48
        $region47: #{tpu_custom_call.1} parent=11 // pred_region
          _
        $region48: #{tpu_custom_call.1} parent=11 // pred_fallthru
          _
        // Predicated region
        $region49: #{tpu_custom_call.1} parent=11 // pred_check
          %p509 = pneg %p446
        $region50: #{tpu_custom_call.1} parent=11 // pred_check_branch
          %511 = sbr.rel (%p509) target = $region52
        $region51: #{tpu_custom_call.1} parent=11 // pred_region
          _
        $region52: #{tpu_custom_call.1} parent=11 // pred_fallthru
          _
      $region12: #{tpu_custom_call.1} parent=5 // pred_fallthru
        _
      %p512 = scmp.lt.s32.totalorder %s28, 2
      // Predicated region
      $region53: #{tpu_custom_call.1} parent=5 // pred_check
        %p513 = pneg %p512
      $region54: #{tpu_custom_call.1} parent=5 // pred_check_branch
        %515 = sbr.rel (%p513) target = $region56
      $region55: #{tpu_custom_call.1} parent=5 // pred_region
        // Predicated region
        $region57: #{tpu_custom_call.1} parent=55 // pred_check
          %p516 = pneg %p216
        $region58: #{tpu_custom_call.1} parent=55 // pred_check_branch
          %518 = sbr.rel (%p516) target = $region60
        $region59: #{tpu_custom_call.1} parent=55 // pred_region
          %p519 = scmp.lt.s32.totalorder %s28, 1
          %s520 = scalar_select %p519, %s28, 1
          %s521 = smul.addr %s520, 6
          %s522 = smul.addr %s521, 4
          %s523 = scalar_lea.vmem %s8, %s522
        $region60: #{tpu_custom_call.1} parent=55 // pred_fallthru
          _
        // Predicated region
        $region61: #{tpu_custom_call.1} parent=55 // pred_check
          %p524 = pneg %p242
        $region62: #{tpu_custom_call.1} parent=55 // pred_check_branch
          %526 = sbr.rel (%p524) target = $region64
        $region63: #{tpu_custom_call.1} parent=55 // pred_region
          %p527 = scmp.lt.s32.totalorder %s28, 1
          %s528 = scalar_select %p527, %s28, 1
          %s529 = smul.addr %s528, 8
          %s530 = scalar_lea.vmem %s9, %s529
        $region64: #{tpu_custom_call.1} parent=55 // pred_fallthru
          _
        // Predicated region
        $region65: #{tpu_custom_call.1} parent=55 // pred_check
          %p531 = pneg %p268
        $region66: #{tpu_custom_call.1} parent=55 // pred_check_branch
          %533 = sbr.rel (%p531) target = $region68
        $region67: #{tpu_custom_call.1} parent=55 // pred_region
          %s534 = sand.u32 %s258, 1
          %s535 = scalar_lea.sflag [#allocation5], %s534
          %s536 = sand.u32 %s258, 1
          %s537 = smul.addr %s536, 1024
          %s538 = scalar_lea.vmem [#allocation4], %s537
          %s540 = ssub.s32 16384, 16384
          %541 = vsyncadd %s535, %s540
          %s542 = smul.addr %s28, 256
          %s543 = smul.addr %s542, 64
          %s544 = scalar_lea.hbm %s10, %s543
          %s545 = sshll.u32 %s538, 4
          %s546 = int_to_ptr.vmem [resolvable:$true] %s545
          %551 = dma.hbm_to_vmem [thread:$0]  %s544, 16384, %s546, %s535, 64, 64, 4
        $region68: #{tpu_custom_call.1} parent=55 // pred_fallthru
          _
        // Predicated region
        $region69: #{tpu_custom_call.1} parent=55 // pred_check
          %p552 = pneg %p294
        $region70: #{tpu_custom_call.1} parent=55 // pred_check_branch
          %554 = sbr.rel (%p552) target = $region72
        $region71: #{tpu_custom_call.1} parent=55 // pred_region
          %p555 = scmp.lt.s32.totalorder %s28, 1
          %s556 = scalar_select %p555, %s28, 1
          %s557 = smul.addr %s556, 2
          %s558 = smul.addr %s557, 8
          %s559 = scalar_lea.vmem %s11, %s558
        $region72: #{tpu_custom_call.1} parent=55 // pred_fallthru
          _
        // Predicated region
        $region73: #{tpu_custom_call.1} parent=55 // pred_check
          %p560 = pneg %p320
        $region74: #{tpu_custom_call.1} parent=55 // pred_check_branch
          %562 = sbr.rel (%p560) target = $region76
        $region75: #{tpu_custom_call.1} parent=55 // pred_region
          %p563 = scmp.lt.s32.totalorder %s28, 1
          %s564 = scalar_select %p563, %s28, 1
          %s565 = smul.addr %s564, 4
          %s566 = smul.addr %s565, 4
          %s567 = scalar_lea.vmem %s12, %s566
        $region76: #{tpu_custom_call.1} parent=55 // pred_fallthru
          _
        // Predicated region
        $region77: #{tpu_custom_call.1} parent=55 // pred_check
          %p568 = pneg %p346
        $region78: #{tpu_custom_call.1} parent=55 // pred_check_branch
          %570 = sbr.rel (%p568) target = $region80
        $region79: #{tpu_custom_call.1} parent=55 // pred_region
          %p571 = scmp.lt.s32.totalorder %s28, 1
          %s572 = scalar_select %p571, %s28, 1
          %s573 = smul.addr %s572, 4
          %s574 = smul.addr %s573, 8
          %s575 = scalar_lea.vmem %s13, %s574
        $region80: #{tpu_custom_call.1} parent=55 // pred_fallthru
          _
        // Predicated region
        $region81: #{tpu_custom_call.1} parent=55 // pred_check
          %p576 = pneg %p372
        $region82: #{tpu_custom_call.1} parent=55 // pred_check_branch
          %578 = sbr.rel (%p576) target = $region84
        $region83: #{tpu_custom_call.1} parent=55 // pred_region
          %p579 = scmp.lt.s32.totalorder %s28, 1
          %s580 = scalar_select %p579, %s28, 1
          %s581 = smul.addr %s580, 2
          %s582 = smul.addr %s581, 4
          %s583 = scalar_lea.vmem %s14, %s582
        $region84: #{tpu_custom_call.1} parent=55 // pred_fallthru
          _
        // Predicated region
        $region85: #{tpu_custom_call.1} parent=55 // pred_check
          %p584 = pneg %p398
        $region86: #{tpu_custom_call.1} parent=55 // pred_check_branch
          %586 = sbr.rel (%p584) target = $region88
        $region87: #{tpu_custom_call.1} parent=55 // pred_region
          %p587 = scmp.lt.s32.totalorder %s28, 1
          %s588 = scalar_select %p587, %s28, 1
          %s589 = smul.addr %s588, 2
          %s590 = smul.addr %s589, 8
          %s591 = scalar_lea.vmem %s15, %s590
        $region88: #{tpu_custom_call.1} parent=55 // pred_fallthru
          _
      $region56: #{tpu_custom_call.1} parent=5 // pred_fallthru
        _
      %p592 = scmp.le.s32.totalorder 1, %s28
      %p593 = scmp.lt.s32.totalorder %s28, 3
      %p594 = pnand %p592, %p593
      %p595 = pneg %p594
      // Predicated region
      $region89: #{tpu_custom_call.1} parent=5 // pred_check
        _
      $region90: #{tpu_custom_call.1} parent=5 // pred_check_branch
        %597 = sbr.rel (%p594) target = $region92
      $region91: #{tpu_custom_call.1} parent=5 // pred_region
        %s598 = ssub.s32 %s28, 1
        %s599 = sand.u32 %s261, 1
        %s600 = scalar_lea.sflag [#allocation5], %s599
        %s601 = sand.u32 %s261, 1
        %s602 = smul.addr %s601, 1024
        %s603 = scalar_lea.vmem [#allocation4], %s602
        // Predicated region
        $region93: #{tpu_custom_call.1} parent=91 // pred_check
          %p604 = pneg %p274
        $region94: #{tpu_custom_call.1} parent=91 // pred_check_branch
          %606 = sbr.rel (%p604) target = $region96
        $region95: #{tpu_custom_call.1} parent=91 // pred_region
          %607 = dma.done %s600, 16384
        $region96: #{tpu_custom_call.1} parent=91 // pred_fallthru
          _
        %p608 = pneg %p49
        %p609 = pneg %p46
        %p610 = pneg %p70
        %p611 = pneg %p67
        %p612 = pneg %p91
        %p613 = pneg %p88
        %p614 = pneg %p112
        %p615 = pneg %p109
        %p616 = pneg %p133
        %p617 = pneg %p130
        %p618 = pneg %p154
        %p619 = pneg %p151
        %p620 = pneg %p175
        %p621 = pneg %p172
        %p622 = pneg %p196
        %p623 = pneg %p193
        %p624 = scmp.lt.s32.totalorder %s33, 1
        %s625 = scalar_select %p624, %s33, 1
        %s626 = smul.addr %s625, 6
        %s627 = smul.addr %s626, 4
        %s628 = scalar_lea.vmem %s8, %s627
        %p629 = pneg %p222
        %p630 = pneg %p219
        %p631 = scmp.lt.s32.totalorder %s33, 1
        %s632 = scalar_select %p631, %s33, 1
        %s633 = smul.addr %s632, 8
        %s634 = scalar_lea.vmem %s9, %s633
        %p635 = pneg %p248
        %p636 = pneg %p245
        %s637 = sand.u32 %s261, 1
        %s638 = scalar_lea.sflag [#allocation5], %s637
        %s639 = sand.u32 %s261, 1
        %s640 = smul.addr %s639, 1024
        %s641 = scalar_lea.vmem [#allocation4], %s640
        %p642 = pneg %p274
        %p643 = pneg %p271
        %p644 = scmp.lt.s32.totalorder %s33, 1
        %s645 = scalar_select %p644, %s33, 1
        %s646 = smul.addr %s645, 2
        %s647 = smul.addr %s646, 8
        %s648 = scalar_lea.vmem %s11, %s647
        %p649 = pneg %p300
        %p650 = pneg %p297
        %p651 = scmp.lt.s32.totalorder %s33, 1
        %s652 = scalar_select %p651, %s33, 1
        %s653 = smul.addr %s652, 4
        %s654 = smul.addr %s653, 4
        %s655 = scalar_lea.vmem %s12, %s654
        %p656 = pneg %p326
        %p657 = pneg %p323
        %p658 = scmp.lt.s32.totalorder %s33, 1
        %s659 = scalar_select %p658, %s33, 1
        %s660 = smul.addr %s659, 4
        %s661 = smul.addr %s660, 8
        %s662 = scalar_lea.vmem %s13, %s661
        %p663 = pneg %p352
        %p664 = pneg %p349
        %p665 = scmp.lt.s32.totalorder %s33, 1
        %s666 = scalar_select %p665, %s33, 1
        %s667 = smul.addr %s666, 2
        %s668 = smul.addr %s667, 4
        %s669 = scalar_lea.vmem %s14, %s668
        %p670 = pneg %p378
        %p671 = pneg %p375
        %p672 = scmp.lt.s32.totalorder %s33, 1
        %s673 = scalar_select %p672, %s33, 1
        %s674 = smul.addr %s673, 2
        %s675 = smul.addr %s674, 8
        %s676 = scalar_lea.vmem %s15, %s675
        %p677 = pneg %p404
        %p678 = pneg %p401
        %p679 = pneg %p425
        %p680 = pneg %p422
        %p681 = pneg %p446
        %p682 = pneg %p443
        %p683 = pneg %p467
        %p684 = pneg %p464
        %p685 = scmp.lt.s32.totalorder %s33, 1
        %s686 = scalar_select %p685, %s33, 1
        %s687 = smul.addr %s686, 6
        %s688 = smul.addr %s687, 4
        %s689 = scalar_lea.vmem %s8, %s688
        %p690 = scmp.lt.s32.totalorder %s33, 1
        %s691 = scalar_select %p690, %s33, 1
        %s692 = smul.addr %s691, 8
        %s693 = scalar_lea.vmem %s9, %s692
        %p694 = scmp.lt.s32.totalorder %s33, 1
        %s695 = scalar_select %p694, %s33, 1
        %s696 = smul.addr %s695, 2
        %s697 = smul.addr %s696, 8
        %s698 = scalar_lea.vmem %s11, %s697
        %p699 = scmp.lt.s32.totalorder %s33, 1
        %s700 = scalar_select %p699, %s33, 1
        %s701 = smul.addr %s700, 4
        %s702 = smul.addr %s701, 4
        %s703 = scalar_lea.vmem %s12, %s702
        %p704 = scmp.lt.s32.totalorder %s33, 1
        %s705 = scalar_select %p704, %s33, 1
        %s706 = smul.addr %s705, 4
        %s707 = smul.addr %s706, 8
        %s708 = scalar_lea.vmem %s13, %s707
        %p709 = scmp.lt.s32.totalorder %s33, 1
        %s710 = scalar_select %p709, %s33, 1
        %s711 = smul.addr %s710, 2
        %s712 = smul.addr %s711, 4
        %s713 = scalar_lea.vmem %s14, %s712
        %p714 = scmp.lt.s32.totalorder %s33, 1
        %s715 = scalar_select %p714, %s33, 1
        %s716 = smul.addr %s715, 2
        %s717 = smul.addr %s716, 8
        %s718 = scalar_lea.vmem %s15, %s717
        %p720 = scmp.eq.s32.totalorder %s33, 0
        // Predicated region
        $region97: #{tpu_custom_call.1} parent=91 // pred_check
          %p721 = pneg %p720
        $region98: #{tpu_custom_call.1} parent=91 // pred_check_branch
          %723 = sbr.rel (%p721) target = $region100
        $region99: #{tpu_custom_call.1} parent=91 // pred_region
          %v724 = vld [vmem:[%s1] sm:$0xf]
          %v725 = vld [vmem:[%s4] sm:$0xff]
          %v726 = vld [vmem:[%s4 + $0x8] sm:$0xff]
          %v727 = vld [vmem:[%s4 + $0x10] sm:$0xff]
          %v728 = vld [vmem:[%s4 + $0x18] sm:$0xff]
          %v729 = vld [vmem:[%s4 + $0x20] sm:$0xff]
          %v730 = vld [vmem:[%s4 + $0x28] sm:$0xff]
          %v731 = vld [vmem:[%s4 + $0x30] sm:$0xff]
          %v732 = vld [vmem:[%s4 + $0x38] sm:$0xff]
          %v733 = vld [vmem:[%s4 + $0x40] sm:$0xff]
          %v734 = vld [vmem:[%s4 + $0x48] sm:$0xff]
          %v735 = vld [vmem:[%s4 + $0x50] sm:$0xff]
          %v736 = vld [vmem:[%s4 + $0x58] sm:$0xff]
          %v737 = vld [vmem:[%s4 + $0x60] sm:$0xff]
          %v738 = vld [vmem:[%s4 + $0x68] sm:$0xff]
          %v739 = vld [vmem:[%s4 + $0x70] sm:$0xff]
          %v740 = vld [vmem:[%s4 + $0x78] sm:$0xff]
          %v741 = vld [vmem:[%s4 + $0x80] sm:$0xff]
          %v742 = vld [vmem:[%s4 + $0x88] sm:$0xff]
          %v743 = vld [vmem:[%s4 + $0x90] sm:$0xff]
          %v744 = vld [vmem:[%s4 + $0x98] sm:$0xff]
          %v745 = vld [vmem:[%s4 + $0xa0] sm:$0xff]
          %v746 = vld [vmem:[%s4 + $0xa8] sm:$0xff]
          %v747 = vld [vmem:[%s4 + $0xb0] sm:$0xff]
          %v748 = vld [vmem:[%s4 + $0xb8] sm:$0xff]
          %v749 = vld [vmem:[%s4 + $0xc0] sm:$0xff]
          %v750 = vld [vmem:[%s4 + $0xc8] sm:$0xff]
          %v751 = vld [vmem:[%s4 + $0xd0] sm:$0xff]
          %v752 = vld [vmem:[%s4 + $0xd8] sm:$0xff]
          %v753 = vld [vmem:[%s4 + $0xe0] sm:$0xff]
          %v754 = vld [vmem:[%s4 + $0xe8] sm:$0xff]
          %v755 = vld [vmem:[%s4 + $0xf0] sm:$0xff]
          %v756 = vld [vmem:[%s4 + $0xf8] sm:$0xff]
          %v757 = vld [vmem:[%s5] sm:$0x1]
          %v759 = vlaneseq
          %v760 = vshrl.u32 %v759, 7
          %v761 = vsub.s32 0, %v760
          %v762 = vrot.slane %v757, %v761
          %v766 = vunpack.c.l.s4 1983009808
          %v767 = vunpack.c.0.s8 %v766
          %v768 = vlaneseq
          %v769 = vshrl.u32 %v768, 7
          %v770 = vsub.s32 %v767, %v769
          %v771 = vrot.slane %v724, %v770
          %v772 = vcombine.high %v771, %v771
          %775 = vmatprep.subr.mxu0 0.0
          %776 = vmatpush1.msra.mxu0 %v740
          %777 = vmatprep.subr.mxu0 0.0
          %778 = vmatpush1.msra.mxu0 %v739
          %779 = vmatprep.subr.mxu0 0.0
          %780 = vmatpush1.msra.mxu0 %v738
          %781 = vmatprep.subr.mxu0 0.0
          %782 = vmatpush1.msra.mxu0 %v737
          %783 = vmatprep.subr.mxu0 0.0
          %784 = vmatpush1.msra.mxu0 %v736
          %785 = vmatprep.subr.mxu0 0.0
          %786 = vmatpush1.msra.mxu0 %v735
          %787 = vmatprep.subr.mxu0 0.0
          %788 = vmatpush1.msra.mxu0 %v734
          %789 = vmatprep.subr.mxu0 0.0
          %790 = vmatpush1.msra.mxu0 %v733
          %791 = vmatprep.subr.mxu0 0.0
          %792 = vmatpush1.msra.mxu0 %v732
          %793 = vmatprep.subr.mxu0 0.0
          %794 = vmatpush1.msra.mxu0 %v731
          %795 = vmatprep.subr.mxu0 0.0
          %796 = vmatpush1.msra.mxu0 %v730
          %797 = vmatprep.subr.mxu0 0.0
          %798 = vmatpush1.msra.mxu0 %v729
          %799 = vmatprep.subr.mxu0 0.0
          %800 = vmatpush1.msra.mxu0 %v728
          %801 = vmatprep.subr.mxu0 0.0
          %802 = vmatpush1.msra.mxu0 %v727
          %803 = vmatprep.subr.mxu0 0.0
          %804 = vmatpush1.msra.mxu0 %v726
          %805 = vmatprep.subr.mxu0 0.0
          %806 = vmatpush1.msra.mxu0 %v725
          %807 = vmatprep.subr.mxu0 0.0
          %808 = vmatpush2.msra.mxu0 %v756
          %809 = vmatprep.subr.mxu0 0.0
          %810 = vmatpush2.msra.mxu0 %v755
          %811 = vmatprep.subr.mxu0 0.0
          %812 = vmatpush2.msra.mxu0 %v754
          %813 = vmatprep.subr.mxu0 0.0
          %814 = vmatpush2.msra.mxu0 %v753
          %815 = vmatprep.subr.mxu0 0.0
          %816 = vmatpush2.msra.mxu0 %v752
          %817 = vmatprep.subr.mxu0 0.0
          %818 = vmatpush2.msra.mxu0 %v751
          %819 = vmatprep.subr.mxu0 0.0
          %820 = vmatpush2.msra.mxu0 %v750
          %821 = vmatprep.subr.mxu0 0.0
          %822 = vmatpush2.msra.mxu0 %v749
          %823 = vmatprep.subr.mxu0 0.0
          %824 = vmatpush2.msra.mxu0 %v748
          %825 = vmatprep.subr.mxu0 0.0
          %826 = vmatpush2.msra.mxu0 %v747
          %827 = vmatprep.subr.mxu0 0.0
          %828 = vmatpush2.msra.mxu0 %v746
          %829 = vmatprep.subr.mxu0 0.0
          %830 = vmatpush2.msra.mxu0 %v745
          %831 = vmatprep.subr.mxu0 0.0
          %832 = vmatpush2.msra.mxu0 %v744
          %833 = vmatprep.subr.mxu0 0.0
          %834 = vmatpush2.msra.mxu0 %v743
          %835 = vmatprep.subr.mxu0 0.0
          %836 = vmatpush2.msra.mxu0 %v742
          %837 = vmatprep.subr.mxu0 0.0
          %838 = vmatpush2.msra.mxu0 %v741
          %839 = vmatprep.mubr.f32.mxu0 %v772
          %840 = vmatmul.mubr.f32.gmra.mxu0 %v771
          %v841 = vpop.f32.mrf.mxu0
          %v842 = vadd.f32 %v762, %v841
          %v843 = vpop.f32.mrf.mxu0
          %844 = vdwg.mxu0
          %v845 = vxor.u32 %v842, 2147483648
          %v846 = vmul.f32 %v845, 1.442695
          %v847 = vpow.pop %v846
          %v848 = vadd.f32 %v847, 1.0
          %v849 = vrcp.pop %v848
          %v850 = vmul.f32 1.0, %v849
          %v851 = vmul.f32 %v842, %v850
          %v852 = vld [vmem:[%s6] sm:$0xf]
          %v853 = vld [vmem:[%s7] sm:$0x1]
          %v855 = vlaneseq
          %v856 = vshrl.u32 %v855, 7
          %v857 = vsub.s32 0, %v856
          %v858 = vrot.slane %v853, %v857
          %vm860 = vcmask 31744
          %v862 = vsel %vm860, %v851, 0
          %vm864 = vcmask 1043456
          %v866 = vsel %vm864, %v852, 0
          %868 = vmatprep.subr.mxu0 0.0
          %869 = vmatpush1.msra.mxu0 0.0
          %870 = vmatprep.subr.mxu0 0.0
          %871 = vmatpush1.msra.mxu0 0.0
          %872 = vmatprep.subr.mxu0 0.0
          %873 = vmatpush1.msra.mxu0 0.0
          %874 = vmatprep.subr.mxu0 0.0
          %875 = vmatpush1.msra.mxu0 0.0
          %876 = vmatprep.subr.mxu0 0.0
          %877 = vmatpush1.msra.mxu0 0.0
          %878 = vmatprep.subr.mxu0 0.0
          %879 = vmatpush1.msra.mxu0 0.0
          %880 = vmatprep.subr.mxu0 0.0
          %881 = vmatpush1.msra.mxu0 0.0
          %882 = vmatprep.subr.mxu0 0.0
          %883 = vmatpush1.msra.mxu0 0.0
          %884 = vmatprep.subr.mxu0 0.0
          %885 = vmatpush1.msra.mxu0 0.0
          %886 = vmatprep.subr.mxu0 0.0
          %887 = vmatpush1.msra.mxu0 0.0
          %888 = vmatprep.subr.mxu0 0.0
          %889 = vmatpush1.msra.mxu0 0.0
          %890 = vmatprep.subr.mxu0 0.0
          %891 = vmatpush1.msra.mxu0 0.0
          %892 = vmatprep.subr.mxu0 0.0
          %893 = vmatpush1.msra.mxu0 0.0
          %894 = vmatprep.subr.mxu0 0.0
          %895 = vmatpush1.msra.mxu0 0.0
          %896 = vmatprep.subr.mxu0 0.0
          %897 = vmatpush1.msra.mxu0 0.0
          %898 = vmatprep.subr.mxu0 0.0
          %899 = vmatpush1.msra.mxu0 %v866
          %900 = vmatprep.subr.mxu0 0.0
          %901 = vmatpush2.msra.mxu0 0.0
          %902 = vmatprep.subr.mxu0 0.0
          %903 = vmatpush2.msra.mxu0 0.0
          %904 = vmatprep.subr.mxu0 0.0
          %905 = vmatpush2.msra.mxu0 0.0
          %906 = vmatprep.subr.mxu0 0.0
          %907 = vmatpush2.msra.mxu0 0.0
          %908 = vmatprep.subr.mxu0 0.0
          %909 = vmatpush2.msra.mxu0 0.0
          %910 = vmatprep.subr.mxu0 0.0
          %911 = vmatpush2.msra.mxu0 0.0
          %912 = vmatprep.subr.mxu0 0.0
          %913 = vmatpush2.msra.mxu0 0.0
          %914 = vmatprep.subr.mxu0 0.0
          %915 = vmatpush2.msra.mxu0 0.0
          %916 = vmatprep.subr.mxu0 0.0
          %917 = vmatpush2.msra.mxu0 0.0
          %918 = vmatprep.subr.mxu0 0.0
          %919 = vmatpush2.msra.mxu0 0.0
          %920 = vmatprep.subr.mxu0 0.0
          %921 = vmatpush2.msra.mxu0 0.0
          %922 = vmatprep.subr.mxu0 0.0
          %923 = vmatpush2.msra.mxu0 0.0
          %924 = vmatprep.subr.mxu0 0.0
          %925 = vmatpush2.msra.mxu0 0.0
          %926 = vmatprep.subr.mxu0 0.0
          %927 = vmatpush2.msra.mxu0 0.0
          %928 = vmatprep.subr.mxu0 0.0
          %929 = vmatpush2.msra.mxu0 0.0
          %930 = vmatprep.subr.mxu0 0.0
          %931 = vmatpush2.msra.mxu0 0.0
          %932 = vmatprep.mubr.f32.mxu0 0.0
          %933 = vmatmul.mubr.f32.gmra.mxu0 %v862
          %v934 = vpop.f32.mrf.mxu0
          %v935 = vadd.f32 %v858, %v934
          %v936 = vpop.f32.mrf.mxu0
          %937 = vdwg.mxu0
          %vm938 = vcmask 25600
          %939 = vst.msk [vmem:[#allocation3] sm:$0x3] %vm938, %v935
          %v940 = vld [vmem:[%s2] sm:$0xff]
          %v941 = vld [vmem:[%s2 + $0x8] sm:$0xff]
          %v942 = vld [vmem:[%s0] sm:$0xf]
          %v943 = vld [vmem:[%s0 + $0x4] sm:$0xf]
          %944 = vxpose.xlu0.b32.start [1/16] %v942, 128
          %945 = vxpose.xlu0.b32.cont [2/16] 0.0, 128
          %946 = vxpose.xlu0.b32.cont [3/16] 0.0, 128
          %947 = vxpose.xlu0.b32.cont [4/16] 0.0, 128
          %948 = vxpose.xlu0.b32.cont [5/16] 0.0, 128
          %949 = vxpose.xlu0.b32.cont [6/16] 0.0, 128
          %950 = vxpose.xlu0.b32.cont [7/16] 0.0, 128
          %951 = vxpose.xlu0.b32.cont [8/16] 0.0, 128
          %952 = vxpose.xlu0.b32.cont [9/16] 0.0, 128
          %953 = vxpose.xlu0.b32.cont [10/16] 0.0, 128
          %954 = vxpose.xlu0.b32.cont [11/16] 0.0, 128
          %955 = vxpose.xlu0.b32.cont [12/16] 0.0, 128
          %956 = vxpose.xlu0.b32.cont [13/16] 0.0, 128
          %957 = vxpose.xlu0.b32.cont [14/16] 0.0, 128
          %958 = vxpose.xlu0.b32.cont [15/16] 0.0, 128
          %959 = vxpose.xlu0.b32.end [16/16] 0.0, 128
          %v960 = vpop.trf.xlu0
          %v961 = vpop.trf.xlu0
          %v962 = vpop.trf.xlu0
          %v963 = vpop.trf.xlu0
          %v964 = vpop.trf.xlu0
          %v965 = vpop.trf.xlu0
          %v966 = vpop.trf.xlu0
          %v967 = vpop.trf.xlu0
          %v968 = vpop.trf.xlu0
          %v969 = vpop.trf.xlu0
          %v970 = vpop.trf.xlu0
          %v971 = vpop.trf.xlu0
          %v972 = vpop.trf.xlu0
          %v973 = vpop.trf.xlu0
          %v974 = vpop.trf.xlu0
          %v975 = vpop.trf.xlu0
          %976 = vxpose.xlu0.b32.start [1/16] %v943, 128
          %977 = vxpose.xlu0.b32.cont [2/16] 0.0, 128
          %978 = vxpose.xlu0.b32.cont [3/16] 0.0, 128
          %979 = vxpose.xlu0.b32.cont [4/16] 0.0, 128
          %980 = vxpose.xlu0.b32.cont [5/16] 0.0, 128
          %981 = vxpose.xlu0.b32.cont [6/16] 0.0, 128
          %982 = vxpose.xlu0.b32.cont [7/16] 0.0, 128
          %983 = vxpose.xlu0.b32.cont [8/16] 0.0, 128
          %984 = vxpose.xlu0.b32.cont [9/16] 0.0, 128
          %985 = vxpose.xlu0.b32.cont [10/16] 0.0, 128
          %986 = vxpose.xlu0.b32.cont [11/16] 0.0, 128
          %987 = vxpose.xlu0.b32.cont [12/16] 0.0, 128
          %988 = vxpose.xlu0.b32.cont [13/16] 0.0, 128
          %989 = vxpose.xlu0.b32.cont [14/16] 0.0, 128
          %990 = vxpose.xlu0.b32.cont [15/16] 0.0, 128
          %991 = vxpose.xlu0.b32.end [16/16] 0.0, 128
          %v992 = vpop.trf.xlu0
          %v993 = vpop.trf.xlu0
          %v994 = vpop.trf.xlu0
          %v995 = vpop.trf.xlu0
          %v996 = vpop.trf.xlu0
          %v997 = vpop.trf.xlu0
          %v998 = vpop.trf.xlu0
          %v999 = vpop.trf.xlu0
          %v1000 = vpop.trf.xlu0
          %v1001 = vpop.trf.xlu0
          %v1002 = vpop.trf.xlu0
          %v1003 = vpop.trf.xlu0
          %v1004 = vpop.trf.xlu0
          %v1005 = vpop.trf.xlu0
          %v1006 = vpop.trf.xlu0
          %v1007 = vpop.trf.xlu0
          %v1009 = vsel %vm860, %v960, 0
          %v1012 = vsel %vm860, %v961, 0
          %v1015 = vsel %vm860, %v962, 0
          %v1018 = vsel %vm860, %v963, 0
          %v1021 = vsel %vm860, %v964, 0
          %v1024 = vsel %vm860, %v965, 0
          %v1027 = vsel %vm860, %v966, 0
          %v1030 = vsel %vm860, %v967, 0
          %v1033 = vsel %vm860, %v968, 0
          %v1036 = vsel %vm860, %v969, 0
          %v1039 = vsel %vm860, %v970, 0
          %v1042 = vsel %vm860, %v971, 0
          %v1045 = vsel %vm860, %v972, 0
          %v1048 = vsel %vm860, %v973, 0
          %v1051 = vsel %vm860, %v974, 0
          %v1054 = vsel %vm860, %v975, 0
          %v1057 = vsel %vm860, %v992, 0
          %v1060 = vsel %vm860, %v993, 0
          %v1063 = vsel %vm860, %v994, 0
          %v1066 = vsel %vm860, %v995, 0
          %v1069 = vsel %vm860, %v996, 0
          %v1072 = vsel %vm860, %v997, 0
          %v1075 = vsel %vm860, %v998, 0
          %v1078 = vsel %vm860, %v999, 0
          %v1081 = vsel %vm860, %v1000, 0
          %v1084 = vsel %vm860, %v1001, 0
          %v1087 = vsel %vm860, %v1002, 0
          %v1090 = vsel %vm860, %v1003, 0
          %v1093 = vsel %vm860, %v1004, 0
          %v1096 = vsel %vm860, %v1005, 0
          %v1099 = vsel %vm860, %v1006, 0
          %v1102 = vsel %vm860, %v1007, 0
          %v1105 = vsel %vm860, %v940, 0
          %v1108 = vsel %vm860, %v941, 0
          %1110 = vmatprep.subr.mxu0 0.0
          %1111 = vmatpush1.xpose.msra.mxu0 0.0
          %1112 = vmatprep.subr.mxu0 0.0
          %1113 = vmatpush1.xpose.msra.mxu0 0.0
          %1114 = vmatprep.subr.mxu0 0.0
          %1115 = vmatpush1.xpose.msra.mxu0 0.0
          %1116 = vmatprep.subr.mxu0 0.0
          %1117 = vmatpush1.xpose.msra.mxu0 0.0
          %1118 = vmatprep.subr.mxu0 0.0
          %1119 = vmatpush1.xpose.msra.mxu0 0.0
          %1120 = vmatprep.subr.mxu0 0.0
          %1121 = vmatpush1.xpose.msra.mxu0 0.0
          %1122 = vmatprep.subr.mxu0 0.0
          %1123 = vmatpush1.xpose.msra.mxu0 0.0
          %1124 = vmatprep.subr.mxu0 0.0
          %1125 = vmatpush1.xpose.msra.mxu0 0.0
          %1126 = vmatprep.subr.mxu0 0.0
          %1127 = vmatpush1.xpose.msra.mxu0 0.0
          %1128 = vmatprep.subr.mxu0 0.0
          %1129 = vmatpush1.xpose.msra.mxu0 0.0
          %1130 = vmatprep.subr.mxu0 0.0
          %1131 = vmatpush1.xpose.msra.mxu0 0.0
          %1132 = vmatprep.subr.mxu0 0.0
          %1133 = vmatpush1.xpose.msra.mxu0 0.0
          %1134 = vmatprep.subr.mxu0 0.0
          %1135 = vmatpush1.xpose.msra.mxu0 0.0
          %1136 = vmatprep.subr.mxu0 0.0
          %1137 = vmatpush1.xpose.msra.mxu0 0.0
          %1138 = vmatprep.subr.mxu0 0.0
          %1139 = vmatpush1.xpose.msra.mxu0 %v1108
          %1140 = vmatprep.subr.mxu0 0.0
          %1141 = vmatpush1.xpose.msra.mxu0 %v1105
          %1142 = vmatprep.subr.mxu0 0.0
          %1143 = vmatpush2.xpose.msra.mxu0 0.0
          %1144 = vmatprep.subr.mxu0 0.0
          %1145 = vmatpush2.xpose.msra.mxu0 0.0
          %1146 = vmatprep.subr.mxu0 0.0
          %1147 = vmatpush2.xpose.msra.mxu0 0.0
          %1148 = vmatprep.subr.mxu0 0.0
          %1149 = vmatpush2.xpose.msra.mxu0 0.0
          %1150 = vmatprep.subr.mxu0 0.0
          %1151 = vmatpush2.xpose.msra.mxu0 0.0
          %1152 = vmatprep.subr.mxu0 0.0
          %1153 = vmatpush2.xpose.msra.mxu0 0.0
          %1154 = vmatprep.subr.mxu0 0.0
          %1155 = vmatpush2.xpose.msra.mxu0 0.0
          %1156 = vmatprep.subr.mxu0 0.0
          %1157 = vmatpush2.xpose.msra.mxu0 0.0
          %1158 = vmatprep.subr.mxu0 0.0
          %1159 = vmatpush2.xpose.msra.mxu0 0.0
          %1160 = vmatprep.subr.mxu0 0.0
          %1161 = vmatpush2.xpose.msra.mxu0 0.0
          %1162 = vmatprep.subr.mxu0 0.0
          %1163 = vmatpush2.xpose.msra.mxu0 0.0
          %1164 = vmatprep.subr.mxu0 0.0
          %1165 = vmatpush2.xpose.msra.mxu0 0.0
          %1166 = vmatprep.subr.mxu0 0.0
          %1167 = vmatpush2.xpose.msra.mxu0 0.0
          %1168 = vmatprep.subr.mxu0 0.0
          %1169 = vmatpush2.xpose.msra.mxu0 0.0
          %1170 = vmatprep.subr.mxu0 0.0
          %1171 = vmatpush2.xpose.msra.mxu0 0.0
          %1172 = vmatprep.subr.mxu0 0.0
          %1173 = vmatpush2.xpose.msra.mxu0 0.0
          %1174 = vmatprep.mubr.f32.mxu0 0.0
          %1175 = vmatmul.mubr.f32.gmra.mxu0 %v1009
          %v1176 = vpop.f32.mrf.mxu0
          %v1177 = vadd.f32 0.0, %v1176
          %v1178 = vpop.f32.mrf.mxu0
          %1179 = vmatprep.mubr.f32.mxu0 0.0
          %1180 = vmatmul.mubr.f32.gmra.mxu0 %v1012
          %v1181 = vpop.f32.mrf.mxu0
          %v1182 = vadd.f32 0.0, %v1181
          %v1183 = vpop.f32.mrf.mxu0
          %1184 = vmatprep.mubr.f32.mxu0 0.0
          %1185 = vmatmul.mubr.f32.gmra.mxu0 %v1015
          %v1186 = vpop.f32.mrf.mxu0
          %v1187 = vadd.f32 0.0, %v1186
          %v1188 = vpop.f32.mrf.mxu0
          %1189 = vmatprep.mubr.f32.mxu0 0.0
          %1190 = vmatmul.mubr.f32.gmra.mxu0 %v1018
          %v1191 = vpop.f32.mrf.mxu0
          %v1192 = vadd.f32 0.0, %v1191
          %v1193 = vpop.f32.mrf.mxu0
          %1194 = vmatprep.mubr.f32.mxu0 0.0
          %1195 = vmatmul.mubr.f32.gmra.mxu0 %v1021
          %v1196 = vpop.f32.mrf.mxu0
          %v1197 = vadd.f32 0.0, %v1196
          %v1198 = vpop.f32.mrf.mxu0
          %1199 = vmatprep.mubr.f32.mxu0 0.0
          %1200 = vmatmul.mubr.f32.gmra.mxu0 %v1024
          %v1201 = vpop.f32.mrf.mxu0
          %v1202 = vadd.f32 0.0, %v1201
          %v1203 = vpop.f32.mrf.mxu0
          %1204 = vmatprep.mubr.f32.mxu0 0.0
          %1205 = vmatmul.mubr.f32.gmra.mxu0 %v1027
          %v1206 = vpop.f32.mrf.mxu0
          %v1207 = vadd.f32 0.0, %v1206
          %v1208 = vpop.f32.mrf.mxu0
          %1209 = vmatprep.mubr.f32.mxu0 0.0
          %1210 = vmatmul.mubr.f32.gmra.mxu0 %v1030
          %v1211 = vpop.f32.mrf.mxu0
          %v1212 = vadd.f32 0.0, %v1211
          %v1213 = vpop.f32.mrf.mxu0
          %1214 = vmatprep.mubr.f32.mxu0 0.0
          %1215 = vmatmul.mubr.f32.gmra.mxu0 %v1033
          %v1216 = vpop.f32.mrf.mxu0
          %v1217 = vadd.f32 0.0, %v1216
          %v1218 = vpop.f32.mrf.mxu0
          %1219 = vmatprep.mubr.f32.mxu0 0.0
          %1220 = vmatmul.mubr.f32.gmra.mxu0 %v1036
          %v1221 = vpop.f32.mrf.mxu0
          %v1222 = vadd.f32 0.0, %v1221
          %v1223 = vpop.f32.mrf.mxu0
          %1224 = vmatprep.mubr.f32.mxu0 0.0
          %1225 = vmatmul.mubr.f32.gmra.mxu0 %v1039
          %v1226 = vpop.f32.mrf.mxu0
          %v1227 = vadd.f32 0.0, %v1226
          %v1228 = vpop.f32.mrf.mxu0
          %1229 = vmatprep.mubr.f32.mxu0 0.0
          %1230 = vmatmul.mubr.f32.gmra.mxu0 %v1042
          %v1231 = vpop.f32.mrf.mxu0
          %v1232 = vadd.f32 0.0, %v1231
          %v1233 = vpop.f32.mrf.mxu0
          %1234 = vmatprep.mubr.f32.mxu0 0.0
          %1235 = vmatmul.mubr.f32.gmra.mxu0 %v1045
          %v1236 = vpop.f32.mrf.mxu0
          %v1237 = vadd.f32 0.0, %v1236
          %v1238 = vpop.f32.mrf.mxu0
          %1239 = vmatprep.mubr.f32.mxu0 0.0
          %1240 = vmatmul.mubr.f32.gmra.mxu0 %v1048
          %v1241 = vpop.f32.mrf.mxu0
          %v1242 = vadd.f32 0.0, %v1241
          %v1243 = vpop.f32.mrf.mxu0
          %1244 = vmatprep.mubr.f32.mxu0 0.0
          %1245 = vmatmul.mubr.f32.gmra.mxu0 %v1051
          %v1246 = vpop.f32.mrf.mxu0
          %v1247 = vadd.f32 0.0, %v1246
          %v1248 = vpop.f32.mrf.mxu0
          %1249 = vmatprep.mubr.f32.mxu0 0.0
          %1250 = vmatmul.mubr.f32.gmra.mxu0 %v1054
          %v1251 = vpop.f32.mrf.mxu0
          %v1252 = vadd.f32 0.0, %v1251
          %v1253 = vpop.f32.mrf.mxu0
          %1254 = vmatprep.mubr.f32.mxu0 0.0
          %1255 = vmatmul.mubr.f32.gmra.mxu0 %v1057
          %v1256 = vpop.f32.mrf.mxu0
          %v1257 = vadd.f32 0.0, %v1256
          %v1258 = vpop.f32.mrf.mxu0
          %1259 = vmatprep.mubr.f32.mxu0 0.0
          %1260 = vmatmul.mubr.f32.gmra.mxu0 %v1060
          %v1261 = vpop.f32.mrf.mxu0
          %v1262 = vadd.f32 0.0, %v1261
          %v1263 = vpop.f32.mrf.mxu0
          %1264 = vmatprep.mubr.f32.mxu0 0.0
          %1265 = vmatmul.mubr.f32.gmra.mxu0 %v1063
          %v1266 = vpop.f32.mrf.mxu0
          %v1267 = vadd.f32 0.0, %v1266
          %v1268 = vpop.f32.mrf.mxu0
          %1269 = vmatprep.mubr.f32.mxu0 0.0
          %1270 = vmatmul.mubr.f32.gmra.mxu0 %v1066
          %v1271 = vpop.f32.mrf.mxu0
          %v1272 = vadd.f32 0.0, %v1271
          %v1273 = vpop.f32.mrf.mxu0
          %1274 = vmatprep.mubr.f32.mxu0 0.0
          %1275 = vmatmul.mubr.f32.gmra.mxu0 %v1069
          %v1276 = vpop.f32.mrf.mxu0
          %v1277 = vadd.f32 0.0, %v1276
          %v1278 = vpop.f32.mrf.mxu0
          %1279 = vmatprep.mubr.f32.mxu0 0.0
          %1280 = vmatmul.mubr.f32.gmra.mxu0 %v1072
          %v1281 = vpop.f32.mrf.mxu0
          %v1282 = vadd.f32 0.0, %v1281
          %v1283 = vpop.f32.mrf.mxu0
          %1284 = vmatprep.mubr.f32.mxu0 0.0
          %1285 = vmatmul.mubr.f32.gmra.mxu0 %v1075
          %v1286 = vpop.f32.mrf.mxu0
          %v1287 = vadd.f32 0.0, %v1286
          %v1288 = vpop.f32.mrf.mxu0
          %1289 = vmatprep.mubr.f32.mxu0 0.0
          %1290 = vmatmul.mubr.f32.gmra.mxu0 %v1078
          %v1291 = vpop.f32.mrf.mxu0
          %v1292 = vadd.f32 0.0, %v1291
          %v1293 = vpop.f32.mrf.mxu0
          %1294 = vmatprep.mubr.f32.mxu0 0.0
          %1295 = vmatmul.mubr.f32.gmra.mxu0 %v1081
          %v1296 = vpop.f32.mrf.mxu0
          %v1297 = vadd.f32 0.0, %v1296
          %v1298 = vpop.f32.mrf.mxu0
          %1299 = vmatprep.mubr.f32.mxu0 0.0
          %1300 = vmatmul.mubr.f32.gmra.mxu0 %v1084
          %v1301 = vpop.f32.mrf.mxu0
          %v1302 = vadd.f32 0.0, %v1301
          %v1303 = vpop.f32.mrf.mxu0
          %1304 = vmatprep.mubr.f32.mxu0 0.0
          %1305 = vmatmul.mubr.f32.gmra.mxu0 %v1087
          %v1306 = vpop.f32.mrf.mxu0
          %v1307 = vadd.f32 0.0, %v1306
          %v1308 = vpop.f32.mrf.mxu0
          %1309 = vmatprep.mubr.f32.mxu0 0.0
          %1310 = vmatmul.mubr.f32.gmra.mxu0 %v1090
          %v1311 = vpop.f32.mrf.mxu0
          %v1312 = vadd.f32 0.0, %v1311
          %v1313 = vpop.f32.mrf.mxu0
          %1314 = vmatprep.mubr.f32.mxu0 0.0
          %1315 = vmatmul.mubr.f32.gmra.mxu0 %v1093
          %v1316 = vpop.f32.mrf.mxu0
          %v1317 = vadd.f32 0.0, %v1316
          %v1318 = vpop.f32.mrf.mxu0
          %1319 = vmatprep.mubr.f32.mxu0 0.0
          %1320 = vmatmul.mubr.f32.gmra.mxu0 %v1096
          %v1321 = vpop.f32.mrf.mxu0
          %v1322 = vadd.f32 0.0, %v1321
          %v1323 = vpop.f32.mrf.mxu0
          %1324 = vmatprep.mubr.f32.mxu0 0.0
          %1325 = vmatmul.mubr.f32.gmra.mxu0 %v1099
          %v1326 = vpop.f32.mrf.mxu0
          %v1327 = vadd.f32 0.0, %v1326
          %v1328 = vpop.f32.mrf.mxu0
          %1329 = vmatprep.mubr.f32.mxu0 0.0
          %1330 = vmatmul.mubr.f32.gmra.mxu0 %v1102
          %v1331 = vpop.f32.mrf.mxu0
          %v1332 = vadd.f32 0.0, %v1331
          %v1333 = vpop.f32.mrf.mxu0
          %1334 = vdwg.mxu0
          %1335 = vxpose.xlu0.b32.start [1/16] %v1177, 128
          %1336 = vxpose.xlu0.b32.cont [2/16] %v1182, 128
          %1337 = vxpose.xlu0.b32.cont [3/16] %v1187, 128
          %1338 = vxpose.xlu0.b32.cont [4/16] %v1192, 128
          %1339 = vxpose.xlu0.b32.cont [5/16] %v1197, 128
          %1340 = vxpose.xlu0.b32.cont [6/16] %v1202, 128
          %1341 = vxpose.xlu0.b32.cont [7/16] %v1207, 128
          %1342 = vxpose.xlu0.b32.cont [8/16] %v1212, 128
          %1343 = vxpose.xlu0.b32.cont [9/16] %v1217, 128
          %1344 = vxpose.xlu0.b32.cont [10/16] %v1222, 128
          %1345 = vxpose.xlu0.b32.cont [11/16] %v1227, 128
          %1346 = vxpose.xlu0.b32.cont [12/16] %v1232, 128
          %1347 = vxpose.xlu0.b32.cont [13/16] %v1237, 128
          %1348 = vxpose.xlu0.b32.cont [14/16] %v1242, 128
          %1349 = vxpose.xlu0.b32.cont [15/16] %v1247, 128
          %1350 = vxpose.xlu0.b32.end [16/16] %v1252, 128
          %v1351 = vpop.trf.xlu0
          %v1352 = vpop.trf.xlu0
          %v1353 = vpop.trf.xlu0
          %v1354 = vpop.trf.xlu0
          %v1355 = vpop.trf.xlu0
          %v1356 = vpop.trf.xlu0
          %v1357 = vpop.trf.xlu0
          %v1358 = vpop.trf.xlu0
          %v1359 = vpop.trf.xlu0
          %v1360 = vpop.trf.xlu0
          %v1361 = vpop.trf.xlu0
          %v1362 = vpop.trf.xlu0
          %v1363 = vpop.trf.xlu0
          %v1364 = vpop.trf.xlu0
          %v1365 = vpop.trf.xlu0
          %v1366 = vpop.trf.xlu0
          %1367 = vxpose.xlu0.b32.start [1/16] %v1257, 128
          %1368 = vxpose.xlu0.b32.cont [2/16] %v1262, 128
          %1369 = vxpose.xlu0.b32.cont [3/16] %v1267, 128
          %1370 = vxpose.xlu0.b32.cont [4/16] %v1272, 128
          %1371 = vxpose.xlu0.b32.cont [5/16] %v1277, 128
          %1372 = vxpose.xlu0.b32.cont [6/16] %v1282, 128
          %1373 = vxpose.xlu0.b32.cont [7/16] %v1287, 128
          %1374 = vxpose.xlu0.b32.cont [8/16] %v1292, 128
          %1375 = vxpose.xlu0.b32.cont [9/16] %v1297, 128
          %1376 = vxpose.xlu0.b32.cont [10/16] %v1302, 128
          %1377 = vxpose.xlu0.b32.cont [11/16] %v1307, 128
          %1378 = vxpose.xlu0.b32.cont [12/16] %v1312, 128
          %1379 = vxpose.xlu0.b32.cont [13/16] %v1317, 128
          %1380 = vxpose.xlu0.b32.cont [14/16] %v1322, 128
          %1381 = vxpose.xlu0.b32.cont [15/16] %v1327, 128
          %1382 = vxpose.xlu0.b32.end [16/16] %v1332, 128
          %v1383 = vpop.trf.xlu0
          %v1384 = vpop.trf.xlu0
          %v1385 = vpop.trf.xlu0
          %v1386 = vpop.trf.xlu0
          %v1387 = vpop.trf.xlu0
          %v1388 = vpop.trf.xlu0
          %v1389 = vpop.trf.xlu0
          %v1390 = vpop.trf.xlu0
          %v1391 = vpop.trf.xlu0
          %v1392 = vpop.trf.xlu0
          %v1393 = vpop.trf.xlu0
          %v1394 = vpop.trf.xlu0
          %v1395 = vpop.trf.xlu0
          %v1396 = vpop.trf.xlu0
          %v1397 = vpop.trf.xlu0
          %v1398 = vpop.trf.xlu0
          %v1399 = vld [vmem:[%s3] sm:$0xff]
          %v1400 = vld [vmem:[%s3 + $0x8] sm:$0xff]
          %1402 = vset.pattern.permute.xlu0 0
          %1403 = vperm.xlu0 %1402, %v1399
          %v1404 = vpop.permute.xlu0 %1403
          %1407 = vset.pattern.permute.xlu0 0
          %1408 = vperm.xlu0 %1407, %v1400
          %v1409 = vpop.permute.xlu0 %1408
          %v1411 = vadd.f32 %v1351, %v1404
          %v1412 = vadd.f32 %v1352, %v1409
          %v1413 = vadd.f32 %v1383, %v1404
          %v1414 = vadd.f32 %v1384, %v1409
          %1415 = vst [vmem:[#allocation2] sm:$0xff] %v1411
          %1416 = vst [vmem:[#allocation2 + $0x8] sm:$0xff] %v1412
          %1417 = vst [vmem:[#allocation2 + $0x10] sm:$0xff] %v1413
          %1418 = vst [vmem:[#allocation2 + $0x18] sm:$0xff] %v1414
        $region100: #{tpu_custom_call.1} parent=91 // pred_fallthru
          _
        %v1419 = vld [vmem:[#allocation2] sm:$0xff]
        %v1420 = vld [vmem:[#allocation2 + $0x8] sm:$0xff]
        %v1421 = vld [vmem:[#allocation2 + $0x10] sm:$0xff]
        %v1422 = vld [vmem:[#allocation2 + $0x18] sm:$0xff]
        %v1423 = vld [vmem:[#allocation3] sm:$0x3]
        %v1424 = vmul.f32 %v1423, 0.5
        %v1425 = vmul.f32 %v1423, 0.044715
        %v1426 = vmul.f32 %v1425, %v1423
        %v1427 = vmul.f32 %v1426, %v1423
        %v1428 = vadd.f32 %v1423, %v1427
        %v1429 = vmul.f32 %v1428, 0.7978846
        %v1430 = vtanh.pop %v1429
        %v1431 = vadd.f32 %v1430, 1.0
        %v1432 = vmul.f32 %v1424, %v1431
        %v1433 = vld [vmem:[%s689] sm:$0xf]
        %v1434 = vld [vmem:[%s689 + $0x4] sm:$0xf]
        %v1435 = vld [vmem:[%s689 + $0x8] sm:$0xf]
        %v1436 = vld [vmem:[%s689 + $0xc] sm:$0xf]
        %v1437 = vld [vmem:[%s693] sm:$0x3f]
        %v1438 = vcombine.low %v1433, %v1435
        %v1440 = vunpack.c.l.s4 1983009808
        %v1441 = vunpack.c.0.s8 %v1440
        %v1442 = vlaneseq
        %v1443 = vshrl.u32 %v1442, 7
        %v1444 = vsub.s32 %v1441, %v1443
        %v1445 = vrot.slane %v1438, %v1444
        %v1446 = vcombine.low %v1434, %v1436
        %v1448 = vunpack.c.l.s4 1983009808
        %v1449 = vunpack.c.0.s8 %v1448
        %v1450 = vlaneseq
        %v1451 = vshrl.u32 %v1450, 7
        %v1452 = vsub.s32 %v1449, %v1451
        %v1453 = vrot.slane %v1446, %v1452
        %v1454 = vld [vmem:[%s689 + $0x10] sm:$0xf]
        %v1456 = vunpack.c.l.s4 1983009808
        %v1457 = vunpack.c.0.s8 %v1456
        %v1458 = vlaneseq
        %v1459 = vshrl.u32 %v1458, 7
        %v1460 = vsub.s32 %v1457, %v1459
        %v1461 = vrot.slane %v1454, %v1460
        %v1462 = vld [vmem:[%s689 + $0x14] sm:$0xf]
        %v1464 = vunpack.c.l.s4 1983009808
        %v1465 = vunpack.c.0.s8 %v1464
        %v1466 = vlaneseq
        %v1467 = vshrl.u32 %v1466, 7
        %v1468 = vsub.s32 %v1465, %v1467
        %v1469 = vrot.slane %v1462, %v1468
        %v1470 = vcombine.low %v1445, %v1453
        %v1471 = vcombine.high %v1445, %v1453
        %v1473 = vunpack.c.l.s4 1934713408
        %v1474 = vunpack.c.0.s8 %v1473
        %v1475 = vlaneseq
        %v1476 = vshrl.u32 %v1475, 7
        %v1477 = vsub.s32 %v1474, %v1476
        %v1478 = vrot.slane %v1470, %v1477
        %v1480 = vunpack.c.l.s4 1934713408
        %v1481 = vunpack.c.0.s8 %v1480
        %v1482 = vlaneseq
        %v1483 = vshrl.u32 %v1482, 7
        %v1484 = vsub.s32 %v1481, %v1483
        %v1485 = vrot.slane %v1471, %v1484
        %v1486 = vcombine.low %v1461, %v1469
        %v1487 = vcombine.high %v1461, %v1469
        %v1489 = vunpack.c.l.s4 1934713408
        %v1490 = vunpack.c.0.s8 %v1489
        %v1491 = vlaneseq
        %v1492 = vshrl.u32 %v1491, 7
        %v1493 = vsub.s32 %v1490, %v1492
        %v1494 = vrot.slane %v1486, %v1493
        %v1496 = vunpack.c.l.s4 1934713408
        %v1497 = vunpack.c.0.s8 %v1496
        %v1498 = vlaneseq
        %v1499 = vshrl.u32 %v1498, 7
        %v1500 = vsub.s32 %v1497, %v1499
        %v1501 = vrot.slane %v1487, %v1500
        %v1502 = vcombine.low %v1478, %v1494
        %v1503 = vcombine.high %v1478, %v1494
        %v1504 = vcombine.low %v1485, %v1501
        %v1505 = vcombine.high %v1485, %v1501
        %v1506 = vcombine.low %v1502, %v1504
        %v1507 = vcombine.high %v1502, %v1504
        %v1509 = vunpack.c.l.s4 1983009808
        %v1510 = vunpack.c.0.s8 %v1509
        %v1511 = vlaneseq
        %v1512 = vshrl.u32 %v1511, 7
        %v1513 = vsub.s32 %v1510, %v1512
        %v1514 = vrot.slane %v1506, %v1513
        %v1516 = vunpack.c.l.s4 1983009808
        %v1517 = vunpack.c.0.s8 %v1516
        %v1518 = vlaneseq
        %v1519 = vshrl.u32 %v1518, 7
        %v1520 = vsub.s32 %v1517, %v1519
        %v1521 = vrot.slane %v1507, %v1520
        %v1522 = vcombine.low %v1503, %v1505
        %v1523 = vcombine.high %v1503, %v1505
        %v1525 = vunpack.c.l.s4 1983009808
        %v1526 = vunpack.c.0.s8 %v1525
        %v1527 = vlaneseq
        %v1528 = vshrl.u32 %v1527, 7
        %v1529 = vsub.s32 %v1526, %v1528
        %v1530 = vrot.slane %v1522, %v1529
        %v1532 = vunpack.c.l.s4 1983009808
        %v1533 = vunpack.c.0.s8 %v1532
        %v1534 = vlaneseq
        %v1535 = vshrl.u32 %v1534, 7
        %v1536 = vsub.s32 %v1533, %v1535
        %v1537 = vrot.slane %v1523, %v1536
        %v1538 = vcombine.low %v1514, %v1530
        %v1539 = vcombine.high %v1514, %v1530
        %v1541 = vunpack.c.l.s4 1934713408
        %v1542 = vunpack.c.0.s8 %v1541
        %v1543 = vlaneseq
        %v1544 = vshrl.u32 %v1543, 7
        %v1545 = vsub.s32 %v1542, %v1544
        %v1546 = vrot.slane %v1538, %v1545
        %v1548 = vunpack.c.l.s4 1934713408
        %v1549 = vunpack.c.0.s8 %v1548
        %v1550 = vlaneseq
        %v1551 = vshrl.u32 %v1550, 7
        %v1552 = vsub.s32 %v1549, %v1551
        %v1553 = vrot.slane %v1539, %v1552
        %v1554 = vcombine.low %v1521, %v1537
        %v1556 = vunpack.c.l.s4 1934713408
        %v1557 = vunpack.c.0.s8 %v1556
        %v1558 = vlaneseq
        %v1559 = vshrl.u32 %v1558, 7
        %v1560 = vsub.s32 %v1557, %v1559
        %v1561 = vrot.slane %v1554, %v1560
        %v1562 = vcombine.high %v1546, 0.0
        %v1563 = vcombine.high %v1553, 0.0
        %v1564 = vcombine.high %v1561, 0.0
        %1566 = vrot.lane.b32.xlu0 %v1562, 16
        %v1567 = vpop.permute.xlu0 %1566
        %1570 = vrot.lane.b32.xlu0 %v1553, 32
        %v1571 = vpop.permute.xlu0 %1570
        %1574 = vrot.lane.b32.xlu0 %v1563, 48
        %v1575 = vpop.permute.xlu0 %1574
        %1578 = vrot.lane.b32.xlu0 %v1561, 64
        %v1579 = vpop.permute.xlu0 %1578
        %1582 = vrot.lane.b32.xlu0 %v1564, 80
        %v1583 = vpop.permute.xlu0 %1582
        %vm1585 = vcmask 130048
        %v1586 = vsel %vm1585, %v1546, %v1567
        %vm1587 = vcmask 261120
        %v1588 = vsel %vm1587, %v1586, %v1571
        %vm1589 = vcmask 392192
        %v1590 = vsel %vm1589, %v1588, %v1575
        %vm1591 = vcmask 523264
        %v1592 = vsel %vm1591, %v1590, %v1579
        %vm1593 = vcmask 654336
        %v1594 = vsel %vm1593, %v1592, %v1583
        %v1596 = vunpack.c.l.s4 1983009808
        %v1597 = vunpack.c.0.s8 %v1596
        %v1598 = vlaneseq
        %v1599 = vshrl.u32 %v1598, 7
        %v1600 = vsub.s32 %v1597, %v1599
        %v1601 = vrot.slane %v1437, %v1600
        %v1602 = vcombine.high %v1437, 0.0
        %v1603 = vcombine.low %v1601, %v1601
        %v1604 = vcombine.high %v1601, %v1601
        %v1606 = vunpack.c.l.s4 1934713408
        %v1607 = vunpack.c.0.s8 %v1606
        %v1608 = vlaneseq
        %v1609 = vshrl.u32 %v1608, 7
        %v1610 = vsub.s32 %v1607, %v1609
        %v1611 = vrot.slane %v1603, %v1610
        %v1613 = vunpack.c.l.s4 1934713408
        %v1614 = vunpack.c.0.s8 %v1613
        %v1615 = vlaneseq
        %v1616 = vshrl.u32 %v1615, 7
        %v1617 = vsub.s32 %v1614, %v1616
        %v1618 = vrot.slane %v1604, %v1617
        %v1619 = vcombine.low %v1602, %v1602
        %v1621 = vunpack.c.l.s4 1934713408
        %v1622 = vunpack.c.0.s8 %v1621
        %v1623 = vlaneseq
        %v1624 = vshrl.u32 %v1623, 7
        %v1625 = vsub.s32 %v1622, %v1624
        %v1626 = vrot.slane %v1619, %v1625
        %v1627 = vcombine.high %v1611, 0.0
        %v1628 = vcombine.high %v1618, 0.0
        %v1629 = vcombine.high %v1626, 0.0
        %1631 = vrot.lane.b32.xlu0 %v1627, 16
        %v1632 = vpop.permute.xlu0 %1631
        %1635 = vrot.lane.b32.xlu0 %v1618, 32
        %v1636 = vpop.permute.xlu0 %1635
        %1639 = vrot.lane.b32.xlu0 %v1628, 48
        %v1640 = vpop.permute.xlu0 %1639
        %1643 = vrot.lane.b32.xlu0 %v1626, 64
        %v1644 = vpop.permute.xlu0 %1643
        %1647 = vrot.lane.b32.xlu0 %v1629, 80
        %v1648 = vpop.permute.xlu0 %1647
        %v1650 = vsel %vm1585, %v1611, %v1632
        %v1651 = vsel %vm1587, %v1650, %v1636
        %v1652 = vsel %vm1589, %v1651, %v1640
        %v1653 = vsel %vm1591, %v1652, %v1644
        %v1654 = vsel %vm1593, %v1653, %v1648
        %vm1655 = vcmask 31744
        %v1657 = vsel %vm1655, %v1432, 0
        %vm1659 = vcmask 1043456
        %v1661 = vsel %vm1659, %v1594, 0
        %1663 = vmatprep.subr.mxu0 0.0
        %1664 = vmatpush1.msra.mxu0 0.0
        %1665 = vmatprep.subr.mxu0 0.0
        %1666 = vmatpush1.msra.mxu0 0.0
        %1667 = vmatprep.subr.mxu0 0.0
        %1668 = vmatpush1.msra.mxu0 0.0
        %1669 = vmatprep.subr.mxu0 0.0
        %1670 = vmatpush1.msra.mxu0 0.0
        %1671 = vmatprep.subr.mxu0 0.0
        %1672 = vmatpush1.msra.mxu0 0.0
        %1673 = vmatprep.subr.mxu0 0.0
        %1674 = vmatpush1.msra.mxu0 0.0
        %1675 = vmatprep.subr.mxu0 0.0
        %1676 = vmatpush1.msra.mxu0 0.0
        %1677 = vmatprep.subr.mxu0 0.0
        %1678 = vmatpush1.msra.mxu0 0.0
        %1679 = vmatprep.subr.mxu0 0.0
        %1680 = vmatpush1.msra.mxu0 0.0
        %1681 = vmatprep.subr.mxu0 0.0
        %1682 = vmatpush1.msra.mxu0 0.0
        %1683 = vmatprep.subr.mxu0 0.0
        %1684 = vmatpush1.msra.mxu0 0.0
        %1685 = vmatprep.subr.mxu0 0.0
        %1686 = vmatpush1.msra.mxu0 0.0
        %1687 = vmatprep.subr.mxu0 0.0
        %1688 = vmatpush1.msra.mxu0 0.0
        %1689 = vmatprep.subr.mxu0 0.0
        %1690 = vmatpush1.msra.mxu0 0.0
        %1691 = vmatprep.subr.mxu0 0.0
        %1692 = vmatpush1.msra.mxu0 0.0
        %1693 = vmatprep.subr.mxu0 0.0
        %1694 = vmatpush1.msra.mxu0 %v1661
        %1695 = vmatprep.subr.mxu0 0.0
        %1696 = vmatpush2.msra.mxu0 0.0
        %1697 = vmatprep.subr.mxu0 0.0
        %1698 = vmatpush2.msra.mxu0 0.0
        %1699 = vmatprep.subr.mxu0 0.0
        %1700 = vmatpush2.msra.mxu0 0.0
        %1701 = vmatprep.subr.mxu0 0.0
        %1702 = vmatpush2.msra.mxu0 0.0
        %1703 = vmatprep.subr.mxu0 0.0
        %1704 = vmatpush2.msra.mxu0 0.0
        %1705 = vmatprep.subr.mxu0 0.0
        %1706 = vmatpush2.msra.mxu0 0.0
        %1707 = vmatprep.subr.mxu0 0.0
        %1708 = vmatpush2.msra.mxu0 0.0
        %1709 = vmatprep.subr.mxu0 0.0
        %1710 = vmatpush2.msra.mxu0 0.0
        %1711 = vmatprep.subr.mxu0 0.0
        %1712 = vmatpush2.msra.mxu0 0.0
        %1713 = vmatprep.subr.mxu0 0.0
        %1714 = vmatpush2.msra.mxu0 0.0
        %1715 = vmatprep.subr.mxu0 0.0
        %1716 = vmatpush2.msra.mxu0 0.0
        %1717 = vmatprep.subr.mxu0 0.0
        %1718 = vmatpush2.msra.mxu0 0.0
        %1719 = vmatprep.subr.mxu0 0.0
        %1720 = vmatpush2.msra.mxu0 0.0
        %1721 = vmatprep.subr.mxu0 0.0
        %1722 = vmatpush2.msra.mxu0 0.0
        %1723 = vmatprep.subr.mxu0 0.0
        %1724 = vmatpush2.msra.mxu0 0.0
        %1725 = vmatprep.subr.mxu0 0.0
        %1726 = vmatpush2.msra.mxu0 0.0
        %1727 = vmatprep.mubr.f32.mxu0 0.0
        %1728 = vmatmul.mubr.f32.gmra.mxu0 %v1657
        %v1729 = vpop.f32.mrf.mxu0
        %v1730 = vadd.f32 %v1654, %v1729
        %v1731 = vpop.f32.mrf.mxu0
        %1732 = vdwg.mxu0
        %1734 = vrot.lane.b32.xlu0 %v1730, 112
        %v1735 = vpop.permute.xlu0 %1734
        %1737 = vrot.lane.b32.xlu0 %v1730, 96
        %v1738 = vpop.permute.xlu0 %1737
        %1740 = vrot.lane.b32.xlu0 %v1730, 80
        %v1741 = vpop.permute.xlu0 %1740
        %1743 = vrot.lane.b32.xlu0 %v1730, 64
        %v1744 = vpop.permute.xlu0 %1743
        %1745 = vrot.lane.b32.xlu0 %v1730, 48
        %v1746 = vpop.permute.xlu0 %1745
        %v1747 = vcombine.low %v1730, %v1738
        %v1749 = vunpack.c.l.s4 1983009808
        %v1750 = vunpack.c.0.s8 %v1749
        %v1751 = vlaneseq
        %v1752 = vshrl.u32 %v1751, 7
        %v1753 = vsub.s32 %v1750, %v1752
        %v1754 = vrot.slane %v1747, %v1753
        %v1755 = vcombine.low %v1735, %v1741
        %v1757 = vunpack.c.l.s4 1983009808
        %v1758 = vunpack.c.0.s8 %v1757
        %v1759 = vlaneseq
        %v1760 = vshrl.u32 %v1759, 7
        %v1761 = vsub.s32 %v1758, %v1760
        %v1762 = vrot.slane %v1755, %v1761
        %v1765 = vcombine.low %v1754, %v1762
        %v1767 = vunpack.c.l.s4 1934713408
        %v1768 = vunpack.c.0.s8 %v1767
        %v1769 = vlaneseq
        %v1770 = vshrl.u32 %v1769, 7
        %v1771 = vsub.s32 %v1768, %v1770
        %v1772 = vrot.slane %v1765, %v1771
        %v1773 = vcombine.low %v1744, %v1746
        %v1775 = vunpack.c.l.s4 1934713408
        %v1776 = vunpack.c.0.s8 %v1775
        %v1777 = vlaneseq
        %v1778 = vshrl.u32 %v1777, 7
        %v1779 = vsub.s32 %v1776, %v1778
        %v1780 = vrot.slane %v1773, %v1779
        %v1781 = vcombine.low %v1772, %v1780
        %v1782 = vcombine.high %v1772, %v1780
        %v1783 = vlaneseq
        %v1784 = vshrl.u32 %v1783, 7
        %v1785 = vsub.s32 0, %v1784
        %v1786 = vrot.slane %v1781, %v1785
        %1788 = vbcast.lane.b32.xlu0 %v1786, 256
        %v1789 = vpop.permute.xlu0 %1788
        %s1791 = sor.u32 256, 8
        %1792 = vbcast.lane.b32.xlu0 %v1786, %s1791
        %v1793 = vpop.permute.xlu0 %1792
        %v1794 = vlaneseq
        %v1795 = vshrl.u32 %v1794, 7
        %v1796 = vsub.s32 0, %v1795
        %v1797 = vrot.slane %v1782, %v1796
        %1799 = vbcast.lane.b32.xlu0 %v1797, 256
        %v1800 = vpop.permute.xlu0 %1799
        %s1802 = sor.u32 256, 8
        %1803 = vbcast.lane.b32.xlu0 %v1797, %s1802
        %v1804 = vpop.permute.xlu0 %1803
        %v1805 = vlaneseq
        %v1806 = vshrl.u32 %v1805, 7
        %v1807 = vsub.s32 1, %v1806
        %v1808 = vrot.slane %v1781, %v1807
        %1810 = vbcast.lane.b32.xlu0 %v1808, 256
        %v1811 = vpop.permute.xlu0 %1810
        %s1813 = sor.u32 256, 8
        %1814 = vbcast.lane.b32.xlu0 %v1808, %s1813
        %v1815 = vpop.permute.xlu0 %1814
        %v1816 = vlaneseq
        %v1817 = vshrl.u32 %v1816, 7
        %v1818 = vsub.s32 1, %v1817
        %v1819 = vrot.slane %v1782, %v1818
        %1821 = vbcast.lane.b32.xlu0 %v1819, 256
        %v1822 = vpop.permute.xlu0 %1821
        %s1824 = sor.u32 256, 8
        %1825 = vbcast.lane.b32.xlu0 %v1819, %s1824
        %v1826 = vpop.permute.xlu0 %1825
        %v1827 = vlaneseq
        %v1828 = vshrl.u32 %v1827, 7
        %v1829 = vsub.s32 2, %v1828
        %v1830 = vrot.slane %v1781, %v1829
        %1832 = vbcast.lane.b32.xlu0 %v1830, 256
        %v1833 = vpop.permute.xlu0 %1832
        %s1835 = sor.u32 256, 8
        %1836 = vbcast.lane.b32.xlu0 %v1830, %s1835
        %v1837 = vpop.permute.xlu0 %1836
        %v1838 = vlaneseq
        %v1839 = vshrl.u32 %v1838, 7
        %v1840 = vsub.s32 2, %v1839
        %v1841 = vrot.slane %v1782, %v1840
        %1843 = vbcast.lane.b32.xlu0 %v1841, 256
        %v1844 = vpop.permute.xlu0 %1843
        %s1846 = sor.u32 256, 8
        %1847 = vbcast.lane.b32.xlu0 %v1841, %s1846
        %v1848 = vpop.permute.xlu0 %1847
        %v1849 = vlaneseq
        %v1850 = vshrl.u32 %v1849, 7
        %v1851 = vsub.s32 3, %v1850
        %v1852 = vrot.slane %v1781, %v1851
        %1854 = vbcast.lane.b32.xlu0 %v1852, 256
        %v1855 = vpop.permute.xlu0 %1854
        %s1857 = sor.u32 256, 8
        %1858 = vbcast.lane.b32.xlu0 %v1852, %s1857
        %v1859 = vpop.permute.xlu0 %1858
        %v1860 = vlaneseq
        %v1861 = vshrl.u32 %v1860, 7
        %v1862 = vsub.s32 3, %v1861
        %v1863 = vrot.slane %v1782, %v1862
        %1865 = vbcast.lane.b32.xlu0 %v1863, 256
        %v1866 = vpop.permute.xlu0 %1865
        %s1868 = sor.u32 256, 8
        %1869 = vbcast.lane.b32.xlu0 %v1863, %s1868
        %v1870 = vpop.permute.xlu0 %1869
        %v1871 = vlaneseq
        %v1872 = vshrl.u32 %v1871, 7
        %v1873 = vsub.s32 4, %v1872
        %v1874 = vrot.slane %v1781, %v1873
        %1876 = vbcast.lane.b32.xlu0 %v1874, 256
        %v1877 = vpop.permute.xlu0 %1876
        %s1879 = sor.u32 256, 8
        %1880 = vbcast.lane.b32.xlu0 %v1874, %s1879
        %v1881 = vpop.permute.xlu0 %1880
        %v1882 = vlaneseq
        %v1883 = vshrl.u32 %v1882, 7
        %v1884 = vsub.s32 4, %v1883
        %v1885 = vrot.slane %v1782, %v1884
        %1887 = vbcast.lane.b32.xlu0 %v1885, 256
        %v1888 = vpop.permute.xlu0 %1887
        %s1890 = sor.u32 256, 8
        %1891 = vbcast.lane.b32.xlu0 %v1885, %s1890
        %v1892 = vpop.permute.xlu0 %1891
        %v1893 = vlaneseq
        %v1894 = vshrl.u32 %v1893, 7
        %v1895 = vsub.s32 5, %v1894
        %v1896 = vrot.slane %v1781, %v1895
        %1898 = vbcast.lane.b32.xlu0 %v1896, 256
        %v1899 = vpop.permute.xlu0 %1898
        %s1901 = sor.u32 256, 8
        %1902 = vbcast.lane.b32.xlu0 %v1896, %s1901
        %v1903 = vpop.permute.xlu0 %1902
        %v1904 = vlaneseq
        %v1905 = vshrl.u32 %v1904, 7
        %v1906 = vsub.s32 5, %v1905
        %v1907 = vrot.slane %v1782, %v1906
        %1909 = vbcast.lane.b32.xlu0 %v1907, 256
        %v1910 = vpop.permute.xlu0 %1909
        %s1912 = sor.u32 256, 8
        %1913 = vbcast.lane.b32.xlu0 %v1907, %s1912
        %v1914 = vpop.permute.xlu0 %1913
        %1915 = vadd.xlane.f32.xlu0 %v1419
        %v1916 = vpop.xlane.xlu0 %1915
        %1917 = vadd.xlane.f32.xlu0 %v1420
        %v1918 = vpop.xlane.xlu0 %1917
        %1919 = vadd.xlane.f32.xlu0 %v1421
        %v1920 = vpop.xlane.xlu0 %1919
        %1921 = vadd.xlane.f32.xlu0 %v1422
        %v1922 = vpop.xlane.xlu0 %1921
        %v1923 = vrcp.pop 128.0
        %v1924 = vmul.f32 %v1916, %v1923
        %v1925 = vmul.f32 %v1918, %v1923
        %v1926 = vmul.f32 %v1920, %v1923
        %v1927 = vmul.f32 %v1922, %v1923
        %v1928 = vmul.f32 %v1419, %v1419
        %v1929 = vmul.f32 %v1420, %v1420
        %v1930 = vmul.f32 %v1421, %v1421
        %v1931 = vmul.f32 %v1422, %v1422
        %1932 = vadd.xlane.f32.xlu0 %v1928
        %v1933 = vpop.xlane.xlu0 %1932
        %1934 = vadd.xlane.f32.xlu0 %v1929
        %v1935 = vpop.xlane.xlu0 %1934
        %1936 = vadd.xlane.f32.xlu0 %v1930
        %v1937 = vpop.xlane.xlu0 %1936
        %1938 = vadd.xlane.f32.xlu0 %v1931
        %v1939 = vpop.xlane.xlu0 %1938
        %v1940 = vmul.f32 %v1933, %v1923
        %v1941 = vmul.f32 %v1935, %v1923
        %v1942 = vmul.f32 %v1937, %v1923
        %v1943 = vmul.f32 %v1939, %v1923
        %v1944 = vmul.f32 %v1924, %v1924
        %v1945 = vmul.f32 %v1925, %v1925
        %v1946 = vmul.f32 %v1926, %v1926
        %v1947 = vmul.f32 %v1927, %v1927
        %v1948 = vsub.f32 %v1940, %v1944
        %v1949 = vsub.f32 %v1941, %v1945
        %v1950 = vsub.f32 %v1942, %v1946
        %v1951 = vsub.f32 %v1943, %v1947
        %v1952 = vmax.f32 %v1948, 0.0
        %v1953 = vmax.f32 %v1949, 0.0
        %v1954 = vmax.f32 %v1950, 0.0
        %v1955 = vmax.f32 %v1951, 0.0
        %v1956 = vsub.f32 %v1419, %v1924
        %v1957 = vsub.f32 %v1420, %v1925
        %v1958 = vsub.f32 %v1421, %v1926
        %v1959 = vsub.f32 %v1422, %v1927
        %v1960 = vadd.f32 %v1952, 1e-05
        %v1961 = vadd.f32 %v1953, 1e-05
        %v1962 = vadd.f32 %v1954, 1e-05
        %v1963 = vadd.f32 %v1955, 1e-05
        %v1964 = vrsqrt.pop %v1960
        %v1965 = vrsqrt.pop %v1961
        %v1966 = vrsqrt.pop %v1962
        %v1967 = vrsqrt.pop %v1963
        %v1968 = vmul.f32 %v1956, %v1964
        %v1969 = vmul.f32 %v1957, %v1965
        %v1970 = vmul.f32 %v1958, %v1966
        %v1971 = vmul.f32 %v1959, %v1967
        %v1972 = vadd.f32 %v1811, 1.0
        %v1973 = vadd.f32 %v1815, 1.0
        %v1974 = vadd.f32 %v1822, 1.0
        %v1975 = vadd.f32 %v1826, 1.0
        %v1976 = vmul.f32 %v1968, %v1972
        %v1977 = vmul.f32 %v1969, %v1973
        %v1978 = vmul.f32 %v1970, %v1974
        %v1979 = vmul.f32 %v1971, %v1975
        %v1980 = vadd.f32 %v1976, %v1789
        %v1981 = vadd.f32 %v1977, %v1793
        %v1982 = vadd.f32 %v1978, %v1800
        %v1983 = vadd.f32 %v1979, %v1804
        %v1984 = vcombine.high %v1980, 0.0
        %v1986 = vunpack.c.l.s4 1983009808
        %v1987 = vunpack.c.0.s8 %v1986
        %v1988 = vlaneseq
        %v1989 = vshrl.u32 %v1988, 7
        %v1990 = vsub.s32 %v1987, %v1989
        %v1991 = vrot.slane %v1980, %v1990
        %v1993 = vunpack.c.l.s4 1983009808
        %v1994 = vunpack.c.0.s8 %v1993
        %v1995 = vlaneseq
        %v1996 = vshrl.u32 %v1995, 7
        %v1997 = vsub.s32 %v1994, %v1996
        %v1998 = vrot.slane %v1984, %v1997
        %v1999 = vcombine.high %v1982, 0.0
        %v2001 = vunpack.c.l.s4 1983009808
        %v2002 = vunpack.c.0.s8 %v2001
        %v2003 = vlaneseq
        %v2004 = vshrl.u32 %v2003, 7
        %v2005 = vsub.s32 %v2002, %v2004
        %v2006 = vrot.slane %v1982, %v2005
        %v2008 = vunpack.c.l.s4 1983009808
        %v2009 = vunpack.c.0.s8 %v2008
        %v2010 = vlaneseq
        %v2011 = vshrl.u32 %v2010, 7
        %v2012 = vsub.s32 %v2009, %v2011
        %v2013 = vrot.slane %v1999, %v2012
        %v2014 = vcombine.low %v1991, %v2006
        %v2015 = vcombine.high %v1991, %v2006
        %v2017 = vunpack.c.l.s4 1934713408
        %v2018 = vunpack.c.0.s8 %v2017
        %v2019 = vlaneseq
        %v2020 = vshrl.u32 %v2019, 7
        %v2021 = vsub.s32 %v2018, %v2020
        %v2022 = vrot.slane %v2014, %v2021
        %v2024 = vunpack.c.l.s4 1934713408
        %v2025 = vunpack.c.0.s8 %v2024
        %v2026 = vlaneseq
        %v2027 = vshrl.u32 %v2026, 7
        %v2028 = vsub.s32 %v2025, %v2027
        %v2029 = vrot.slane %v2015, %v2028
        %v2030 = vcombine.low %v1998, %v2013
        %v2031 = vcombine.high %v1998, %v2013
        %v2033 = vunpack.c.l.s4 1934713408
        %v2034 = vunpack.c.0.s8 %v2033
        %v2035 = vlaneseq
        %v2036 = vshrl.u32 %v2035, 7
        %v2037 = vsub.s32 %v2034, %v2036
        %v2038 = vrot.slane %v2030, %v2037
        %v2040 = vunpack.c.l.s4 1934713408
        %v2041 = vunpack.c.0.s8 %v2040
        %v2042 = vlaneseq
        %v2043 = vshrl.u32 %v2042, 7
        %v2044 = vsub.s32 %v2041, %v2043
        %v2045 = vrot.slane %v2031, %v2044
        %v2046 = vcombine.high %v2022, 0.0
        %v2047 = vcombine.high %v2029, 0.0
        %v2048 = vcombine.high %v2038, 0.0
        %v2049 = vcombine.high %v2045, 0.0
        %v2050 = vcombine.high %v1981, 0.0
        %v2052 = vunpack.c.l.s4 1983009808
        %v2053 = vunpack.c.0.s8 %v2052
        %v2054 = vlaneseq
        %v2055 = vshrl.u32 %v2054, 7
        %v2056 = vsub.s32 %v2053, %v2055
        %v2057 = vrot.slane %v1981, %v2056
        %v2059 = vunpack.c.l.s4 1983009808
        %v2060 = vunpack.c.0.s8 %v2059
        %v2061 = vlaneseq
        %v2062 = vshrl.u32 %v2061, 7
        %v2063 = vsub.s32 %v2060, %v2062
        %v2064 = vrot.slane %v2050, %v2063
        %v2065 = vcombine.high %v1983, 0.0
        %v2067 = vunpack.c.l.s4 1983009808
        %v2068 = vunpack.c.0.s8 %v2067
        %v2069 = vlaneseq
        %v2070 = vshrl.u32 %v2069, 7
        %v2071 = vsub.s32 %v2068, %v2070
        %v2072 = vrot.slane %v1983, %v2071
        %v2074 = vunpack.c.l.s4 1983009808
        %v2075 = vunpack.c.0.s8 %v2074
        %v2076 = vlaneseq
        %v2077 = vshrl.u32 %v2076, 7
        %v2078 = vsub.s32 %v2075, %v2077
        %v2079 = vrot.slane %v2065, %v2078
        %v2080 = vcombine.low %v2057, %v2072
        %v2081 = vcombine.high %v2057, %v2072
        %v2083 = vunpack.c.l.s4 1934713408
        %v2084 = vunpack.c.0.s8 %v2083
        %v2085 = vlaneseq
        %v2086 = vshrl.u32 %v2085, 7
        %v2087 = vsub.s32 %v2084, %v2086
        %v2088 = vrot.slane %v2080, %v2087
        %v2090 = vunpack.c.l.s4 1934713408
        %v2091 = vunpack.c.0.s8 %v2090
        %v2092 = vlaneseq
        %v2093 = vshrl.u32 %v2092, 7
        %v2094 = vsub.s32 %v2091, %v2093
        %v2095 = vrot.slane %v2081, %v2094
        %v2096 = vcombine.low %v2064, %v2079
        %v2097 = vcombine.high %v2064, %v2079
        %v2099 = vunpack.c.l.s4 1934713408
        %v2100 = vunpack.c.0.s8 %v2099
        %v2101 = vlaneseq
        %v2102 = vshrl.u32 %v2101, 7
        %v2103 = vsub.s32 %v2100, %v2102
        %v2104 = vrot.slane %v2096, %v2103
        %v2106 = vunpack.c.l.s4 1934713408
        %v2107 = vunpack.c.0.s8 %v2106
        %v2108 = vlaneseq
        %v2109 = vshrl.u32 %v2108, 7
        %v2110 = vsub.s32 %v2107, %v2109
        %v2111 = vrot.slane %v2097, %v2110
        %v2112 = vcombine.high %v2088, 0.0
        %v2113 = vcombine.high %v2095, 0.0
        %v2114 = vcombine.high %v2104, 0.0
        %v2115 = vcombine.high %v2111, 0.0
        %v2116 = vpack.c.bf16 %v2022, %v2022
        %v2117 = vpack.c.bf16 %v2046, %v2046
        %v2118 = vpack.c.bf16 %v2029, %v2029
        %v2119 = vpack.c.bf16 %v2047, %v2047
        %v2120 = vpack.c.bf16 %v2038, %v2038
        %v2121 = vpack.c.bf16 %v2048, %v2048
        %v2122 = vpack.c.bf16 %v2045, %v2045
        %v2123 = vpack.c.bf16 %v2049, %v2049
        %v2124 = vpack.c.bf16 %v2088, %v2088
        %v2125 = vpack.c.bf16 %v2112, %v2112
        %v2126 = vpack.c.bf16 %v2095, %v2095
        %v2127 = vpack.c.bf16 %v2113, %v2113
        %v2128 = vpack.c.bf16 %v2104, %v2104
        %v2129 = vpack.c.bf16 %v2114, %v2114
        %v2130 = vpack.c.bf16 %v2111, %v2111
        %v2131 = vpack.c.bf16 %v2115, %v2115
        %v2132 = vld [vmem:[%s603] sm:$0xf]
        %v2133 = vld [vmem:[%s603 + $0x4] sm:$0xf]
        %v2134 = vld [vmem:[%s603 + $0x8] sm:$0xf]
        %v2135 = vld [vmem:[%s603 + $0xc] sm:$0xf]
        %v2136 = vld [vmem:[%s603 + $0x10] sm:$0xf]
        %v2137 = vld [vmem:[%s603 + $0x14] sm:$0xf]
        %v2138 = vld [vmem:[%s603 + $0x18] sm:$0xf]
        %v2139 = vld [vmem:[%s603 + $0x1c] sm:$0xf]
        %v2140 = vld [vmem:[%s603 + $0x20] sm:$0xf]
        %v2141 = vld [vmem:[%s603 + $0x24] sm:$0xf]
        %v2142 = vld [vmem:[%s603 + $0x28] sm:$0xf]
        %v2143 = vld [vmem:[%s603 + $0x2c] sm:$0xf]
        %v2144 = vld [vmem:[%s603 + $0x30] sm:$0xf]
        %v2145 = vld [vmem:[%s603 + $0x34] sm:$0xf]
        %v2146 = vld [vmem:[%s603 + $0x38] sm:$0xf]
        %v2147 = vld [vmem:[%s603 + $0x3c] sm:$0xf]
        %v2148 = vld [vmem:[%s603 + $0x40] sm:$0xf]
        %v2149 = vld [vmem:[%s603 + $0x44] sm:$0xf]
        %v2150 = vld [vmem:[%s603 + $0x48] sm:$0xf]
        %v2151 = vld [vmem:[%s603 + $0x4c] sm:$0xf]
        %v2152 = vld [vmem:[%s603 + $0x50] sm:$0xf]
        %v2153 = vld [vmem:[%s603 + $0x54] sm:$0xf]
        %v2154 = vld [vmem:[%s603 + $0x58] sm:$0xf]
        %v2155 = vld [vmem:[%s603 + $0x5c] sm:$0xf]
        %v2156 = vld [vmem:[%s603 + $0x60] sm:$0xf]
        %v2157 = vld [vmem:[%s603 + $0x64] sm:$0xf]
        %v2158 = vld [vmem:[%s603 + $0x68] sm:$0xf]
        %v2159 = vld [vmem:[%s603 + $0x6c] sm:$0xf]
        %v2160 = vld [vmem:[%s603 + $0x70] sm:$0xf]
        %v2161 = vld [vmem:[%s603 + $0x74] sm:$0xf]
        %v2162 = vld [vmem:[%s603 + $0x78] sm:$0xf]
        %v2163 = vld [vmem:[%s603 + $0x7c] sm:$0xf]
        %v2164 = vld [vmem:[%s603 + $0x80] sm:$0xf]
        %v2165 = vld [vmem:[%s603 + $0x84] sm:$0xf]
        %v2166 = vld [vmem:[%s603 + $0x88] sm:$0xf]
        %v2167 = vld [vmem:[%s603 + $0x8c] sm:$0xf]
        %v2168 = vld [vmem:[%s603 + $0x90] sm:$0xf]
        %v2169 = vld [vmem:[%s603 + $0x94] sm:$0xf]
        %v2170 = vld [vmem:[%s603 + $0x98] sm:$0xf]
        %v2171 = vld [vmem:[%s603 + $0x9c] sm:$0xf]
        %v2172 = vld [vmem:[%s603 + $0xa0] sm:$0xf]
        %v2173 = vld [vmem:[%s603 + $0xa4] sm:$0xf]
        %v2174 = vld [vmem:[%s603 + $0xa8] sm:$0xf]
        %v2175 = vld [vmem:[%s603 + $0xac] sm:$0xf]
        %v2176 = vld [vmem:[%s603 + $0xb0] sm:$0xf]
        %v2177 = vld [vmem:[%s603 + $0xb4] sm:$0xf]
        %v2178 = vld [vmem:[%s603 + $0xb8] sm:$0xf]
        %v2179 = vld [vmem:[%s603 + $0xbc] sm:$0xf]
        %v2180 = vld [vmem:[%s603 + $0xc0] sm:$0xf]
        %v2181 = vld [vmem:[%s603 + $0xc4] sm:$0xf]
        %v2182 = vld [vmem:[%s603 + $0xc8] sm:$0xf]
        %v2183 = vld [vmem:[%s603 + $0xcc] sm:$0xf]
        %v2184 = vld [vmem:[%s603 + $0xd0] sm:$0xf]
        %v2185 = vld [vmem:[%s603 + $0xd4] sm:$0xf]
        %v2186 = vld [vmem:[%s603 + $0xd8] sm:$0xf]
        %v2187 = vld [vmem:[%s603 + $0xdc] sm:$0xf]
        %v2188 = vld [vmem:[%s603 + $0xe0] sm:$0xf]
        %v2189 = vld [vmem:[%s603 + $0xe4] sm:$0xf]
        %v2190 = vld [vmem:[%s603 + $0xe8] sm:$0xf]
        %v2191 = vld [vmem:[%s603 + $0xec] sm:$0xf]
        %v2192 = vld [vmem:[%s603 + $0xf0] sm:$0xf]
        %v2193 = vld [vmem:[%s603 + $0xf4] sm:$0xf]
        %v2194 = vld [vmem:[%s603 + $0xf8] sm:$0xf]
        %v2195 = vld [vmem:[%s603 + $0xfc] sm:$0xf]
        %v2196 = vld [vmem:[%s603 + $0x100] sm:$0xf]
        %v2197 = vld [vmem:[%s603 + $0x104] sm:$0xf]
        %v2198 = vld [vmem:[%s603 + $0x108] sm:$0xf]
        %v2199 = vld [vmem:[%s603 + $0x10c] sm:$0xf]
        %v2200 = vld [vmem:[%s603 + $0x110] sm:$0xf]
        %v2201 = vld [vmem:[%s603 + $0x114] sm:$0xf]
        %v2202 = vld [vmem:[%s603 + $0x118] sm:$0xf]
        %v2203 = vld [vmem:[%s603 + $0x11c] sm:$0xf]
        %v2204 = vld [vmem:[%s603 + $0x120] sm:$0xf]
        %v2205 = vld [vmem:[%s603 + $0x124] sm:$0xf]
        %v2206 = vld [vmem:[%s603 + $0x128] sm:$0xf]
        %v2207 = vld [vmem:[%s603 + $0x12c] sm:$0xf]
        %v2208 = vld [vmem:[%s603 + $0x130] sm:$0xf]
        %v2209 = vld [vmem:[%s603 + $0x134] sm:$0xf]
        %v2210 = vld [vmem:[%s603 + $0x138] sm:$0xf]
        %v2211 = vld [vmem:[%s603 + $0x13c] sm:$0xf]
        %v2212 = vld [vmem:[%s603 + $0x140] sm:$0xf]
        %v2213 = vld [vmem:[%s603 + $0x144] sm:$0xf]
        %v2214 = vld [vmem:[%s603 + $0x148] sm:$0xf]
        %v2215 = vld [vmem:[%s603 + $0x14c] sm:$0xf]
        %v2216 = vld [vmem:[%s603 + $0x150] sm:$0xf]
        %v2217 = vld [vmem:[%s603 + $0x154] sm:$0xf]
        %v2218 = vld [vmem:[%s603 + $0x158] sm:$0xf]
        %v2219 = vld [vmem:[%s603 + $0x15c] sm:$0xf]
        %v2220 = vld [vmem:[%s603 + $0x160] sm:$0xf]
        %v2221 = vld [vmem:[%s603 + $0x164] sm:$0xf]
        %v2222 = vld [vmem:[%s603 + $0x168] sm:$0xf]
        %v2223 = vld [vmem:[%s603 + $0x16c] sm:$0xf]
        %v2224 = vld [vmem:[%s603 + $0x170] sm:$0xf]
        %v2225 = vld [vmem:[%s603 + $0x174] sm:$0xf]
        %v2226 = vld [vmem:[%s603 + $0x178] sm:$0xf]
        %v2227 = vld [vmem:[%s603 + $0x17c] sm:$0xf]
        %v2228 = vld [vmem:[%s603 + $0x180] sm:$0xf]
        %v2229 = vld [vmem:[%s603 + $0x184] sm:$0xf]
        %v2230 = vld [vmem:[%s603 + $0x188] sm:$0xf]
        %v2231 = vld [vmem:[%s603 + $0x18c] sm:$0xf]
        %v2232 = vld [vmem:[%s603 + $0x190] sm:$0xf]
        %v2233 = vld [vmem:[%s603 + $0x194] sm:$0xf]
        %v2234 = vld [vmem:[%s603 + $0x198] sm:$0xf]
        %v2235 = vld [vmem:[%s603 + $0x19c] sm:$0xf]
        %v2236 = vld [vmem:[%s603 + $0x1a0] sm:$0xf]
        %v2237 = vld [vmem:[%s603 + $0x1a4] sm:$0xf]
        %v2238 = vld [vmem:[%s603 + $0x1a8] sm:$0xf]
        %v2239 = vld [vmem:[%s603 + $0x1ac] sm:$0xf]
        %v2240 = vld [vmem:[%s603 + $0x1b0] sm:$0xf]
        %v2241 = vld [vmem:[%s603 + $0x1b4] sm:$0xf]
        %v2242 = vld [vmem:[%s603 + $0x1b8] sm:$0xf]
        %v2243 = vld [vmem:[%s603 + $0x1bc] sm:$0xf]
        %v2244 = vld [vmem:[%s603 + $0x1c0] sm:$0xf]
        %v2245 = vld [vmem:[%s603 + $0x1c4] sm:$0xf]
        %v2246 = vld [vmem:[%s603 + $0x1c8] sm:$0xf]
        %v2247 = vld [vmem:[%s603 + $0x1cc] sm:$0xf]
        %v2248 = vld [vmem:[%s603 + $0x1d0] sm:$0xf]
        %v2249 = vld [vmem:[%s603 + $0x1d4] sm:$0xf]
        %v2250 = vld [vmem:[%s603 + $0x1d8] sm:$0xf]
        %v2251 = vld [vmem:[%s603 + $0x1dc] sm:$0xf]
        %v2252 = vld [vmem:[%s603 + $0x1e0] sm:$0xf]
        %v2253 = vld [vmem:[%s603 + $0x1e4] sm:$0xf]
        %v2254 = vld [vmem:[%s603 + $0x1e8] sm:$0xf]
        %v2255 = vld [vmem:[%s603 + $0x1ec] sm:$0xf]
        %v2256 = vld [vmem:[%s603 + $0x1f0] sm:$0xf]
        %v2257 = vld [vmem:[%s603 + $0x1f4] sm:$0xf]
        %v2258 = vld [vmem:[%s603 + $0x1f8] sm:$0xf]
        %v2259 = vld [vmem:[%s603 + $0x1fc] sm:$0xf]
        %v2260 = vld [vmem:[%s603 + $0x200] sm:$0xf]
        %v2261 = vld [vmem:[%s603 + $0x204] sm:$0xf]
        %v2262 = vld [vmem:[%s603 + $0x208] sm:$0xf]
        %v2263 = vld [vmem:[%s603 + $0x20c] sm:$0xf]
        %v2264 = vld [vmem:[%s603 + $0x210] sm:$0xf]
        %v2265 = vld [vmem:[%s603 + $0x214] sm:$0xf]
        %v2266 = vld [vmem:[%s603 + $0x218] sm:$0xf]
        %v2267 = vld [vmem:[%s603 + $0x21c] sm:$0xf]
        %v2268 = vld [vmem:[%s603 + $0x220] sm:$0xf]
        %v2269 = vld [vmem:[%s603 + $0x224] sm:$0xf]
        %v2270 = vld [vmem:[%s603 + $0x228] sm:$0xf]
        %v2271 = vld [vmem:[%s603 + $0x22c] sm:$0xf]
        %v2272 = vld [vmem:[%s603 + $0x230] sm:$0xf]
        %v2273 = vld [vmem:[%s603 + $0x234] sm:$0xf]
        %v2274 = vld [vmem:[%s603 + $0x238] sm:$0xf]
        %v2275 = vld [vmem:[%s603 + $0x23c] sm:$0xf]
        %v2276 = vld [vmem:[%s603 + $0x240] sm:$0xf]
        %v2277 = vld [vmem:[%s603 + $0x244] sm:$0xf]
        %v2278 = vld [vmem:[%s603 + $0x248] sm:$0xf]
        %v2279 = vld [vmem:[%s603 + $0x24c] sm:$0xf]
        %v2280 = vld [vmem:[%s603 + $0x250] sm:$0xf]
        %v2281 = vld [vmem:[%s603 + $0x254] sm:$0xf]
        %v2282 = vld [vmem:[%s603 + $0x258] sm:$0xf]
        %v2283 = vld [vmem:[%s603 + $0x25c] sm:$0xf]
        %v2284 = vld [vmem:[%s603 + $0x260] sm:$0xf]
        %v2285 = vld [vmem:[%s603 + $0x264] sm:$0xf]
        %v2286 = vld [vmem:[%s603 + $0x268] sm:$0xf]
        %v2287 = vld [vmem:[%s603 + $0x26c] sm:$0xf]
        %v2288 = vld [vmem:[%s603 + $0x270] sm:$0xf]
        %v2289 = vld [vmem:[%s603 + $0x274] sm:$0xf]
        %v2290 = vld [vmem:[%s603 + $0x278] sm:$0xf]
        %v2291 = vld [vmem:[%s603 + $0x27c] sm:$0xf]
        %v2292 = vld [vmem:[%s603 + $0x280] sm:$0xf]
        %v2293 = vld [vmem:[%s603 + $0x284] sm:$0xf]
        %v2294 = vld [vmem:[%s603 + $0x288] sm:$0xf]
        %v2295 = vld [vmem:[%s603 + $0x28c] sm:$0xf]
        %v2296 = vld [vmem:[%s603 + $0x290] sm:$0xf]
        %v2297 = vld [vmem:[%s603 + $0x294] sm:$0xf]
        %v2298 = vld [vmem:[%s603 + $0x298] sm:$0xf]
        %v2299 = vld [vmem:[%s603 + $0x29c] sm:$0xf]
        %v2300 = vld [vmem:[%s603 + $0x2a0] sm:$0xf]
        %v2301 = vld [vmem:[%s603 + $0x2a4] sm:$0xf]
        %v2302 = vld [vmem:[%s603 + $0x2a8] sm:$0xf]
        %v2303 = vld [vmem:[%s603 + $0x2ac] sm:$0xf]
        %v2304 = vld [vmem:[%s603 + $0x2b0] sm:$0xf]
        %v2305 = vld [vmem:[%s603 + $0x2b4] sm:$0xf]
        %v2306 = vld [vmem:[%s603 + $0x2b8] sm:$0xf]
        %v2307 = vld [vmem:[%s603 + $0x2bc] sm:$0xf]
        %v2308 = vld [vmem:[%s603 + $0x2c0] sm:$0xf]
        %v2309 = vld [vmem:[%s603 + $0x2c4] sm:$0xf]
        %v2310 = vld [vmem:[%s603 + $0x2c8] sm:$0xf]
        %v2311 = vld [vmem:[%s603 + $0x2cc] sm:$0xf]
        %v2312 = vld [vmem:[%s603 + $0x2d0] sm:$0xf]
        %v2313 = vld [vmem:[%s603 + $0x2d4] sm:$0xf]
        %v2314 = vld [vmem:[%s603 + $0x2d8] sm:$0xf]
        %v2315 = vld [vmem:[%s603 + $0x2dc] sm:$0xf]
        %v2316 = vld [vmem:[%s603 + $0x2e0] sm:$0xf]
        %v2317 = vld [vmem:[%s603 + $0x2e4] sm:$0xf]
        %v2318 = vld [vmem:[%s603 + $0x2e8] sm:$0xf]
        %v2319 = vld [vmem:[%s603 + $0x2ec] sm:$0xf]
        %v2320 = vld [vmem:[%s603 + $0x2f0] sm:$0xf]
        %v2321 = vld [vmem:[%s603 + $0x2f4] sm:$0xf]
        %v2322 = vld [vmem:[%s603 + $0x2f8] sm:$0xf]
        %v2323 = vld [vmem:[%s603 + $0x2fc] sm:$0xf]
        %v2324 = vld [vmem:[%s603 + $0x300] sm:$0xf]
        %v2325 = vld [vmem:[%s603 + $0x304] sm:$0xf]
        %v2326 = vld [vmem:[%s603 + $0x308] sm:$0xf]
        %v2327 = vld [vmem:[%s603 + $0x30c] sm:$0xf]
        %v2328 = vld [vmem:[%s603 + $0x310] sm:$0xf]
        %v2329 = vld [vmem:[%s603 + $0x314] sm:$0xf]
        %v2330 = vld [vmem:[%s603 + $0x318] sm:$0xf]
        %v2331 = vld [vmem:[%s603 + $0x31c] sm:$0xf]
        %v2332 = vld [vmem:[%s603 + $0x320] sm:$0xf]
        %v2333 = vld [vmem:[%s603 + $0x324] sm:$0xf]
        %v2334 = vld [vmem:[%s603 + $0x328] sm:$0xf]
        %v2335 = vld [vmem:[%s603 + $0x32c] sm:$0xf]
        %v2336 = vld [vmem:[%s603 + $0x330] sm:$0xf]
        %v2337 = vld [vmem:[%s603 + $0x334] sm:$0xf]
        %v2338 = vld [vmem:[%s603 + $0x338] sm:$0xf]
        %v2339 = vld [vmem:[%s603 + $0x33c] sm:$0xf]
        %v2340 = vld [vmem:[%s603 + $0x340] sm:$0xf]
        %v2341 = vld [vmem:[%s603 + $0x344] sm:$0xf]
        %v2342 = vld [vmem:[%s603 + $0x348] sm:$0xf]
        %v2343 = vld [vmem:[%s603 + $0x34c] sm:$0xf]
        %v2344 = vld [vmem:[%s603 + $0x350] sm:$0xf]
        %v2345 = vld [vmem:[%s603 + $0x354] sm:$0xf]
        %v2346 = vld [vmem:[%s603 + $0x358] sm:$0xf]
        %v2347 = vld [vmem:[%s603 + $0x35c] sm:$0xf]
        %v2348 = vld [vmem:[%s603 + $0x360] sm:$0xf]
        %v2349 = vld [vmem:[%s603 + $0x364] sm:$0xf]
        %v2350 = vld [vmem:[%s603 + $0x368] sm:$0xf]
        %v2351 = vld [vmem:[%s603 + $0x36c] sm:$0xf]
        %v2352 = vld [vmem:[%s603 + $0x370] sm:$0xf]
        %v2353 = vld [vmem:[%s603 + $0x374] sm:$0xf]
        %v2354 = vld [vmem:[%s603 + $0x378] sm:$0xf]
        %v2355 = vld [vmem:[%s603 + $0x37c] sm:$0xf]
        %v2356 = vld [vmem:[%s603 + $0x380] sm:$0xf]
        %v2357 = vld [vmem:[%s603 + $0x384] sm:$0xf]
        %v2358 = vld [vmem:[%s603 + $0x388] sm:$0xf]
        %v2359 = vld [vmem:[%s603 + $0x38c] sm:$0xf]
        %v2360 = vld [vmem:[%s603 + $0x390] sm:$0xf]
        %v2361 = vld [vmem:[%s603 + $0x394] sm:$0xf]
        %v2362 = vld [vmem:[%s603 + $0x398] sm:$0xf]
        %v2363 = vld [vmem:[%s603 + $0x39c] sm:$0xf]
        %v2364 = vld [vmem:[%s603 + $0x3a0] sm:$0xf]
        %v2365 = vld [vmem:[%s603 + $0x3a4] sm:$0xf]
        %v2366 = vld [vmem:[%s603 + $0x3a8] sm:$0xf]
        %v2367 = vld [vmem:[%s603 + $0x3ac] sm:$0xf]
        %v2368 = vld [vmem:[%s603 + $0x3b0] sm:$0xf]
        %v2369 = vld [vmem:[%s603 + $0x3b4] sm:$0xf]
        %v2370 = vld [vmem:[%s603 + $0x3b8] sm:$0xf]
        %v2371 = vld [vmem:[%s603 + $0x3bc] sm:$0xf]
        %v2372 = vld [vmem:[%s603 + $0x3c0] sm:$0xf]
        %v2373 = vld [vmem:[%s603 + $0x3c4] sm:$0xf]
        %v2374 = vld [vmem:[%s603 + $0x3c8] sm:$0xf]
        %v2375 = vld [vmem:[%s603 + $0x3cc] sm:$0xf]
        %v2376 = vld [vmem:[%s603 + $0x3d0] sm:$0xf]
        %v2377 = vld [vmem:[%s603 + $0x3d4] sm:$0xf]
        %v2378 = vld [vmem:[%s603 + $0x3d8] sm:$0xf]
        %v2379 = vld [vmem:[%s603 + $0x3dc] sm:$0xf]
        %v2380 = vld [vmem:[%s603 + $0x3e0] sm:$0xf]
        %v2381 = vld [vmem:[%s603 + $0x3e4] sm:$0xf]
        %v2382 = vld [vmem:[%s603 + $0x3e8] sm:$0xf]
        %v2383 = vld [vmem:[%s603 + $0x3ec] sm:$0xf]
        %v2384 = vld [vmem:[%s603 + $0x3f0] sm:$0xf]
        %v2385 = vld [vmem:[%s603 + $0x3f4] sm:$0xf]
        %v2386 = vld [vmem:[%s603 + $0x3f8] sm:$0xf]
        %v2387 = vld [vmem:[%s603 + $0x3fc] sm:$0xf]
        %v2404 = vunpack.c.l.b16 %v2132
        %v2405 = vunpack.c.l.b16 %v2133
        %v2406 = vunpack.c.l.b16 %v2134
        %v2407 = vunpack.c.l.b16 %v2135
        %v2408 = vunpack.c.l.b16 %v2136
        %v2409 = vunpack.c.l.b16 %v2137
        %v2410 = vunpack.c.l.b16 %v2138
        %v2411 = vunpack.c.l.b16 %v2139
        %v2412 = vunpack.c.l.b16 %v2140
        %v2413 = vunpack.c.l.b16 %v2141
        %v2414 = vunpack.c.l.b16 %v2142
        %v2415 = vunpack.c.l.b16 %v2143
        %v2416 = vunpack.c.l.b16 %v2144
        %v2417 = vunpack.c.l.b16 %v2145
        %v2418 = vunpack.c.l.b16 %v2146
        %v2419 = vunpack.c.l.b16 %v2147
        %v2420 = vpack.c.b16 %v2405, %v2404
        %v2421 = vpack.c.b16 %v2407, %v2406
        %v2422 = vpack.c.b16 %v2409, %v2408
        %v2423 = vpack.c.b16 %v2411, %v2410
        %v2424 = vpack.c.b16 %v2413, %v2412
        %v2425 = vpack.c.b16 %v2415, %v2414
        %v2426 = vpack.c.b16 %v2417, %v2416
        %v2427 = vpack.c.b16 %v2419, %v2418
        %2436 = vmatprep.subr.bf16.mxu0 0
        %2437 = vmatpush1.bf16.msra.mxu0 %v2427
        %2438 = vmatprep.subr.bf16.mxu0 0
        %2439 = vmatpush1.bf16.msra.mxu0 %v2426
        %2440 = vmatprep.subr.bf16.mxu0 0
        %2441 = vmatpush1.bf16.msra.mxu0 %v2425
        %2442 = vmatprep.subr.bf16.mxu0 0
        %2443 = vmatpush1.bf16.msra.mxu0 %v2424
        %2444 = vmatprep.subr.bf16.mxu0 0
        %2445 = vmatpush1.bf16.msra.mxu0 %v2423
        %2446 = vmatprep.subr.bf16.mxu0 0
        %2447 = vmatpush1.bf16.msra.mxu0 %v2422
        %2448 = vmatprep.subr.bf16.mxu0 0
        %2449 = vmatpush1.bf16.msra.mxu0 %v2421
        %2450 = vmatprep.subr.bf16.mxu0 0
        %2451 = vmatpush1.bf16.msra.mxu0 %v2420
        %2452 = vmatprep.subr.bf16.mxu0 0
        %2453 = vmatpush2.bf16.msra.mxu0 0
        %2454 = vmatprep.subr.bf16.mxu0 0
        %2455 = vmatpush2.bf16.msra.mxu0 0
        %2456 = vmatprep.subr.bf16.mxu0 0
        %2457 = vmatpush2.bf16.msra.mxu0 0
        %2458 = vmatprep.subr.bf16.mxu0 0
        %2459 = vmatpush2.bf16.msra.mxu0 0
        %2460 = vmatprep.subr.bf16.mxu0 0
        %2461 = vmatpush2.bf16.msra.mxu0 0
        %2462 = vmatprep.subr.bf16.mxu0 0
        %2463 = vmatpush2.bf16.msra.mxu0 0
        %2464 = vmatprep.subr.bf16.mxu0 0
        %2465 = vmatpush2.bf16.msra.mxu0 0
        %2466 = vmatprep.subr.bf16.mxu0 0
        %2467 = vmatpush2.bf16.msra.mxu0 0
        %2468 = vmatprep.mubr.bf16.mxu0 0
        %2469 = vmatmul.mubr.bf16.gmra.mxu0 %v2116
        %v2470 = vpop.f32.mrf.mxu0
        %v2471 = vadd.f32 0.0, %v2470
        %v2472 = vpop.f32.mrf.mxu0
        %v2473 = vpop.f32.mrf.mxu0
        %v2474 = vpop.f32.mrf.mxu0
        %2475 = vdwg.mxu0
        %v2492 = vunpack.c.l.b16 %v2148
        %v2493 = vunpack.c.l.b16 %v2149
        %v2494 = vunpack.c.l.b16 %v2150
        %v2495 = vunpack.c.l.b16 %v2151
        %v2496 = vunpack.c.l.b16 %v2152
        %v2497 = vunpack.c.l.b16 %v2153
        %v2498 = vunpack.c.l.b16 %v2154
        %v2499 = vunpack.c.l.b16 %v2155
        %v2500 = vunpack.c.l.b16 %v2156
        %v2501 = vunpack.c.l.b16 %v2157
        %v2502 = vunpack.c.l.b16 %v2158
        %v2503 = vunpack.c.l.b16 %v2159
        %v2504 = vunpack.c.l.b16 %v2160
        %v2505 = vunpack.c.l.b16 %v2161
        %v2506 = vunpack.c.l.b16 %v2162
        %v2507 = vunpack.c.l.b16 %v2163
        %v2508 = vpack.c.b16 %v2493, %v2492
        %v2509 = vpack.c.b16 %v2495, %v2494
        %v2510 = vpack.c.b16 %v2497, %v2496
        %v2511 = vpack.c.b16 %v2499, %v2498
        %v2512 = vpack.c.b16 %v2501, %v2500
        %v2513 = vpack.c.b16 %v2503, %v2502
        %v2514 = vpack.c.b16 %v2505, %v2504
        %v2515 = vpack.c.b16 %v2507, %v2506
        %2524 = vmatprep.subr.bf16.mxu0 0
        %2525 = vmatpush1.bf16.msra.mxu0 %v2515
        %2526 = vmatprep.subr.bf16.mxu0 0
        %2527 = vmatpush1.bf16.msra.mxu0 %v2514
        %2528 = vmatprep.subr.bf16.mxu0 0
        %2529 = vmatpush1.bf16.msra.mxu0 %v2513
        %2530 = vmatprep.subr.bf16.mxu0 0
        %2531 = vmatpush1.bf16.msra.mxu0 %v2512
        %2532 = vmatprep.subr.bf16.mxu0 0
        %2533 = vmatpush1.bf16.msra.mxu0 %v2511
        %2534 = vmatprep.subr.bf16.mxu0 0
        %2535 = vmatpush1.bf16.msra.mxu0 %v2510
        %2536 = vmatprep.subr.bf16.mxu0 0
        %2537 = vmatpush1.bf16.msra.mxu0 %v2509
        %2538 = vmatprep.subr.bf16.mxu0 0
        %2539 = vmatpush1.bf16.msra.mxu0 %v2508
        %2540 = vmatprep.subr.bf16.mxu0 0
        %2541 = vmatpush2.bf16.msra.mxu0 0
        %2542 = vmatprep.subr.bf16.mxu0 0
        %2543 = vmatpush2.bf16.msra.mxu0 0
        %2544 = vmatprep.subr.bf16.mxu0 0
        %2545 = vmatpush2.bf16.msra.mxu0 0
        %2546 = vmatprep.subr.bf16.mxu0 0
        %2547 = vmatpush2.bf16.msra.mxu0 0
        %2548 = vmatprep.subr.bf16.mxu0 0
        %2549 = vmatpush2.bf16.msra.mxu0 0
        %2550 = vmatprep.subr.bf16.mxu0 0
        %2551 = vmatpush2.bf16.msra.mxu0 0
        %2552 = vmatprep.subr.bf16.mxu0 0
        %2553 = vmatpush2.bf16.msra.mxu0 0
        %2554 = vmatprep.subr.bf16.mxu0 0
        %2555 = vmatpush2.bf16.msra.mxu0 0
        %2556 = vmatprep.mubr.bf16.mxu0 0
        %2557 = vmatmul.mubr.bf16.gmra.mxu0 %v2117
        %v2558 = vpop.f32.mrf.mxu0
        %v2559 = vadd.f32 0.0, %v2558
        %v2560 = vpop.f32.mrf.mxu0
        %v2561 = vpop.f32.mrf.mxu0
        %v2562 = vpop.f32.mrf.mxu0
        %2563 = vdwg.mxu0
        %v2580 = vunpack.c.l.b16 %v2164
        %v2581 = vunpack.c.l.b16 %v2165
        %v2582 = vunpack.c.l.b16 %v2166
        %v2583 = vunpack.c.l.b16 %v2167
        %v2584 = vunpack.c.l.b16 %v2168
        %v2585 = vunpack.c.l.b16 %v2169
        %v2586 = vunpack.c.l.b16 %v2170
        %v2587 = vunpack.c.l.b16 %v2171
        %v2588 = vunpack.c.l.b16 %v2172
        %v2589 = vunpack.c.l.b16 %v2173
        %v2590 = vunpack.c.l.b16 %v2174
        %v2591 = vunpack.c.l.b16 %v2175
        %v2592 = vunpack.c.l.b16 %v2176
        %v2593 = vunpack.c.l.b16 %v2177
        %v2594 = vunpack.c.l.b16 %v2178
        %v2595 = vunpack.c.l.b16 %v2179
        %v2596 = vpack.c.b16 %v2581, %v2580
        %v2597 = vpack.c.b16 %v2583, %v2582
        %v2598 = vpack.c.b16 %v2585, %v2584
        %v2599 = vpack.c.b16 %v2587, %v2586
        %v2600 = vpack.c.b16 %v2589, %v2588
        %v2601 = vpack.c.b16 %v2591, %v2590
        %v2602 = vpack.c.b16 %v2593, %v2592
        %v2603 = vpack.c.b16 %v2595, %v2594
        %2612 = vmatprep.subr.bf16.mxu0 0
        %2613 = vmatpush1.bf16.msra.mxu0 %v2603
        %2614 = vmatprep.subr.bf16.mxu0 0
        %2615 = vmatpush1.bf16.msra.mxu0 %v2602
        %2616 = vmatprep.subr.bf16.mxu0 0
        %2617 = vmatpush1.bf16.msra.mxu0 %v2601
        %2618 = vmatprep.subr.bf16.mxu0 0
        %2619 = vmatpush1.bf16.msra.mxu0 %v2600
        %2620 = vmatprep.subr.bf16.mxu0 0
        %2621 = vmatpush1.bf16.msra.mxu0 %v2599
        %2622 = vmatprep.subr.bf16.mxu0 0
        %2623 = vmatpush1.bf16.msra.mxu0 %v2598
        %2624 = vmatprep.subr.bf16.mxu0 0
        %2625 = vmatpush1.bf16.msra.mxu0 %v2597
        %2626 = vmatprep.subr.bf16.mxu0 0
        %2627 = vmatpush1.bf16.msra.mxu0 %v2596
        %2628 = vmatprep.subr.bf16.mxu0 0
        %2629 = vmatpush2.bf16.msra.mxu0 0
        %2630 = vmatprep.subr.bf16.mxu0 0
        %2631 = vmatpush2.bf16.msra.mxu0 0
        %2632 = vmatprep.subr.bf16.mxu0 0
        %2633 = vmatpush2.bf16.msra.mxu0 0
        %2634 = vmatprep.subr.bf16.mxu0 0
        %2635 = vmatpush2.bf16.msra.mxu0 0
        %2636 = vmatprep.subr.bf16.mxu0 0
        %2637 = vmatpush2.bf16.msra.mxu0 0
        %2638 = vmatprep.subr.bf16.mxu0 0
        %2639 = vmatpush2.bf16.msra.mxu0 0
        %2640 = vmatprep.subr.bf16.mxu0 0
        %2641 = vmatpush2.bf16.msra.mxu0 0
        %2642 = vmatprep.subr.bf16.mxu0 0
        %2643 = vmatpush2.bf16.msra.mxu0 0
        %2644 = vmatprep.mubr.bf16.mxu0 0
        %2645 = vmatmul.mubr.bf16.gmra.mxu0 %v2118
        %v2646 = vpop.f32.mrf.mxu0
        %v2647 = vadd.f32 0.0, %v2646
        %v2648 = vpop.f32.mrf.mxu0
        %v2649 = vpop.f32.mrf.mxu0
        %v2650 = vpop.f32.mrf.mxu0
        %2651 = vdwg.mxu0
        %v2668 = vunpack.c.l.b16 %v2180
        %v2669 = vunpack.c.l.b16 %v2181
        %v2670 = vunpack.c.l.b16 %v2182
        %v2671 = vunpack.c.l.b16 %v2183
        %v2672 = vunpack.c.l.b16 %v2184
        %v2673 = vunpack.c.l.b16 %v2185
        %v2674 = vunpack.c.l.b16 %v2186
        %v2675 = vunpack.c.l.b16 %v2187
        %v2676 = vunpack.c.l.b16 %v2188
        %v2677 = vunpack.c.l.b16 %v2189
        %v2678 = vunpack.c.l.b16 %v2190
        %v2679 = vunpack.c.l.b16 %v2191
        %v2680 = vunpack.c.l.b16 %v2192
        %v2681 = vunpack.c.l.b16 %v2193
        %v2682 = vunpack.c.l.b16 %v2194
        %v2683 = vunpack.c.l.b16 %v2195
        %v2684 = vpack.c.b16 %v2669, %v2668
        %v2685 = vpack.c.b16 %v2671, %v2670
        %v2686 = vpack.c.b16 %v2673, %v2672
        %v2687 = vpack.c.b16 %v2675, %v2674
        %v2688 = vpack.c.b16 %v2677, %v2676
        %v2689 = vpack.c.b16 %v2679, %v2678
        %v2690 = vpack.c.b16 %v2681, %v2680
        %v2691 = vpack.c.b16 %v2683, %v2682
        %2700 = vmatprep.subr.bf16.mxu0 0
        %2701 = vmatpush1.bf16.msra.mxu0 %v2691
        %2702 = vmatprep.subr.bf16.mxu0 0
        %2703 = vmatpush1.bf16.msra.mxu0 %v2690
        %2704 = vmatprep.subr.bf16.mxu0 0
        %2705 = vmatpush1.bf16.msra.mxu0 %v2689
        %2706 = vmatprep.subr.bf16.mxu0 0
        %2707 = vmatpush1.bf16.msra.mxu0 %v2688
        %2708 = vmatprep.subr.bf16.mxu0 0
        %2709 = vmatpush1.bf16.msra.mxu0 %v2687
        %2710 = vmatprep.subr.bf16.mxu0 0
        %2711 = vmatpush1.bf16.msra.mxu0 %v2686
        %2712 = vmatprep.subr.bf16.mxu0 0
        %2713 = vmatpush1.bf16.msra.mxu0 %v2685
        %2714 = vmatprep.subr.bf16.mxu0 0
        %2715 = vmatpush1.bf16.msra.mxu0 %v2684
        %2716 = vmatprep.subr.bf16.mxu0 0
        %2717 = vmatpush2.bf16.msra.mxu0 0
        %2718 = vmatprep.subr.bf16.mxu0 0
        %2719 = vmatpush2.bf16.msra.mxu0 0
        %2720 = vmatprep.subr.bf16.mxu0 0
        %2721 = vmatpush2.bf16.msra.mxu0 0
        %2722 = vmatprep.subr.bf16.mxu0 0
        %2723 = vmatpush2.bf16.msra.mxu0 0
        %2724 = vmatprep.subr.bf16.mxu0 0
        %2725 = vmatpush2.bf16.msra.mxu0 0
        %2726 = vmatprep.subr.bf16.mxu0 0
        %2727 = vmatpush2.bf16.msra.mxu0 0
        %2728 = vmatprep.subr.bf16.mxu0 0
        %2729 = vmatpush2.bf16.msra.mxu0 0
        %2730 = vmatprep.subr.bf16.mxu0 0
        %2731 = vmatpush2.bf16.msra.mxu0 0
        %2732 = vmatprep.mubr.bf16.mxu0 0
        %2733 = vmatmul.mubr.bf16.gmra.mxu0 %v2119
        %v2734 = vpop.f32.mrf.mxu0
        %v2735 = vadd.f32 0.0, %v2734
        %v2736 = vpop.f32.mrf.mxu0
        %v2737 = vpop.f32.mrf.mxu0
        %v2738 = vpop.f32.mrf.mxu0
        %2739 = vdwg.mxu0
        %v2756 = vunpack.c.l.b16 %v2196
        %v2757 = vunpack.c.l.b16 %v2197
        %v2758 = vunpack.c.l.b16 %v2198
        %v2759 = vunpack.c.l.b16 %v2199
        %v2760 = vunpack.c.l.b16 %v2200
        %v2761 = vunpack.c.l.b16 %v2201
        %v2762 = vunpack.c.l.b16 %v2202
        %v2763 = vunpack.c.l.b16 %v2203
        %v2764 = vunpack.c.l.b16 %v2204
        %v2765 = vunpack.c.l.b16 %v2205
        %v2766 = vunpack.c.l.b16 %v2206
        %v2767 = vunpack.c.l.b16 %v2207
        %v2768 = vunpack.c.l.b16 %v2208
        %v2769 = vunpack.c.l.b16 %v2209
        %v2770 = vunpack.c.l.b16 %v2210
        %v2771 = vunpack.c.l.b16 %v2211
        %v2772 = vpack.c.b16 %v2757, %v2756
        %v2773 = vpack.c.b16 %v2759, %v2758
        %v2774 = vpack.c.b16 %v2761, %v2760
        %v2775 = vpack.c.b16 %v2763, %v2762
        %v2776 = vpack.c.b16 %v2765, %v2764
        %v2777 = vpack.c.b16 %v2767, %v2766
        %v2778 = vpack.c.b16 %v2769, %v2768
        %v2779 = vpack.c.b16 %v2771, %v2770
        %2788 = vmatprep.subr.bf16.mxu0 0
        %2789 = vmatpush1.bf16.msra.mxu0 %v2779
        %2790 = vmatprep.subr.bf16.mxu0 0
        %2791 = vmatpush1.bf16.msra.mxu0 %v2778
        %2792 = vmatprep.subr.bf16.mxu0 0
        %2793 = vmatpush1.bf16.msra.mxu0 %v2777
        %2794 = vmatprep.subr.bf16.mxu0 0
        %2795 = vmatpush1.bf16.msra.mxu0 %v2776
        %2796 = vmatprep.subr.bf16.mxu0 0
        %2797 = vmatpush1.bf16.msra.mxu0 %v2775
        %2798 = vmatprep.subr.bf16.mxu0 0
        %2799 = vmatpush1.bf16.msra.mxu0 %v2774
        %2800 = vmatprep.subr.bf16.mxu0 0
        %2801 = vmatpush1.bf16.msra.mxu0 %v2773
        %2802 = vmatprep.subr.bf16.mxu0 0
        %2803 = vmatpush1.bf16.msra.mxu0 %v2772
        %2804 = vmatprep.subr.bf16.mxu0 0
        %2805 = vmatpush2.bf16.msra.mxu0 0
        %2806 = vmatprep.subr.bf16.mxu0 0
        %2807 = vmatpush2.bf16.msra.mxu0 0
        %2808 = vmatprep.subr.bf16.mxu0 0
        %2809 = vmatpush2.bf16.msra.mxu0 0
        %2810 = vmatprep.subr.bf16.mxu0 0
        %2811 = vmatpush2.bf16.msra.mxu0 0
        %2812 = vmatprep.subr.bf16.mxu0 0
        %2813 = vmatpush2.bf16.msra.mxu0 0
        %2814 = vmatprep.subr.bf16.mxu0 0
        %2815 = vmatpush2.bf16.msra.mxu0 0
        %2816 = vmatprep.subr.bf16.mxu0 0
        %2817 = vmatpush2.bf16.msra.mxu0 0
        %2818 = vmatprep.subr.bf16.mxu0 0
        %2819 = vmatpush2.bf16.msra.mxu0 0
        %2820 = vmatprep.mubr.bf16.mxu0 0
        %2821 = vmatmul.mubr.bf16.gmra.mxu0 %v2120
        %v2822 = vpop.f32.mrf.mxu0
        %v2823 = vadd.f32 0.0, %v2822
        %v2824 = vpop.f32.mrf.mxu0
        %v2825 = vpop.f32.mrf.mxu0
        %v2826 = vpop.f32.mrf.mxu0
        %2827 = vdwg.mxu0
        %v2844 = vunpack.c.l.b16 %v2212
        %v2845 = vunpack.c.l.b16 %v2213
        %v2846 = vunpack.c.l.b16 %v2214
        %v2847 = vunpack.c.l.b16 %v2215
        %v2848 = vunpack.c.l.b16 %v2216
        %v2849 = vunpack.c.l.b16 %v2217
        %v2850 = vunpack.c.l.b16 %v2218
        %v2851 = vunpack.c.l.b16 %v2219
        %v2852 = vunpack.c.l.b16 %v2220
        %v2853 = vunpack.c.l.b16 %v2221
        %v2854 = vunpack.c.l.b16 %v2222
        %v2855 = vunpack.c.l.b16 %v2223
        %v2856 = vunpack.c.l.b16 %v2224
        %v2857 = vunpack.c.l.b16 %v2225
        %v2858 = vunpack.c.l.b16 %v2226
        %v2859 = vunpack.c.l.b16 %v2227
        %v2860 = vpack.c.b16 %v2845, %v2844
        %v2861 = vpack.c.b16 %v2847, %v2846
        %v2862 = vpack.c.b16 %v2849, %v2848
        %v2863 = vpack.c.b16 %v2851, %v2850
        %v2864 = vpack.c.b16 %v2853, %v2852
        %v2865 = vpack.c.b16 %v2855, %v2854
        %v2866 = vpack.c.b16 %v2857, %v2856
        %v2867 = vpack.c.b16 %v2859, %v2858
        %2876 = vmatprep.subr.bf16.mxu0 0
        %2877 = vmatpush1.bf16.msra.mxu0 %v2867
        %2878 = vmatprep.subr.bf16.mxu0 0
        %2879 = vmatpush1.bf16.msra.mxu0 %v2866
        %2880 = vmatprep.subr.bf16.mxu0 0
        %2881 = vmatpush1.bf16.msra.mxu0 %v2865
        %2882 = vmatprep.subr.bf16.mxu0 0
        %2883 = vmatpush1.bf16.msra.mxu0 %v2864
        %2884 = vmatprep.subr.bf16.mxu0 0
        %2885 = vmatpush1.bf16.msra.mxu0 %v2863
        %2886 = vmatprep.subr.bf16.mxu0 0
        %2887 = vmatpush1.bf16.msra.mxu0 %v2862
        %2888 = vmatprep.subr.bf16.mxu0 0
        %2889 = vmatpush1.bf16.msra.mxu0 %v2861
        %2890 = vmatprep.subr.bf16.mxu0 0
        %2891 = vmatpush1.bf16.msra.mxu0 %v2860
        %2892 = vmatprep.subr.bf16.mxu0 0
        %2893 = vmatpush2.bf16.msra.mxu0 0
        %2894 = vmatprep.subr.bf16.mxu0 0
        %2895 = vmatpush2.bf16.msra.mxu0 0
        %2896 = vmatprep.subr.bf16.mxu0 0
        %2897 = vmatpush2.bf16.msra.mxu0 0
        %2898 = vmatprep.subr.bf16.mxu0 0
        %2899 = vmatpush2.bf16.msra.mxu0 0
        %2900 = vmatprep.subr.bf16.mxu0 0
        %2901 = vmatpush2.bf16.msra.mxu0 0
        %2902 = vmatprep.subr.bf16.mxu0 0
        %2903 = vmatpush2.bf16.msra.mxu0 0
        %2904 = vmatprep.subr.bf16.mxu0 0
        %2905 = vmatpush2.bf16.msra.mxu0 0
        %2906 = vmatprep.subr.bf16.mxu0 0
        %2907 = vmatpush2.bf16.msra.mxu0 0
        %2908 = vmatprep.mubr.bf16.mxu0 0
        %2909 = vmatmul.mubr.bf16.gmra.mxu0 %v2121
        %v2910 = vpop.f32.mrf.mxu0
        %v2911 = vadd.f32 0.0, %v2910
        %v2912 = vpop.f32.mrf.mxu0
        %v2913 = vpop.f32.mrf.mxu0
        %v2914 = vpop.f32.mrf.mxu0
        %2915 = vdwg.mxu0
        %v2932 = vunpack.c.l.b16 %v2228
        %v2933 = vunpack.c.l.b16 %v2229
        %v2934 = vunpack.c.l.b16 %v2230
        %v2935 = vunpack.c.l.b16 %v2231
        %v2936 = vunpack.c.l.b16 %v2232
        %v2937 = vunpack.c.l.b16 %v2233
        %v2938 = vunpack.c.l.b16 %v2234
        %v2939 = vunpack.c.l.b16 %v2235
        %v2940 = vunpack.c.l.b16 %v2236
        %v2941 = vunpack.c.l.b16 %v2237
        %v2942 = vunpack.c.l.b16 %v2238
        %v2943 = vunpack.c.l.b16 %v2239
        %v2944 = vunpack.c.l.b16 %v2240
        %v2945 = vunpack.c.l.b16 %v2241
        %v2946 = vunpack.c.l.b16 %v2242
        %v2947 = vunpack.c.l.b16 %v2243
        %v2948 = vpack.c.b16 %v2933, %v2932
        %v2949 = vpack.c.b16 %v2935, %v2934
        %v2950 = vpack.c.b16 %v2937, %v2936
        %v2951 = vpack.c.b16 %v2939, %v2938
        %v2952 = vpack.c.b16 %v2941, %v2940
        %v2953 = vpack.c.b16 %v2943, %v2942
        %v2954 = vpack.c.b16 %v2945, %v2944
        %v2955 = vpack.c.b16 %v2947, %v2946
        %2964 = vmatprep.subr.bf16.mxu0 0
        %2965 = vmatpush1.bf16.msra.mxu0 %v2955
        %2966 = vmatprep.subr.bf16.mxu0 0
        %2967 = vmatpush1.bf16.msra.mxu0 %v2954
        %2968 = vmatprep.subr.bf16.mxu0 0
        %2969 = vmatpush1.bf16.msra.mxu0 %v2953
        %2970 = vmatprep.subr.bf16.mxu0 0
        %2971 = vmatpush1.bf16.msra.mxu0 %v2952
        %2972 = vmatprep.subr.bf16.mxu0 0
        %2973 = vmatpush1.bf16.msra.mxu0 %v2951
        %2974 = vmatprep.subr.bf16.mxu0 0
        %2975 = vmatpush1.bf16.msra.mxu0 %v2950
        %2976 = vmatprep.subr.bf16.mxu0 0
        %2977 = vmatpush1.bf16.msra.mxu0 %v2949
        %2978 = vmatprep.subr.bf16.mxu0 0
        %2979 = vmatpush1.bf16.msra.mxu0 %v2948
        %2980 = vmatprep.subr.bf16.mxu0 0
        %2981 = vmatpush2.bf16.msra.mxu0 0
        %2982 = vmatprep.subr.bf16.mxu0 0
        %2983 = vmatpush2.bf16.msra.mxu0 0
        %2984 = vmatprep.subr.bf16.mxu0 0
        %2985 = vmatpush2.bf16.msra.mxu0 0
        %2986 = vmatprep.subr.bf16.mxu0 0
        %2987 = vmatpush2.bf16.msra.mxu0 0
        %2988 = vmatprep.subr.bf16.mxu0 0
        %2989 = vmatpush2.bf16.msra.mxu0 0
        %2990 = vmatprep.subr.bf16.mxu0 0
        %2991 = vmatpush2.bf16.msra.mxu0 0
        %2992 = vmatprep.subr.bf16.mxu0 0
        %2993 = vmatpush2.bf16.msra.mxu0 0
        %2994 = vmatprep.subr.bf16.mxu0 0
        %2995 = vmatpush2.bf16.msra.mxu0 0
        %2996 = vmatprep.mubr.bf16.mxu0 0
        %2997 = vmatmul.mubr.bf16.gmra.mxu0 %v2122
        %v2998 = vpop.f32.mrf.mxu0
        %v2999 = vadd.f32 0.0, %v2998
        %v3000 = vpop.f32.mrf.mxu0
        %v3001 = vpop.f32.mrf.mxu0
        %v3002 = vpop.f32.mrf.mxu0
        %3003 = vdwg.mxu0
        %v3020 = vunpack.c.l.b16 %v2244
        %v3021 = vunpack.c.l.b16 %v2245
        %v3022 = vunpack.c.l.b16 %v2246
        %v3023 = vunpack.c.l.b16 %v2247
        %v3024 = vunpack.c.l.b16 %v2248
        %v3025 = vunpack.c.l.b16 %v2249
        %v3026 = vunpack.c.l.b16 %v2250
        %v3027 = vunpack.c.l.b16 %v2251
        %v3028 = vunpack.c.l.b16 %v2252
        %v3029 = vunpack.c.l.b16 %v2253
        %v3030 = vunpack.c.l.b16 %v2254
        %v3031 = vunpack.c.l.b16 %v2255
        %v3032 = vunpack.c.l.b16 %v2256
        %v3033 = vunpack.c.l.b16 %v2257
        %v3034 = vunpack.c.l.b16 %v2258
        %v3035 = vunpack.c.l.b16 %v2259
        %v3036 = vpack.c.b16 %v3021, %v3020
        %v3037 = vpack.c.b16 %v3023, %v3022
        %v3038 = vpack.c.b16 %v3025, %v3024
        %v3039 = vpack.c.b16 %v3027, %v3026
        %v3040 = vpack.c.b16 %v3029, %v3028
        %v3041 = vpack.c.b16 %v3031, %v3030
        %v3042 = vpack.c.b16 %v3033, %v3032
        %v3043 = vpack.c.b16 %v3035, %v3034
        %3052 = vmatprep.subr.bf16.mxu0 0
        %3053 = vmatpush1.bf16.msra.mxu0 %v3043
        %3054 = vmatprep.subr.bf16.mxu0 0
        %3055 = vmatpush1.bf16.msra.mxu0 %v3042
        %3056 = vmatprep.subr.bf16.mxu0 0
        %3057 = vmatpush1.bf16.msra.mxu0 %v3041
        %3058 = vmatprep.subr.bf16.mxu0 0
        %3059 = vmatpush1.bf16.msra.mxu0 %v3040
        %3060 = vmatprep.subr.bf16.mxu0 0
        %3061 = vmatpush1.bf16.msra.mxu0 %v3039
        %3062 = vmatprep.subr.bf16.mxu0 0
        %3063 = vmatpush1.bf16.msra.mxu0 %v3038
        %3064 = vmatprep.subr.bf16.mxu0 0
        %3065 = vmatpush1.bf16.msra.mxu0 %v3037
        %3066 = vmatprep.subr.bf16.mxu0 0
        %3067 = vmatpush1.bf16.msra.mxu0 %v3036
        %3068 = vmatprep.subr.bf16.mxu0 0
        %3069 = vmatpush2.bf16.msra.mxu0 0
        %3070 = vmatprep.subr.bf16.mxu0 0
        %3071 = vmatpush2.bf16.msra.mxu0 0
        %3072 = vmatprep.subr.bf16.mxu0 0
        %3073 = vmatpush2.bf16.msra.mxu0 0
        %3074 = vmatprep.subr.bf16.mxu0 0
        %3075 = vmatpush2.bf16.msra.mxu0 0
        %3076 = vmatprep.subr.bf16.mxu0 0
        %3077 = vmatpush2.bf16.msra.mxu0 0
        %3078 = vmatprep.subr.bf16.mxu0 0
        %3079 = vmatpush2.bf16.msra.mxu0 0
        %3080 = vmatprep.subr.bf16.mxu0 0
        %3081 = vmatpush2.bf16.msra.mxu0 0
        %3082 = vmatprep.subr.bf16.mxu0 0
        %3083 = vmatpush2.bf16.msra.mxu0 0
        %3084 = vmatprep.mubr.bf16.mxu0 0
        %3085 = vmatmul.mubr.bf16.gmra.mxu0 %v2123
        %v3086 = vpop.f32.mrf.mxu0
        %v3087 = vadd.f32 0.0, %v3086
        %v3088 = vpop.f32.mrf.mxu0
        %v3089 = vpop.f32.mrf.mxu0
        %v3090 = vpop.f32.mrf.mxu0
        %3091 = vdwg.mxu0
        %v3108 = vunpack.c.l.b16 %v2260
        %v3109 = vunpack.c.l.b16 %v2261
        %v3110 = vunpack.c.l.b16 %v2262
        %v3111 = vunpack.c.l.b16 %v2263
        %v3112 = vunpack.c.l.b16 %v2264
        %v3113 = vunpack.c.l.b16 %v2265
        %v3114 = vunpack.c.l.b16 %v2266
        %v3115 = vunpack.c.l.b16 %v2267
        %v3116 = vunpack.c.l.b16 %v2268
        %v3117 = vunpack.c.l.b16 %v2269
        %v3118 = vunpack.c.l.b16 %v2270
        %v3119 = vunpack.c.l.b16 %v2271
        %v3120 = vunpack.c.l.b16 %v2272
        %v3121 = vunpack.c.l.b16 %v2273
        %v3122 = vunpack.c.l.b16 %v2274
        %v3123 = vunpack.c.l.b16 %v2275
        %v3124 = vpack.c.b16 %v3109, %v3108
        %v3125 = vpack.c.b16 %v3111, %v3110
        %v3126 = vpack.c.b16 %v3113, %v3112
        %v3127 = vpack.c.b16 %v3115, %v3114
        %v3128 = vpack.c.b16 %v3117, %v3116
        %v3129 = vpack.c.b16 %v3119, %v3118
        %v3130 = vpack.c.b16 %v3121, %v3120
        %v3131 = vpack.c.b16 %v3123, %v3122
        %3140 = vmatprep.subr.bf16.mxu0 0
        %3141 = vmatpush1.bf16.msra.mxu0 %v3131
        %3142 = vmatprep.subr.bf16.mxu0 0
        %3143 = vmatpush1.bf16.msra.mxu0 %v3130
        %3144 = vmatprep.subr.bf16.mxu0 0
        %3145 = vmatpush1.bf16.msra.mxu0 %v3129
        %3146 = vmatprep.subr.bf16.mxu0 0
        %3147 = vmatpush1.bf16.msra.mxu0 %v3128
        %3148 = vmatprep.subr.bf16.mxu0 0
        %3149 = vmatpush1.bf16.msra.mxu0 %v3127
        %3150 = vmatprep.subr.bf16.mxu0 0
        %3151 = vmatpush1.bf16.msra.mxu0 %v3126
        %3152 = vmatprep.subr.bf16.mxu0 0
        %3153 = vmatpush1.bf16.msra.mxu0 %v3125
        %3154 = vmatprep.subr.bf16.mxu0 0
        %3155 = vmatpush1.bf16.msra.mxu0 %v3124
        %3156 = vmatprep.subr.bf16.mxu0 0
        %3157 = vmatpush2.bf16.msra.mxu0 0
        %3158 = vmatprep.subr.bf16.mxu0 0
        %3159 = vmatpush2.bf16.msra.mxu0 0
        %3160 = vmatprep.subr.bf16.mxu0 0
        %3161 = vmatpush2.bf16.msra.mxu0 0
        %3162 = vmatprep.subr.bf16.mxu0 0
        %3163 = vmatpush2.bf16.msra.mxu0 0
        %3164 = vmatprep.subr.bf16.mxu0 0
        %3165 = vmatpush2.bf16.msra.mxu0 0
        %3166 = vmatprep.subr.bf16.mxu0 0
        %3167 = vmatpush2.bf16.msra.mxu0 0
        %3168 = vmatprep.subr.bf16.mxu0 0
        %3169 = vmatpush2.bf16.msra.mxu0 0
        %3170 = vmatprep.subr.bf16.mxu0 0
        %3171 = vmatpush2.bf16.msra.mxu0 0
        %3172 = vmatprep.mubr.bf16.mxu0 0
        %3173 = vmatmul.mubr.bf16.gmra.mxu0 %v2124
        %v3174 = vpop.f32.mrf.mxu0
        %v3175 = vadd.f32 0.0, %v3174
        %v3176 = vpop.f32.mrf.mxu0
        %v3177 = vpop.f32.mrf.mxu0
        %v3178 = vpop.f32.mrf.mxu0
        %3179 = vdwg.mxu0
        %v3196 = vunpack.c.l.b16 %v2276
        %v3197 = vunpack.c.l.b16 %v2277
        %v3198 = vunpack.c.l.b16 %v2278
        %v3199 = vunpack.c.l.b16 %v2279
        %v3200 = vunpack.c.l.b16 %v2280
        %v3201 = vunpack.c.l.b16 %v2281
        %v3202 = vunpack.c.l.b16 %v2282
        %v3203 = vunpack.c.l.b16 %v2283
        %v3204 = vunpack.c.l.b16 %v2284
        %v3205 = vunpack.c.l.b16 %v2285
        %v3206 = vunpack.c.l.b16 %v2286
        %v3207 = vunpack.c.l.b16 %v2287
        %v3208 = vunpack.c.l.b16 %v2288
        %v3209 = vunpack.c.l.b16 %v2289
        %v3210 = vunpack.c.l.b16 %v2290
        %v3211 = vunpack.c.l.b16 %v2291
        %v3212 = vpack.c.b16 %v3197, %v3196
        %v3213 = vpack.c.b16 %v3199, %v3198
        %v3214 = vpack.c.b16 %v3201, %v3200
        %v3215 = vpack.c.b16 %v3203, %v3202
        %v3216 = vpack.c.b16 %v3205, %v3204
        %v3217 = vpack.c.b16 %v3207, %v3206
        %v3218 = vpack.c.b16 %v3209, %v3208
        %v3219 = vpack.c.b16 %v3211, %v3210
        %3228 = vmatprep.subr.bf16.mxu0 0
        %3229 = vmatpush1.bf16.msra.mxu0 %v3219
        %3230 = vmatprep.subr.bf16.mxu0 0
        %3231 = vmatpush1.bf16.msra.mxu0 %v3218
        %3232 = vmatprep.subr.bf16.mxu0 0
        %3233 = vmatpush1.bf16.msra.mxu0 %v3217
        %3234 = vmatprep.subr.bf16.mxu0 0
        %3235 = vmatpush1.bf16.msra.mxu0 %v3216
        %3236 = vmatprep.subr.bf16.mxu0 0
        %3237 = vmatpush1.bf16.msra.mxu0 %v3215
        %3238 = vmatprep.subr.bf16.mxu0 0
        %3239 = vmatpush1.bf16.msra.mxu0 %v3214
        %3240 = vmatprep.subr.bf16.mxu0 0
        %3241 = vmatpush1.bf16.msra.mxu0 %v3213
        %3242 = vmatprep.subr.bf16.mxu0 0
        %3243 = vmatpush1.bf16.msra.mxu0 %v3212
        %3244 = vmatprep.subr.bf16.mxu0 0
        %3245 = vmatpush2.bf16.msra.mxu0 0
        %3246 = vmatprep.subr.bf16.mxu0 0
        %3247 = vmatpush2.bf16.msra.mxu0 0
        %3248 = vmatprep.subr.bf16.mxu0 0
        %3249 = vmatpush2.bf16.msra.mxu0 0
        %3250 = vmatprep.subr.bf16.mxu0 0
        %3251 = vmatpush2.bf16.msra.mxu0 0
        %3252 = vmatprep.subr.bf16.mxu0 0
        %3253 = vmatpush2.bf16.msra.mxu0 0
        %3254 = vmatprep.subr.bf16.mxu0 0
        %3255 = vmatpush2.bf16.msra.mxu0 0
        %3256 = vmatprep.subr.bf16.mxu0 0
        %3257 = vmatpush2.bf16.msra.mxu0 0
        %3258 = vmatprep.subr.bf16.mxu0 0
        %3259 = vmatpush2.bf16.msra.mxu0 0
        %3260 = vmatprep.mubr.bf16.mxu0 0
        %3261 = vmatmul.mubr.bf16.gmra.mxu0 %v2125
        %v3262 = vpop.f32.mrf.mxu0
        %v3263 = vadd.f32 0.0, %v3262
        %v3264 = vpop.f32.mrf.mxu0
        %v3265 = vpop.f32.mrf.mxu0
        %v3266 = vpop.f32.mrf.mxu0
        %3267 = vdwg.mxu0
        %v3284 = vunpack.c.l.b16 %v2292
        %v3285 = vunpack.c.l.b16 %v2293
        %v3286 = vunpack.c.l.b16 %v2294
        %v3287 = vunpack.c.l.b16 %v2295
        %v3288 = vunpack.c.l.b16 %v2296
        %v3289 = vunpack.c.l.b16 %v2297
        %v3290 = vunpack.c.l.b16 %v2298
        %v3291 = vunpack.c.l.b16 %v2299
        %v3292 = vunpack.c.l.b16 %v2300
        %v3293 = vunpack.c.l.b16 %v2301
        %v3294 = vunpack.c.l.b16 %v2302
        %v3295 = vunpack.c.l.b16 %v2303
        %v3296 = vunpack.c.l.b16 %v2304
        %v3297 = vunpack.c.l.b16 %v2305
        %v3298 = vunpack.c.l.b16 %v2306
        %v3299 = vunpack.c.l.b16 %v2307
        %v3300 = vpack.c.b16 %v3285, %v3284
        %v3301 = vpack.c.b16 %v3287, %v3286
        %v3302 = vpack.c.b16 %v3289, %v3288
        %v3303 = vpack.c.b16 %v3291, %v3290
        %v3304 = vpack.c.b16 %v3293, %v3292
        %v3305 = vpack.c.b16 %v3295, %v3294
        %v3306 = vpack.c.b16 %v3297, %v3296
        %v3307 = vpack.c.b16 %v3299, %v3298
        %3316 = vmatprep.subr.bf16.mxu0 0
        %3317 = vmatpush1.bf16.msra.mxu0 %v3307
        %3318 = vmatprep.subr.bf16.mxu0 0
        %3319 = vmatpush1.bf16.msra.mxu0 %v3306
        %3320 = vmatprep.subr.bf16.mxu0 0
        %3321 = vmatpush1.bf16.msra.mxu0 %v3305
        %3322 = vmatprep.subr.bf16.mxu0 0
        %3323 = vmatpush1.bf16.msra.mxu0 %v3304
        %3324 = vmatprep.subr.bf16.mxu0 0
        %3325 = vmatpush1.bf16.msra.mxu0 %v3303
        %3326 = vmatprep.subr.bf16.mxu0 0
        %3327 = vmatpush1.bf16.msra.mxu0 %v3302
        %3328 = vmatprep.subr.bf16.mxu0 0
        %3329 = vmatpush1.bf16.msra.mxu0 %v3301
        %3330 = vmatprep.subr.bf16.mxu0 0
        %3331 = vmatpush1.bf16.msra.mxu0 %v3300
        %3332 = vmatprep.subr.bf16.mxu0 0
        %3333 = vmatpush2.bf16.msra.mxu0 0
        %3334 = vmatprep.subr.bf16.mxu0 0
        %3335 = vmatpush2.bf16.msra.mxu0 0
        %3336 = vmatprep.subr.bf16.mxu0 0
        %3337 = vmatpush2.bf16.msra.mxu0 0
        %3338 = vmatprep.subr.bf16.mxu0 0
        %3339 = vmatpush2.bf16.msra.mxu0 0
        %3340 = vmatprep.subr.bf16.mxu0 0
        %3341 = vmatpush2.bf16.msra.mxu0 0
        %3342 = vmatprep.subr.bf16.mxu0 0
        %3343 = vmatpush2.bf16.msra.mxu0 0
        %3344 = vmatprep.subr.bf16.mxu0 0
        %3345 = vmatpush2.bf16.msra.mxu0 0
        %3346 = vmatprep.subr.bf16.mxu0 0
        %3347 = vmatpush2.bf16.msra.mxu0 0
        %3348 = vmatprep.mubr.bf16.mxu0 0
        %3349 = vmatmul.mubr.bf16.gmra.mxu0 %v2126
        %v3350 = vpop.f32.mrf.mxu0
        %v3351 = vadd.f32 0.0, %v3350
        %v3352 = vpop.f32.mrf.mxu0
        %v3353 = vpop.f32.mrf.mxu0
        %v3354 = vpop.f32.mrf.mxu0
        %3355 = vdwg.mxu0
        %v3372 = vunpack.c.l.b16 %v2308
        %v3373 = vunpack.c.l.b16 %v2309
        %v3374 = vunpack.c.l.b16 %v2310
        %v3375 = vunpack.c.l.b16 %v2311
        %v3376 = vunpack.c.l.b16 %v2312
        %v3377 = vunpack.c.l.b16 %v2313
        %v3378 = vunpack.c.l.b16 %v2314
        %v3379 = vunpack.c.l.b16 %v2315
        %v3380 = vunpack.c.l.b16 %v2316
        %v3381 = vunpack.c.l.b16 %v2317
        %v3382 = vunpack.c.l.b16 %v2318
        %v3383 = vunpack.c.l.b16 %v2319
        %v3384 = vunpack.c.l.b16 %v2320
        %v3385 = vunpack.c.l.b16 %v2321
        %v3386 = vunpack.c.l.b16 %v2322
        %v3387 = vunpack.c.l.b16 %v2323
        %v3388 = vpack.c.b16 %v3373, %v3372
        %v3389 = vpack.c.b16 %v3375, %v3374
        %v3390 = vpack.c.b16 %v3377, %v3376
        %v3391 = vpack.c.b16 %v3379, %v3378
        %v3392 = vpack.c.b16 %v3381, %v3380
        %v3393 = vpack.c.b16 %v3383, %v3382
        %v3394 = vpack.c.b16 %v3385, %v3384
        %v3395 = vpack.c.b16 %v3387, %v3386
        %3404 = vmatprep.subr.bf16.mxu0 0
        %3405 = vmatpush1.bf16.msra.mxu0 %v3395
        %3406 = vmatprep.subr.bf16.mxu0 0
        %3407 = vmatpush1.bf16.msra.mxu0 %v3394
        %3408 = vmatprep.subr.bf16.mxu0 0
        %3409 = vmatpush1.bf16.msra.mxu0 %v3393
        %3410 = vmatprep.subr.bf16.mxu0 0
        %3411 = vmatpush1.bf16.msra.mxu0 %v3392
        %3412 = vmatprep.subr.bf16.mxu0 0
        %3413 = vmatpush1.bf16.msra.mxu0 %v3391
        %3414 = vmatprep.subr.bf16.mxu0 0
        %3415 = vmatpush1.bf16.msra.mxu0 %v3390
        %3416 = vmatprep.subr.bf16.mxu0 0
        %3417 = vmatpush1.bf16.msra.mxu0 %v3389
        %3418 = vmatprep.subr.bf16.mxu0 0
        %3419 = vmatpush1.bf16.msra.mxu0 %v3388
        %3420 = vmatprep.subr.bf16.mxu0 0
        %3421 = vmatpush2.bf16.msra.mxu0 0
        %3422 = vmatprep.subr.bf16.mxu0 0
        %3423 = vmatpush2.bf16.msra.mxu0 0
        %3424 = vmatprep.subr.bf16.mxu0 0
        %3425 = vmatpush2.bf16.msra.mxu0 0
        %3426 = vmatprep.subr.bf16.mxu0 0
        %3427 = vmatpush2.bf16.msra.mxu0 0
        %3428 = vmatprep.subr.bf16.mxu0 0
        %3429 = vmatpush2.bf16.msra.mxu0 0
        %3430 = vmatprep.subr.bf16.mxu0 0
        %3431 = vmatpush2.bf16.msra.mxu0 0
        %3432 = vmatprep.subr.bf16.mxu0 0
        %3433 = vmatpush2.bf16.msra.mxu0 0
        %3434 = vmatprep.subr.bf16.mxu0 0
        %3435 = vmatpush2.bf16.msra.mxu0 0
        %3436 = vmatprep.mubr.bf16.mxu0 0
        %3437 = vmatmul.mubr.bf16.gmra.mxu0 %v2127
        %v3438 = vpop.f32.mrf.mxu0
        %v3439 = vadd.f32 0.0, %v3438
        %v3440 = vpop.f32.mrf.mxu0
        %v3441 = vpop.f32.mrf.mxu0
        %v3442 = vpop.f32.mrf.mxu0
        %3443 = vdwg.mxu0
        %v3460 = vunpack.c.l.b16 %v2324
        %v3461 = vunpack.c.l.b16 %v2325
        %v3462 = vunpack.c.l.b16 %v2326
        %v3463 = vunpack.c.l.b16 %v2327
        %v3464 = vunpack.c.l.b16 %v2328
        %v3465 = vunpack.c.l.b16 %v2329
        %v3466 = vunpack.c.l.b16 %v2330
        %v3467 = vunpack.c.l.b16 %v2331
        %v3468 = vunpack.c.l.b16 %v2332
        %v3469 = vunpack.c.l.b16 %v2333
        %v3470 = vunpack.c.l.b16 %v2334
        %v3471 = vunpack.c.l.b16 %v2335
        %v3472 = vunpack.c.l.b16 %v2336
        %v3473 = vunpack.c.l.b16 %v2337
        %v3474 = vunpack.c.l.b16 %v2338
        %v3475 = vunpack.c.l.b16 %v2339
        %v3476 = vpack.c.b16 %v3461, %v3460
        %v3477 = vpack.c.b16 %v3463, %v3462
        %v3478 = vpack.c.b16 %v3465, %v3464
        %v3479 = vpack.c.b16 %v3467, %v3466
        %v3480 = vpack.c.b16 %v3469, %v3468
        %v3481 = vpack.c.b16 %v3471, %v3470
        %v3482 = vpack.c.b16 %v3473, %v3472
        %v3483 = vpack.c.b16 %v3475, %v3474
        %3492 = vmatprep.subr.bf16.mxu0 0
        %3493 = vmatpush1.bf16.msra.mxu0 %v3483
        %3494 = vmatprep.subr.bf16.mxu0 0
        %3495 = vmatpush1.bf16.msra.mxu0 %v3482
        %3496 = vmatprep.subr.bf16.mxu0 0
        %3497 = vmatpush1.bf16.msra.mxu0 %v3481
        %3498 = vmatprep.subr.bf16.mxu0 0
        %3499 = vmatpush1.bf16.msra.mxu0 %v3480
        %3500 = vmatprep.subr.bf16.mxu0 0
        %3501 = vmatpush1.bf16.msra.mxu0 %v3479
        %3502 = vmatprep.subr.bf16.mxu0 0
        %3503 = vmatpush1.bf16.msra.mxu0 %v3478
        %3504 = vmatprep.subr.bf16.mxu0 0
        %3505 = vmatpush1.bf16.msra.mxu0 %v3477
        %3506 = vmatprep.subr.bf16.mxu0 0
        %3507 = vmatpush1.bf16.msra.mxu0 %v3476
        %3508 = vmatprep.subr.bf16.mxu0 0
        %3509 = vmatpush2.bf16.msra.mxu0 0
        %3510 = vmatprep.subr.bf16.mxu0 0
        %3511 = vmatpush2.bf16.msra.mxu0 0
        %3512 = vmatprep.subr.bf16.mxu0 0
        %3513 = vmatpush2.bf16.msra.mxu0 0
        %3514 = vmatprep.subr.bf16.mxu0 0
        %3515 = vmatpush2.bf16.msra.mxu0 0
        %3516 = vmatprep.subr.bf16.mxu0 0
        %3517 = vmatpush2.bf16.msra.mxu0 0
        %3518 = vmatprep.subr.bf16.mxu0 0
        %3519 = vmatpush2.bf16.msra.mxu0 0
        %3520 = vmatprep.subr.bf16.mxu0 0
        %3521 = vmatpush2.bf16.msra.mxu0 0
        %3522 = vmatprep.subr.bf16.mxu0 0
        %3523 = vmatpush2.bf16.msra.mxu0 0
        %3524 = vmatprep.mubr.bf16.mxu0 0
        %3525 = vmatmul.mubr.bf16.gmra.mxu0 %v2128
        %v3526 = vpop.f32.mrf.mxu0
        %v3527 = vadd.f32 0.0, %v3526
        %v3528 = vpop.f32.mrf.mxu0
        %v3529 = vpop.f32.mrf.mxu0
        %v3530 = vpop.f32.mrf.mxu0
        %3531 = vdwg.mxu0
        %v3548 = vunpack.c.l.b16 %v2340
        %v3549 = vunpack.c.l.b16 %v2341
        %v3550 = vunpack.c.l.b16 %v2342
        %v3551 = vunpack.c.l.b16 %v2343
        %v3552 = vunpack.c.l.b16 %v2344
        %v3553 = vunpack.c.l.b16 %v2345
        %v3554 = vunpack.c.l.b16 %v2346
        %v3555 = vunpack.c.l.b16 %v2347
        %v3556 = vunpack.c.l.b16 %v2348
        %v3557 = vunpack.c.l.b16 %v2349
        %v3558 = vunpack.c.l.b16 %v2350
        %v3559 = vunpack.c.l.b16 %v2351
        %v3560 = vunpack.c.l.b16 %v2352
        %v3561 = vunpack.c.l.b16 %v2353
        %v3562 = vunpack.c.l.b16 %v2354
        %v3563 = vunpack.c.l.b16 %v2355
        %v3564 = vpack.c.b16 %v3549, %v3548
        %v3565 = vpack.c.b16 %v3551, %v3550
        %v3566 = vpack.c.b16 %v3553, %v3552
        %v3567 = vpack.c.b16 %v3555, %v3554
        %v3568 = vpack.c.b16 %v3557, %v3556
        %v3569 = vpack.c.b16 %v3559, %v3558
        %v3570 = vpack.c.b16 %v3561, %v3560
        %v3571 = vpack.c.b16 %v3563, %v3562
        %3580 = vmatprep.subr.bf16.mxu0 0
        %3581 = vmatpush1.bf16.msra.mxu0 %v3571
        %3582 = vmatprep.subr.bf16.mxu0 0
        %3583 = vmatpush1.bf16.msra.mxu0 %v3570
        %3584 = vmatprep.subr.bf16.mxu0 0
        %3585 = vmatpush1.bf16.msra.mxu0 %v3569
        %3586 = vmatprep.subr.bf16.mxu0 0
        %3587 = vmatpush1.bf16.msra.mxu0 %v3568
        %3588 = vmatprep.subr.bf16.mxu0 0
        %3589 = vmatpush1.bf16.msra.mxu0 %v3567
        %3590 = vmatprep.subr.bf16.mxu0 0
        %3591 = vmatpush1.bf16.msra.mxu0 %v3566
        %3592 = vmatprep.subr.bf16.mxu0 0
        %3593 = vmatpush1.bf16.msra.mxu0 %v3565
        %3594 = vmatprep.subr.bf16.mxu0 0
        %3595 = vmatpush1.bf16.msra.mxu0 %v3564
        %3596 = vmatprep.subr.bf16.mxu0 0
        %3597 = vmatpush2.bf16.msra.mxu0 0
        %3598 = vmatprep.subr.bf16.mxu0 0
        %3599 = vmatpush2.bf16.msra.mxu0 0
        %3600 = vmatprep.subr.bf16.mxu0 0
        %3601 = vmatpush2.bf16.msra.mxu0 0
        %3602 = vmatprep.subr.bf16.mxu0 0
        %3603 = vmatpush2.bf16.msra.mxu0 0
        %3604 = vmatprep.subr.bf16.mxu0 0
        %3605 = vmatpush2.bf16.msra.mxu0 0
        %3606 = vmatprep.subr.bf16.mxu0 0
        %3607 = vmatpush2.bf16.msra.mxu0 0
        %3608 = vmatprep.subr.bf16.mxu0 0
        %3609 = vmatpush2.bf16.msra.mxu0 0
        %3610 = vmatprep.subr.bf16.mxu0 0
        %3611 = vmatpush2.bf16.msra.mxu0 0
        %3612 = vmatprep.mubr.bf16.mxu0 0
        %3613 = vmatmul.mubr.bf16.gmra.mxu0 %v2129
        %v3614 = vpop.f32.mrf.mxu0
        %v3615 = vadd.f32 0.0, %v3614
        %v3616 = vpop.f32.mrf.mxu0
        %v3617 = vpop.f32.mrf.mxu0
        %v3618 = vpop.f32.mrf.mxu0
        %3619 = vdwg.mxu0
        %v3636 = vunpack.c.l.b16 %v2356
        %v3637 = vunpack.c.l.b16 %v2357
        %v3638 = vunpack.c.l.b16 %v2358
        %v3639 = vunpack.c.l.b16 %v2359
        %v3640 = vunpack.c.l.b16 %v2360
        %v3641 = vunpack.c.l.b16 %v2361
        %v3642 = vunpack.c.l.b16 %v2362
        %v3643 = vunpack.c.l.b16 %v2363
        %v3644 = vunpack.c.l.b16 %v2364
        %v3645 = vunpack.c.l.b16 %v2365
        %v3646 = vunpack.c.l.b16 %v2366
        %v3647 = vunpack.c.l.b16 %v2367
        %v3648 = vunpack.c.l.b16 %v2368
        %v3649 = vunpack.c.l.b16 %v2369
        %v3650 = vunpack.c.l.b16 %v2370
        %v3651 = vunpack.c.l.b16 %v2371
        %v3652 = vpack.c.b16 %v3637, %v3636
        %v3653 = vpack.c.b16 %v3639, %v3638
        %v3654 = vpack.c.b16 %v3641, %v3640
        %v3655 = vpack.c.b16 %v3643, %v3642
        %v3656 = vpack.c.b16 %v3645, %v3644
        %v3657 = vpack.c.b16 %v3647, %v3646
        %v3658 = vpack.c.b16 %v3649, %v3648
        %v3659 = vpack.c.b16 %v3651, %v3650
        %3668 = vmatprep.subr.bf16.mxu0 0
        %3669 = vmatpush1.bf16.msra.mxu0 %v3659
        %3670 = vmatprep.subr.bf16.mxu0 0
        %3671 = vmatpush1.bf16.msra.mxu0 %v3658
        %3672 = vmatprep.subr.bf16.mxu0 0
        %3673 = vmatpush1.bf16.msra.mxu0 %v3657
        %3674 = vmatprep.subr.bf16.mxu0 0
        %3675 = vmatpush1.bf16.msra.mxu0 %v3656
        %3676 = vmatprep.subr.bf16.mxu0 0
        %3677 = vmatpush1.bf16.msra.mxu0 %v3655
        %3678 = vmatprep.subr.bf16.mxu0 0
        %3679 = vmatpush1.bf16.msra.mxu0 %v3654
        %3680 = vmatprep.subr.bf16.mxu0 0
        %3681 = vmatpush1.bf16.msra.mxu0 %v3653
        %3682 = vmatprep.subr.bf16.mxu0 0
        %3683 = vmatpush1.bf16.msra.mxu0 %v3652
        %3684 = vmatprep.subr.bf16.mxu0 0
        %3685 = vmatpush2.bf16.msra.mxu0 0
        %3686 = vmatprep.subr.bf16.mxu0 0
        %3687 = vmatpush2.bf16.msra.mxu0 0
        %3688 = vmatprep.subr.bf16.mxu0 0
        %3689 = vmatpush2.bf16.msra.mxu0 0
        %3690 = vmatprep.subr.bf16.mxu0 0
        %3691 = vmatpush2.bf16.msra.mxu0 0
        %3692 = vmatprep.subr.bf16.mxu0 0
        %3693 = vmatpush2.bf16.msra.mxu0 0
        %3694 = vmatprep.subr.bf16.mxu0 0
        %3695 = vmatpush2.bf16.msra.mxu0 0
        %3696 = vmatprep.subr.bf16.mxu0 0
        %3697 = vmatpush2.bf16.msra.mxu0 0
        %3698 = vmatprep.subr.bf16.mxu0 0
        %3699 = vmatpush2.bf16.msra.mxu0 0
        %3700 = vmatprep.mubr.bf16.mxu0 0
        %3701 = vmatmul.mubr.bf16.gmra.mxu0 %v2130
        %v3702 = vpop.f32.mrf.mxu0
        %v3703 = vadd.f32 0.0, %v3702
        %v3704 = vpop.f32.mrf.mxu0
        %v3705 = vpop.f32.mrf.mxu0
        %v3706 = vpop.f32.mrf.mxu0
        %3707 = vdwg.mxu0
        %v3724 = vunpack.c.l.b16 %v2372
        %v3725 = vunpack.c.l.b16 %v2373
        %v3726 = vunpack.c.l.b16 %v2374
        %v3727 = vunpack.c.l.b16 %v2375
        %v3728 = vunpack.c.l.b16 %v2376
        %v3729 = vunpack.c.l.b16 %v2377
        %v3730 = vunpack.c.l.b16 %v2378
        %v3731 = vunpack.c.l.b16 %v2379
        %v3732 = vunpack.c.l.b16 %v2380
        %v3733 = vunpack.c.l.b16 %v2381
        %v3734 = vunpack.c.l.b16 %v2382
        %v3735 = vunpack.c.l.b16 %v2383
        %v3736 = vunpack.c.l.b16 %v2384
        %v3737 = vunpack.c.l.b16 %v2385
        %v3738 = vunpack.c.l.b16 %v2386
        %v3739 = vunpack.c.l.b16 %v2387
        %v3740 = vpack.c.b16 %v3725, %v3724
        %v3741 = vpack.c.b16 %v3727, %v3726
        %v3742 = vpack.c.b16 %v3729, %v3728
        %v3743 = vpack.c.b16 %v3731, %v3730
        %v3744 = vpack.c.b16 %v3733, %v3732
        %v3745 = vpack.c.b16 %v3735, %v3734
        %v3746 = vpack.c.b16 %v3737, %v3736
        %v3747 = vpack.c.b16 %v3739, %v3738
        %3756 = vmatprep.subr.bf16.mxu0 0
        %3757 = vmatpush1.bf16.msra.mxu0 %v3747
        %3758 = vmatprep.subr.bf16.mxu0 0
        %3759 = vmatpush1.bf16.msra.mxu0 %v3746
        %3760 = vmatprep.subr.bf16.mxu0 0
        %3761 = vmatpush1.bf16.msra.mxu0 %v3745
        %3762 = vmatprep.subr.bf16.mxu0 0
        %3763 = vmatpush1.bf16.msra.mxu0 %v3744
        %3764 = vmatprep.subr.bf16.mxu0 0
        %3765 = vmatpush1.bf16.msra.mxu0 %v3743
        %3766 = vmatprep.subr.bf16.mxu0 0
        %3767 = vmatpush1.bf16.msra.mxu0 %v3742
        %3768 = vmatprep.subr.bf16.mxu0 0
        %3769 = vmatpush1.bf16.msra.mxu0 %v3741
        %3770 = vmatprep.subr.bf16.mxu0 0
        %3771 = vmatpush1.bf16.msra.mxu0 %v3740
        %3772 = vmatprep.subr.bf16.mxu0 0
        %3773 = vmatpush2.bf16.msra.mxu0 0
        %3774 = vmatprep.subr.bf16.mxu0 0
        %3775 = vmatpush2.bf16.msra.mxu0 0
        %3776 = vmatprep.subr.bf16.mxu0 0
        %3777 = vmatpush2.bf16.msra.mxu0 0
        %3778 = vmatprep.subr.bf16.mxu0 0
        %3779 = vmatpush2.bf16.msra.mxu0 0
        %3780 = vmatprep.subr.bf16.mxu0 0
        %3781 = vmatpush2.bf16.msra.mxu0 0
        %3782 = vmatprep.subr.bf16.mxu0 0
        %3783 = vmatpush2.bf16.msra.mxu0 0
        %3784 = vmatprep.subr.bf16.mxu0 0
        %3785 = vmatpush2.bf16.msra.mxu0 0
        %3786 = vmatprep.subr.bf16.mxu0 0
        %3787 = vmatpush2.bf16.msra.mxu0 0
        %3788 = vmatprep.mubr.bf16.mxu0 0
        %3789 = vmatmul.mubr.bf16.gmra.mxu0 %v2131
        %v3790 = vpop.f32.mrf.mxu0
        %v3791 = vadd.f32 0.0, %v3790
        %v3792 = vpop.f32.mrf.mxu0
        %v3793 = vpop.f32.mrf.mxu0
        %v3794 = vpop.f32.mrf.mxu0
        %3795 = vdwg.mxu0
        %v3796 = vcombine.low %v2471, %v2647
        %v3798 = vunpack.c.l.s4 1983009808
        %v3799 = vunpack.c.0.s8 %v3798
        %v3800 = vlaneseq
        %v3801 = vshrl.u32 %v3800, 7
        %v3802 = vsub.s32 %v3799, %v3801
        %v3803 = vrot.slane %v3796, %v3802
        %v3804 = vcombine.low %v2559, %v2735
        %v3806 = vunpack.c.l.s4 1983009808
        %v3807 = vunpack.c.0.s8 %v3806
        %v3808 = vlaneseq
        %v3809 = vshrl.u32 %v3808, 7
        %v3810 = vsub.s32 %v3807, %v3809
        %v3811 = vrot.slane %v3804, %v3810
        %v3812 = vcombine.low %v2823, %v2999
        %v3814 = vunpack.c.l.s4 1983009808
        %v3815 = vunpack.c.0.s8 %v3814
        %v3816 = vlaneseq
        %v3817 = vshrl.u32 %v3816, 7
        %v3818 = vsub.s32 %v3815, %v3817
        %v3819 = vrot.slane %v3812, %v3818
        %v3820 = vcombine.low %v2911, %v3087
        %v3822 = vunpack.c.l.s4 1983009808
        %v3823 = vunpack.c.0.s8 %v3822
        %v3824 = vlaneseq
        %v3825 = vshrl.u32 %v3824, 7
        %v3826 = vsub.s32 %v3823, %v3825
        %v3827 = vrot.slane %v3820, %v3826
        %v3828 = vcombine.low %v3803, %v3811
        %v3830 = vunpack.c.l.s4 1934713408
        %v3831 = vunpack.c.0.s8 %v3830
        %v3832 = vlaneseq
        %v3833 = vshrl.u32 %v3832, 7
        %v3834 = vsub.s32 %v3831, %v3833
        %v3835 = vrot.slane %v3828, %v3834
        %v3836 = vcombine.low %v3819, %v3827
        %v3838 = vunpack.c.l.s4 1934713408
        %v3839 = vunpack.c.0.s8 %v3838
        %v3840 = vlaneseq
        %v3841 = vshrl.u32 %v3840, 7
        %v3842 = vsub.s32 %v3839, %v3841
        %v3843 = vrot.slane %v3836, %v3842
        %v3844 = vcombine.low %v3835, %v3843
        %v3845 = vcombine.high %v3835, %v3843
        %v3846 = vcombine.low %v3175, %v3351
        %v3848 = vunpack.c.l.s4 1983009808
        %v3849 = vunpack.c.0.s8 %v3848
        %v3850 = vlaneseq
        %v3851 = vshrl.u32 %v3850, 7
        %v3852 = vsub.s32 %v3849, %v3851
        %v3853 = vrot.slane %v3846, %v3852
        %v3854 = vcombine.low %v3263, %v3439
        %v3856 = vunpack.c.l.s4 1983009808
        %v3857 = vunpack.c.0.s8 %v3856
        %v3858 = vlaneseq
        %v3859 = vshrl.u32 %v3858, 7
        %v3860 = vsub.s32 %v3857, %v3859
        %v3861 = vrot.slane %v3854, %v3860
        %v3862 = vcombine.low %v3527, %v3703
        %v3864 = vunpack.c.l.s4 1983009808
        %v3865 = vunpack.c.0.s8 %v3864
        %v3866 = vlaneseq
        %v3867 = vshrl.u32 %v3866, 7
        %v3868 = vsub.s32 %v3865, %v3867
        %v3869 = vrot.slane %v3862, %v3868
        %v3870 = vcombine.low %v3615, %v3791
        %v3872 = vunpack.c.l.s4 1983009808
        %v3873 = vunpack.c.0.s8 %v3872
        %v3874 = vlaneseq
        %v3875 = vshrl.u32 %v3874, 7
        %v3876 = vsub.s32 %v3873, %v3875
        %v3877 = vrot.slane %v3870, %v3876
        %v3878 = vcombine.low %v3853, %v3861
        %v3880 = vunpack.c.l.s4 1934713408
        %v3881 = vunpack.c.0.s8 %v3880
        %v3882 = vlaneseq
        %v3883 = vshrl.u32 %v3882, 7
        %v3884 = vsub.s32 %v3881, %v3883
        %v3885 = vrot.slane %v3878, %v3884
        %v3886 = vcombine.low %v3869, %v3877
        %v3888 = vunpack.c.l.s4 1934713408
        %v3889 = vunpack.c.0.s8 %v3888
        %v3890 = vlaneseq
        %v3891 = vshrl.u32 %v3890, 7
        %v3892 = vsub.s32 %v3889, %v3891
        %v3893 = vrot.slane %v3886, %v3892
        %v3894 = vcombine.low %v3885, %v3893
        %v3895 = vcombine.high %v3885, %v3893
        %v3896 = vld [vmem:[%s698] sm:$0xff]
        %v3897 = vld [vmem:[%s698 + $0x8] sm:$0xff]
        %3899 = vset.pattern.permute.xlu0 0
        %3900 = vperm.xlu0 %3899, %v3896
        %v3901 = vpop.permute.xlu0 %3900
        %3904 = vset.pattern.permute.xlu0 0
        %3905 = vperm.xlu0 %3904, %v3897
        %v3906 = vpop.permute.xlu0 %3905
        %v3908 = vmul.f32 %v1980, %v3901
        %v3909 = vmul.f32 %v1981, %v3906
        %v3910 = vmul.f32 %v1982, %v3901
        %v3911 = vmul.f32 %v1983, %v3906
        %v3912 = vadd.f32 %v3844, %v3908
        %v3913 = vadd.f32 %v3894, %v3909
        %v3914 = vadd.f32 %v3845, %v3910
        %v3915 = vadd.f32 %v3895, %v3911
        %v3916 = vmul.f32 %v3912, 0.5
        %v3917 = vmul.f32 %v3913, 0.5
        %v3918 = vmul.f32 %v3914, 0.5
        %v3919 = vmul.f32 %v3915, 0.5
        %v3920 = vmul.f32 %v3912, 0.044715
        %v3921 = vmul.f32 %v3913, 0.044715
        %v3922 = vmul.f32 %v3914, 0.044715
        %v3923 = vmul.f32 %v3915, 0.044715
        %v3924 = vmul.f32 %v3920, %v3912
        %v3925 = vmul.f32 %v3921, %v3913
        %v3926 = vmul.f32 %v3922, %v3914
        %v3927 = vmul.f32 %v3923, %v3915
        %v3928 = vmul.f32 %v3924, %v3912
        %v3929 = vmul.f32 %v3925, %v3913
        %v3930 = vmul.f32 %v3926, %v3914
        %v3931 = vmul.f32 %v3927, %v3915
        %v3932 = vadd.f32 %v3912, %v3928
        %v3933 = vadd.f32 %v3913, %v3929
        %v3934 = vadd.f32 %v3914, %v3930
        %v3935 = vadd.f32 %v3915, %v3931
        %v3936 = vmul.f32 %v3932, 0.7978846
        %v3937 = vmul.f32 %v3933, 0.7978846
        %v3938 = vmul.f32 %v3934, 0.7978846
        %v3939 = vmul.f32 %v3935, 0.7978846
        %v3940 = vtanh.pop %v3936
        %v3941 = vtanh.pop %v3937
        %v3942 = vtanh.pop %v3938
        %v3943 = vtanh.pop %v3939
        %v3944 = vadd.f32 %v3940, 1.0
        %v3945 = vadd.f32 %v3941, 1.0
        %v3946 = vadd.f32 %v3942, 1.0
        %v3947 = vadd.f32 %v3943, 1.0
        %v3948 = vmul.f32 %v3916, %v3944
        %v3949 = vmul.f32 %v3917, %v3945
        %v3950 = vmul.f32 %v3918, %v3946
        %v3951 = vmul.f32 %v3919, %v3947
        %v3952 = vmul.f32 %v1833, %v3948
        %v3953 = vmul.f32 %v1837, %v3949
        %v3954 = vmul.f32 %v1844, %v3950
        %v3955 = vmul.f32 %v1848, %v3951
        %v3956 = vadd.f32 %v1419, %v3952
        %v3957 = vadd.f32 %v1420, %v3953
        %v3958 = vadd.f32 %v1421, %v3954
        %v3959 = vadd.f32 %v1422, %v3955
        %3960 = vadd.xlane.f32.xlu0 %v3956
        %v3961 = vpop.xlane.xlu0 %3960
        %3962 = vadd.xlane.f32.xlu0 %v3957
        %v3963 = vpop.xlane.xlu0 %3962
        %3964 = vadd.xlane.f32.xlu0 %v3958
        %v3965 = vpop.xlane.xlu0 %3964
        %3966 = vadd.xlane.f32.xlu0 %v3959
        %v3967 = vpop.xlane.xlu0 %3966
        %v3968 = vmul.f32 %v3961, %v1923
        %v3969 = vmul.f32 %v3963, %v1923
        %v3970 = vmul.f32 %v3965, %v1923
        %v3971 = vmul.f32 %v3967, %v1923
        %v3972 = vmul.f32 %v3956, %v3956
        %v3973 = vmul.f32 %v3957, %v3957
        %v3974 = vmul.f32 %v3958, %v3958
        %v3975 = vmul.f32 %v3959, %v3959
        %3976 = vadd.xlane.f32.xlu0 %v3972
        %v3977 = vpop.xlane.xlu0 %3976
        %3978 = vadd.xlane.f32.xlu0 %v3973
        %v3979 = vpop.xlane.xlu0 %3978
        %3980 = vadd.xlane.f32.xlu0 %v3974
        %v3981 = vpop.xlane.xlu0 %3980
        %3982 = vadd.xlane.f32.xlu0 %v3975
        %v3983 = vpop.xlane.xlu0 %3982
        %v3984 = vmul.f32 %v3977, %v1923
        %v3985 = vmul.f32 %v3979, %v1923
        %v3986 = vmul.f32 %v3981, %v1923
        %v3987 = vmul.f32 %v3983, %v1923
        %v3988 = vmul.f32 %v3968, %v3968
        %v3989 = vmul.f32 %v3969, %v3969
        %v3990 = vmul.f32 %v3970, %v3970
        %v3991 = vmul.f32 %v3971, %v3971
        %v3992 = vsub.f32 %v3984, %v3988
        %v3993 = vsub.f32 %v3985, %v3989
        %v3994 = vsub.f32 %v3986, %v3990
        %v3995 = vsub.f32 %v3987, %v3991
        %v3996 = vmax.f32 %v3992, 0.0
        %v3997 = vmax.f32 %v3993, 0.0
        %v3998 = vmax.f32 %v3994, 0.0
        %v3999 = vmax.f32 %v3995, 0.0
        %v4000 = vsub.f32 %v3956, %v3968
        %v4001 = vsub.f32 %v3957, %v3969
        %v4002 = vsub.f32 %v3958, %v3970
        %v4003 = vsub.f32 %v3959, %v3971
        %v4004 = vadd.f32 %v3996, 1e-05
        %v4005 = vadd.f32 %v3997, 1e-05
        %v4006 = vadd.f32 %v3998, 1e-05
        %v4007 = vadd.f32 %v3999, 1e-05
        %v4008 = vrsqrt.pop %v4004
        %v4009 = vrsqrt.pop %v4005
        %v4010 = vrsqrt.pop %v4006
        %v4011 = vrsqrt.pop %v4007
        %v4012 = vmul.f32 %v4000, %v4008
        %v4013 = vmul.f32 %v4001, %v4009
        %v4014 = vmul.f32 %v4002, %v4010
        %v4015 = vmul.f32 %v4003, %v4011
        %v4016 = vadd.f32 %v1877, 1.0
        %v4017 = vadd.f32 %v1881, 1.0
        %v4018 = vadd.f32 %v1888, 1.0
        %v4019 = vadd.f32 %v1892, 1.0
        %v4020 = vmul.f32 %v4012, %v4016
        %v4021 = vmul.f32 %v4013, %v4017
        %v4022 = vmul.f32 %v4014, %v4018
        %v4023 = vmul.f32 %v4015, %v4019
        %v4024 = vadd.f32 %v4020, %v1855
        %v4025 = vadd.f32 %v4021, %v1859
        %v4026 = vadd.f32 %v4022, %v1866
        %v4027 = vadd.f32 %v4023, %v1870
        %v4028 = vpack.c.bf16 %v4025, %v4024
        %v4029 = vpack.c.bf16 %v4027, %v4026
        %v4030 = vld [vmem:[%s703] sm:$0xf]
        %v4031 = vld [vmem:[%s703 + $0x4] sm:$0xf]
        %v4032 = vld [vmem:[%s703 + $0x8] sm:$0xf]
        %v4033 = vld [vmem:[%s703 + $0xc] sm:$0xf]
        %4034 = vxpose.xlu0.c.b16.start [1/8] %v4028, 128
        %4035 = vxpose.xlu0.c.b16.cont [2/8] 0, 128
        %4036 = vxpose.xlu0.c.b16.cont [3/8] 0, 128
        %4037 = vxpose.xlu0.c.b16.cont [4/8] 0, 128
        %4038 = vxpose.xlu0.c.b16.cont [5/8] 0, 128
        %4039 = vxpose.xlu0.c.b16.cont [6/8] 0, 128
        %4040 = vxpose.xlu0.c.b16.cont [7/8] 0, 128
        %4041 = vxpose.xlu0.c.b16.end [8/8] 0, 128
        %v4042 = vpop.trf.xlu0
        %v4043 = vpop.trf.xlu0
        %v4044 = vpop.trf.xlu0
        %v4045 = vpop.trf.xlu0
        %v4046 = vpop.trf.xlu0
        %v4047 = vpop.trf.xlu0
        %v4048 = vpop.trf.xlu0
        %v4049 = vpop.trf.xlu0
        %4050 = vxpose.xlu0.c.b16.start [1/8] %v4029, 128
        %4051 = vxpose.xlu0.c.b16.cont [2/8] 0, 128
        %4052 = vxpose.xlu0.c.b16.cont [3/8] 0, 128
        %4053 = vxpose.xlu0.c.b16.cont [4/8] 0, 128
        %4054 = vxpose.xlu0.c.b16.cont [5/8] 0, 128
        %4055 = vxpose.xlu0.c.b16.cont [6/8] 0, 128
        %4056 = vxpose.xlu0.c.b16.cont [7/8] 0, 128
        %4057 = vxpose.xlu0.c.b16.end [8/8] 0, 128
        %v4058 = vpop.trf.xlu0
        %v4059 = vpop.trf.xlu0
        %v4060 = vpop.trf.xlu0
        %v4061 = vpop.trf.xlu0
        %v4062 = vpop.trf.xlu0
        %v4063 = vpop.trf.xlu0
        %v4064 = vpop.trf.xlu0
        %v4065 = vpop.trf.xlu0
        %v4070 = vunpack.c.l.b16 %v4030
        %v4071 = vunpack.c.l.b16 %v4031
        %v4072 = vunpack.c.l.b16 %v4032
        %v4073 = vunpack.c.l.b16 %v4033
        %v4074 = vpack.c.b16 %v4071, %v4070
        %v4075 = vpack.c.b16 %v4073, %v4072
        %v4077 = vsel %vm1585, %v4042, 0
        %v4080 = vsel %vm1585, %v4043, 0
        %v4083 = vsel %vm1585, %v4044, 0
        %v4086 = vsel %vm1585, %v4045, 0
        %v4089 = vsel %vm1585, %v4046, 0
        %v4092 = vsel %vm1585, %v4047, 0
        %v4095 = vsel %vm1585, %v4048, 0
        %v4098 = vsel %vm1585, %v4049, 0
        %v4101 = vsel %vm1585, %v4058, 0
        %v4104 = vsel %vm1585, %v4059, 0
        %v4107 = vsel %vm1585, %v4060, 0
        %v4110 = vsel %vm1585, %v4061, 0
        %v4113 = vsel %vm1585, %v4062, 0
        %v4116 = vsel %vm1585, %v4063, 0
        %v4119 = vsel %vm1585, %v4064, 0
        %v4122 = vsel %vm1585, %v4065, 0
        %v4125 = vsel %vm1585, %v4074, 0
        %v4128 = vsel %vm1585, %v4075, 0
        %4130 = vmatprep.subr.bf16.mxu0 0
        %4131 = vmatpush1.bf16.xpose.msra.mxu0 0
        %4132 = vmatprep.subr.bf16.mxu0 0
        %4133 = vmatpush1.bf16.xpose.msra.mxu0 0
        %4134 = vmatprep.subr.bf16.mxu0 0
        %4135 = vmatpush1.bf16.xpose.msra.mxu0 0
        %4136 = vmatprep.subr.bf16.mxu0 0
        %4137 = vmatpush1.bf16.xpose.msra.mxu0 0
        %4138 = vmatprep.subr.bf16.mxu0 0
        %4139 = vmatpush1.bf16.xpose.msra.mxu0 0
        %4140 = vmatprep.subr.bf16.mxu0 0
        %4141 = vmatpush1.bf16.xpose.msra.mxu0 0
        %4142 = vmatprep.subr.bf16.mxu0 0
        %4143 = vmatpush1.bf16.xpose.msra.mxu0 %v4128
        %4144 = vmatprep.subr.bf16.mxu0 0
        %4145 = vmatpush1.bf16.xpose.msra.mxu0 %v4125
        %4146 = vmatprep.subr.bf16.mxu0 0
        %4147 = vmatpush2.bf16.xpose.msra.mxu0 0
        %4148 = vmatprep.subr.bf16.mxu0 0
        %4149 = vmatpush2.bf16.xpose.msra.mxu0 0
        %4150 = vmatprep.subr.bf16.mxu0 0
        %4151 = vmatpush2.bf16.xpose.msra.mxu0 0
        %4152 = vmatprep.subr.bf16.mxu0 0
        %4153 = vmatpush2.bf16.xpose.msra.mxu0 0
        %4154 = vmatprep.subr.bf16.mxu0 0
        %4155 = vmatpush2.bf16.xpose.msra.mxu0 0
        %4156 = vmatprep.subr.bf16.mxu0 0
        %4157 = vmatpush2.bf16.xpose.msra.mxu0 0
        %4158 = vmatprep.subr.bf16.mxu0 0
        %4159 = vmatpush2.bf16.xpose.msra.mxu0 0
        %4160 = vmatprep.subr.bf16.mxu0 0
        %4161 = vmatpush2.bf16.xpose.msra.mxu0 0
        %4162 = vmatprep.mubr.bf16.mxu0 0
        %4163 = vmatmul.mubr.bf16.gmra.mxu0 %v4077
        %v4164 = vpop.f32.mrf.mxu0
        %v4165 = vadd.f32 0.0, %v4164
        %v4166 = vpop.f32.mrf.mxu0
        %v4167 = vpop.f32.mrf.mxu0
        %v4168 = vadd.f32 0.0, %v4167
        %v4169 = vpop.f32.mrf.mxu0
        %4170 = vmatprep.mubr.bf16.mxu0 0
        %4171 = vmatmul.mubr.bf16.gmra.mxu0 %v4080
        %v4172 = vpop.f32.mrf.mxu0
        %v4173 = vadd.f32 0.0, %v4172
        %v4174 = vpop.f32.mrf.mxu0
        %v4175 = vpop.f32.mrf.mxu0
        %v4176 = vadd.f32 0.0, %v4175
        %v4177 = vpop.f32.mrf.mxu0
        %4178 = vmatprep.mubr.bf16.mxu0 0
        %4179 = vmatmul.mubr.bf16.gmra.mxu0 %v4083
        %v4180 = vpop.f32.mrf.mxu0
        %v4181 = vadd.f32 0.0, %v4180
        %v4182 = vpop.f32.mrf.mxu0
        %v4183 = vpop.f32.mrf.mxu0
        %v4184 = vadd.f32 0.0, %v4183
        %v4185 = vpop.f32.mrf.mxu0
        %4186 = vmatprep.mubr.bf16.mxu0 0
        %4187 = vmatmul.mubr.bf16.gmra.mxu0 %v4086
        %v4188 = vpop.f32.mrf.mxu0
        %v4189 = vadd.f32 0.0, %v4188
        %v4190 = vpop.f32.mrf.mxu0
        %v4191 = vpop.f32.mrf.mxu0
        %v4192 = vadd.f32 0.0, %v4191
        %v4193 = vpop.f32.mrf.mxu0
        %4194 = vmatprep.mubr.bf16.mxu0 0
        %4195 = vmatmul.mubr.bf16.gmra.mxu0 %v4089
        %v4196 = vpop.f32.mrf.mxu0
        %v4197 = vadd.f32 0.0, %v4196
        %v4198 = vpop.f32.mrf.mxu0
        %v4199 = vpop.f32.mrf.mxu0
        %v4200 = vadd.f32 0.0, %v4199
        %v4201 = vpop.f32.mrf.mxu0
        %4202 = vmatprep.mubr.bf16.mxu0 0
        %4203 = vmatmul.mubr.bf16.gmra.mxu0 %v4092
        %v4204 = vpop.f32.mrf.mxu0
        %v4205 = vadd.f32 0.0, %v4204
        %v4206 = vpop.f32.mrf.mxu0
        %v4207 = vpop.f32.mrf.mxu0
        %v4208 = vadd.f32 0.0, %v4207
        %v4209 = vpop.f32.mrf.mxu0
        %4210 = vmatprep.mubr.bf16.mxu0 0
        %4211 = vmatmul.mubr.bf16.gmra.mxu0 %v4095
        %v4212 = vpop.f32.mrf.mxu0
        %v4213 = vadd.f32 0.0, %v4212
        %v4214 = vpop.f32.mrf.mxu0
        %v4215 = vpop.f32.mrf.mxu0
        %v4216 = vadd.f32 0.0, %v4215
        %v4217 = vpop.f32.mrf.mxu0
        %4218 = vmatprep.mubr.bf16.mxu0 0
        %4219 = vmatmul.mubr.bf16.gmra.mxu0 %v4098
        %v4220 = vpop.f32.mrf.mxu0
        %v4221 = vadd.f32 0.0, %v4220
        %v4222 = vpop.f32.mrf.mxu0
        %v4223 = vpop.f32.mrf.mxu0
        %v4224 = vadd.f32 0.0, %v4223
        %v4225 = vpop.f32.mrf.mxu0
        %4226 = vmatprep.mubr.bf16.mxu0 0
        %4227 = vmatmul.mubr.bf16.gmra.mxu0 %v4101
        %v4228 = vpop.f32.mrf.mxu0
        %v4229 = vadd.f32 0.0, %v4228
        %v4230 = vpop.f32.mrf.mxu0
        %v4231 = vpop.f32.mrf.mxu0
        %v4232 = vadd.f32 0.0, %v4231
        %v4233 = vpop.f32.mrf.mxu0
        %4234 = vmatprep.mubr.bf16.mxu0 0
        %4235 = vmatmul.mubr.bf16.gmra.mxu0 %v4104
        %v4236 = vpop.f32.mrf.mxu0
        %v4237 = vadd.f32 0.0, %v4236
        %v4238 = vpop.f32.mrf.mxu0
        %v4239 = vpop.f32.mrf.mxu0
        %v4240 = vadd.f32 0.0, %v4239
        %v4241 = vpop.f32.mrf.mxu0
        %4242 = vmatprep.mubr.bf16.mxu0 0
        %4243 = vmatmul.mubr.bf16.gmra.mxu0 %v4107
        %v4244 = vpop.f32.mrf.mxu0
        %v4245 = vadd.f32 0.0, %v4244
        %v4246 = vpop.f32.mrf.mxu0
        %v4247 = vpop.f32.mrf.mxu0
        %v4248 = vadd.f32 0.0, %v4247
        %v4249 = vpop.f32.mrf.mxu0
        %4250 = vmatprep.mubr.bf16.mxu0 0
        %4251 = vmatmul.mubr.bf16.gmra.mxu0 %v4110
        %v4252 = vpop.f32.mrf.mxu0
        %v4253 = vadd.f32 0.0, %v4252
        %v4254 = vpop.f32.mrf.mxu0
        %v4255 = vpop.f32.mrf.mxu0
        %v4256 = vadd.f32 0.0, %v4255
        %v4257 = vpop.f32.mrf.mxu0
        %4258 = vmatprep.mubr.bf16.mxu0 0
        %4259 = vmatmul.mubr.bf16.gmra.mxu0 %v4113
        %v4260 = vpop.f32.mrf.mxu0
        %v4261 = vadd.f32 0.0, %v4260
        %v4262 = vpop.f32.mrf.mxu0
        %v4263 = vpop.f32.mrf.mxu0
        %v4264 = vadd.f32 0.0, %v4263
        %v4265 = vpop.f32.mrf.mxu0
        %4266 = vmatprep.mubr.bf16.mxu0 0
        %4267 = vmatmul.mubr.bf16.gmra.mxu0 %v4116
        %v4268 = vpop.f32.mrf.mxu0
        %v4269 = vadd.f32 0.0, %v4268
        %v4270 = vpop.f32.mrf.mxu0
        %v4271 = vpop.f32.mrf.mxu0
        %v4272 = vadd.f32 0.0, %v4271
        %v4273 = vpop.f32.mrf.mxu0
        %4274 = vmatprep.mubr.bf16.mxu0 0
        %4275 = vmatmul.mubr.bf16.gmra.mxu0 %v4119
        %v4276 = vpop.f32.mrf.mxu0
        %v4277 = vadd.f32 0.0, %v4276
        %v4278 = vpop.f32.mrf.mxu0
        %v4279 = vpop.f32.mrf.mxu0
        %v4280 = vadd.f32 0.0, %v4279
        %v4281 = vpop.f32.mrf.mxu0
        %4282 = vmatprep.mubr.bf16.mxu0 0
        %4283 = vmatmul.mubr.bf16.gmra.mxu0 %v4122
        %v4284 = vpop.f32.mrf.mxu0
        %v4285 = vadd.f32 0.0, %v4284
        %v4286 = vpop.f32.mrf.mxu0
        %v4287 = vpop.f32.mrf.mxu0
        %v4288 = vadd.f32 0.0, %v4287
        %v4289 = vpop.f32.mrf.mxu0
        %4290 = vdwg.mxu0
        %4291 = vxpose.xlu0.b32.start [1/16] %v4165, 128
        %4292 = vxpose.xlu0.b32.cont [2/16] %v4168, 128
        %4293 = vxpose.xlu0.b32.cont [3/16] %v4173, 128
        %4294 = vxpose.xlu0.b32.cont [4/16] %v4176, 128
        %4295 = vxpose.xlu0.b32.cont [5/16] %v4181, 128
        %4296 = vxpose.xlu0.b32.cont [6/16] %v4184, 128
        %4297 = vxpose.xlu0.b32.cont [7/16] %v4189, 128
        %4298 = vxpose.xlu0.b32.cont [8/16] %v4192, 128
        %4299 = vxpose.xlu0.b32.cont [9/16] %v4197, 128
        %4300 = vxpose.xlu0.b32.cont [10/16] %v4200, 128
        %4301 = vxpose.xlu0.b32.cont [11/16] %v4205, 128
        %4302 = vxpose.xlu0.b32.cont [12/16] %v4208, 128
        %4303 = vxpose.xlu0.b32.cont [13/16] %v4213, 128
        %4304 = vxpose.xlu0.b32.cont [14/16] %v4216, 128
        %4305 = vxpose.xlu0.b32.cont [15/16] %v4221, 128
        %4306 = vxpose.xlu0.b32.end [16/16] %v4224, 128
        %v4307 = vpop.trf.xlu0
        %v4308 = vpop.trf.xlu0
        %v4309 = vpop.trf.xlu0
        %v4310 = vpop.trf.xlu0
        %v4311 = vpop.trf.xlu0
        %v4312 = vpop.trf.xlu0
        %v4313 = vpop.trf.xlu0
        %v4314 = vpop.trf.xlu0
        %v4315 = vpop.trf.xlu0
        %v4316 = vpop.trf.xlu0
        %v4317 = vpop.trf.xlu0
        %v4318 = vpop.trf.xlu0
        %v4319 = vpop.trf.xlu0
        %v4320 = vpop.trf.xlu0
        %v4321 = vpop.trf.xlu0
        %v4322 = vpop.trf.xlu0
        %4323 = vxpose.xlu0.b32.start [1/16] %v4229, 128
        %4324 = vxpose.xlu0.b32.cont [2/16] %v4232, 128
        %4325 = vxpose.xlu0.b32.cont [3/16] %v4237, 128
        %4326 = vxpose.xlu0.b32.cont [4/16] %v4240, 128
        %4327 = vxpose.xlu0.b32.cont [5/16] %v4245, 128
        %4328 = vxpose.xlu0.b32.cont [6/16] %v4248, 128
        %4329 = vxpose.xlu0.b32.cont [7/16] %v4253, 128
        %4330 = vxpose.xlu0.b32.cont [8/16] %v4256, 128
        %4331 = vxpose.xlu0.b32.cont [9/16] %v4261, 128
        %4332 = vxpose.xlu0.b32.cont [10/16] %v4264, 128
        %4333 = vxpose.xlu0.b32.cont [11/16] %v4269, 128
        %4334 = vxpose.xlu0.b32.cont [12/16] %v4272, 128
        %4335 = vxpose.xlu0.b32.cont [13/16] %v4277, 128
        %4336 = vxpose.xlu0.b32.cont [14/16] %v4280, 128
        %4337 = vxpose.xlu0.b32.cont [15/16] %v4285, 128
        %4338 = vxpose.xlu0.b32.end [16/16] %v4288, 128
        %v4339 = vpop.trf.xlu0
        %v4340 = vpop.trf.xlu0
        %v4341 = vpop.trf.xlu0
        %v4342 = vpop.trf.xlu0
        %v4343 = vpop.trf.xlu0
        %v4344 = vpop.trf.xlu0
        %v4345 = vpop.trf.xlu0
        %v4346 = vpop.trf.xlu0
        %v4347 = vpop.trf.xlu0
        %v4348 = vpop.trf.xlu0
        %v4349 = vpop.trf.xlu0
        %v4350 = vpop.trf.xlu0
        %v4351 = vpop.trf.xlu0
        %v4352 = vpop.trf.xlu0
        %v4353 = vpop.trf.xlu0
        %v4354 = vpop.trf.xlu0
        %v4355 = vld [vmem:[%s708] sm:$0xff]
        %v4356 = vld [vmem:[%s708 + $0x8] sm:$0xff]
        %v4357 = vld [vmem:[%s708 + $0x10] sm:$0xff]
        %v4358 = vld [vmem:[%s708 + $0x18] sm:$0xff]
        %4360 = vset.pattern.permute.xlu0 0
        %4361 = vperm.xlu0 %4360, %v4355
        %v4362 = vpop.permute.xlu0 %4361
        %4365 = vset.pattern.permute.xlu0 0
        %4366 = vperm.xlu0 %4365, %v4356
        %v4367 = vpop.permute.xlu0 %4366
        %4370 = vset.pattern.permute.xlu0 0
        %4371 = vperm.xlu0 %4370, %v4357
        %v4372 = vpop.permute.xlu0 %4371
        %4375 = vset.pattern.permute.xlu0 0
        %4376 = vperm.xlu0 %4375, %v4358
        %v4377 = vpop.permute.xlu0 %4376
        %v4379 = vadd.f32 %v4307, %v4362
        %v4380 = vadd.f32 %v4308, %v4367
        %v4381 = vadd.f32 %v4309, %v4372
        %v4382 = vadd.f32 %v4310, %v4377
        %v4383 = vadd.f32 %v4339, %v4362
        %v4384 = vadd.f32 %v4340, %v4367
        %v4385 = vadd.f32 %v4341, %v4372
        %v4386 = vadd.f32 %v4342, %v4377
        %v4387 = vmul.f32 %v4379, 0.5
        %v4388 = vmul.f32 %v4380, 0.5
        %v4389 = vmul.f32 %v4381, 0.5
        %v4390 = vmul.f32 %v4382, 0.5
        %v4391 = vmul.f32 %v4383, 0.5
        %v4392 = vmul.f32 %v4384, 0.5
        %v4393 = vmul.f32 %v4385, 0.5
        %v4394 = vmul.f32 %v4386, 0.5
        %v4395 = vmul.f32 %v4379, 0.044715
        %v4396 = vmul.f32 %v4380, 0.044715
        %v4397 = vmul.f32 %v4381, 0.044715
        %v4398 = vmul.f32 %v4382, 0.044715
        %v4399 = vmul.f32 %v4383, 0.044715
        %v4400 = vmul.f32 %v4384, 0.044715
        %v4401 = vmul.f32 %v4385, 0.044715
        %v4402 = vmul.f32 %v4386, 0.044715
        %v4403 = vmul.f32 %v4395, %v4379
        %v4404 = vmul.f32 %v4396, %v4380
        %v4405 = vmul.f32 %v4397, %v4381
        %v4406 = vmul.f32 %v4398, %v4382
        %v4407 = vmul.f32 %v4399, %v4383
        %v4408 = vmul.f32 %v4400, %v4384
        %v4409 = vmul.f32 %v4401, %v4385
        %v4410 = vmul.f32 %v4402, %v4386
        %v4411 = vmul.f32 %v4403, %v4379
        %v4412 = vmul.f32 %v4404, %v4380
        %v4413 = vmul.f32 %v4405, %v4381
        %v4414 = vmul.f32 %v4406, %v4382
        %v4415 = vmul.f32 %v4407, %v4383
        %v4416 = vmul.f32 %v4408, %v4384
        %v4417 = vmul.f32 %v4409, %v4385
        %v4418 = vmul.f32 %v4410, %v4386
        %v4419 = vadd.f32 %v4379, %v4411
        %v4420 = vadd.f32 %v4380, %v4412
        %v4421 = vadd.f32 %v4381, %v4413
        %v4422 = vadd.f32 %v4382, %v4414
        %v4423 = vadd.f32 %v4383, %v4415
        %v4424 = vadd.f32 %v4384, %v4416
        %v4425 = vadd.f32 %v4385, %v4417
        %v4426 = vadd.f32 %v4386, %v4418
        %v4427 = vmul.f32 %v4419, 0.7978846
        %v4428 = vmul.f32 %v4420, 0.7978846
        %v4429 = vmul.f32 %v4421, 0.7978846
        %v4430 = vmul.f32 %v4422, 0.7978846
        %v4431 = vmul.f32 %v4423, 0.7978846
        %v4432 = vmul.f32 %v4424, 0.7978846
        %v4433 = vmul.f32 %v4425, 0.7978846
        %v4434 = vmul.f32 %v4426, 0.7978846
        %v4435 = vtanh.pop %v4427
        %v4436 = vtanh.pop %v4428
        %v4437 = vtanh.pop %v4429
        %v4438 = vtanh.pop %v4430
        %v4439 = vtanh.pop %v4431
        %v4440 = vtanh.pop %v4432
        %v4441 = vtanh.pop %v4433
        %v4442 = vtanh.pop %v4434
        %v4443 = vadd.f32 %v4435, 1.0
        %v4444 = vadd.f32 %v4436, 1.0
        %v4445 = vadd.f32 %v4437, 1.0
        %v4446 = vadd.f32 %v4438, 1.0
        %v4447 = vadd.f32 %v4439, 1.0
        %v4448 = vadd.f32 %v4440, 1.0
        %v4449 = vadd.f32 %v4441, 1.0
        %v4450 = vadd.f32 %v4442, 1.0
        %v4451 = vmul.f32 %v4387, %v4443
        %v4452 = vmul.f32 %v4388, %v4444
        %v4453 = vmul.f32 %v4389, %v4445
        %v4454 = vmul.f32 %v4390, %v4446
        %v4455 = vmul.f32 %v4391, %v4447
        %v4456 = vmul.f32 %v4392, %v4448
        %v4457 = vmul.f32 %v4393, %v4449
        %v4458 = vmul.f32 %v4394, %v4450
        %v4459 = vld [vmem:[%s713] sm:$0xf]
        %v4460 = vld [vmem:[%s713 + $0x4] sm:$0xf]
        %v4461 = vpack.c.bf16 %v4452, %v4451
        %v4462 = vpack.c.bf16 %v4454, %v4453
        %v4463 = vpack.c.bf16 %v4456, %v4455
        %v4464 = vpack.c.bf16 %v4458, %v4457
        %4465 = vxpose.xlu0.c.b16.start [1/8] %v4461, 128
        %4466 = vxpose.xlu0.c.b16.cont [2/8] %v4462, 128
        %4467 = vxpose.xlu0.c.b16.cont [3/8] 0, 128
        %4468 = vxpose.xlu0.c.b16.cont [4/8] 0, 128
        %4469 = vxpose.xlu0.c.b16.cont [5/8] 0, 128
        %4470 = vxpose.xlu0.c.b16.cont [6/8] 0, 128
        %4471 = vxpose.xlu0.c.b16.cont [7/8] 0, 128
        %4472 = vxpose.xlu0.c.b16.end [8/8] 0, 128
        %v4473 = vpop.trf.xlu0
        %v4474 = vpop.trf.xlu0
        %v4475 = vpop.trf.xlu0
        %v4476 = vpop.trf.xlu0
        %v4477 = vpop.trf.xlu0
        %v4478 = vpop.trf.xlu0
        %v4479 = vpop.trf.xlu0
        %v4480 = vpop.trf.xlu0
        %4481 = vxpose.xlu0.c.b16.start [1/8] %v4463, 128
        %4482 = vxpose.xlu0.c.b16.cont [2/8] %v4464, 128
        %4483 = vxpose.xlu0.c.b16.cont [3/8] 0, 128
        %4484 = vxpose.xlu0.c.b16.cont [4/8] 0, 128
        %4485 = vxpose.xlu0.c.b16.cont [5/8] 0, 128
        %4486 = vxpose.xlu0.c.b16.cont [6/8] 0, 128
        %4487 = vxpose.xlu0.c.b16.cont [7/8] 0, 128
        %4488 = vxpose.xlu0.c.b16.end [8/8] 0, 128
        %v4489 = vpop.trf.xlu0
        %v4490 = vpop.trf.xlu0
        %v4491 = vpop.trf.xlu0
        %v4492 = vpop.trf.xlu0
        %v4493 = vpop.trf.xlu0
        %v4494 = vpop.trf.xlu0
        %v4495 = vpop.trf.xlu0
        %v4496 = vpop.trf.xlu0
        %v4499 = vunpack.c.l.b16 %v4459
        %v4500 = vunpack.c.l.b16 %v4460
        %v4501 = vpack.c.b16 %v4500, %v4499
        %v4503 = vsel %vm1587, %v4473, 0
        %v4506 = vsel %vm1587, %v4474, 0
        %v4509 = vsel %vm1587, %v4475, 0
        %v4512 = vsel %vm1587, %v4476, 0
        %v4515 = vsel %vm1587, %v4477, 0
        %v4518 = vsel %vm1587, %v4478, 0
        %v4521 = vsel %vm1587, %v4479, 0
        %v4524 = vsel %vm1587, %v4480, 0
        %v4527 = vsel %vm1587, %v4489, 0
        %v4530 = vsel %vm1587, %v4490, 0
        %v4533 = vsel %vm1587, %v4491, 0
        %v4536 = vsel %vm1587, %v4492, 0
        %v4539 = vsel %vm1587, %v4493, 0
        %v4542 = vsel %vm1587, %v4494, 0
        %v4545 = vsel %vm1587, %v4495, 0
        %v4548 = vsel %vm1587, %v4496, 0
        %v4551 = vsel %vm1587, %v4501, 0
        %4553 = vmatprep.subr.bf16.mxu0 0
        %4554 = vmatpush1.bf16.xpose.msra.mxu0 0
        %4555 = vmatprep.subr.bf16.mxu0 0
        %4556 = vmatpush1.bf16.xpose.msra.mxu0 0
        %4557 = vmatprep.subr.bf16.mxu0 0
        %4558 = vmatpush1.bf16.xpose.msra.mxu0 0
        %4559 = vmatprep.subr.bf16.mxu0 0
        %4560 = vmatpush1.bf16.xpose.msra.mxu0 0
        %4561 = vmatprep.subr.bf16.mxu0 0
        %4562 = vmatpush1.bf16.xpose.msra.mxu0 0
        %4563 = vmatprep.subr.bf16.mxu0 0
        %4564 = vmatpush1.bf16.xpose.msra.mxu0 0
        %4565 = vmatprep.subr.bf16.mxu0 0
        %4566 = vmatpush1.bf16.xpose.msra.mxu0 0
        %4567 = vmatprep.subr.bf16.mxu0 0
        %4568 = vmatpush1.bf16.xpose.msra.mxu0 %v4551
        %4569 = vmatprep.subr.bf16.mxu0 0
        %4570 = vmatpush2.bf16.xpose.msra.mxu0 0
        %4571 = vmatprep.subr.bf16.mxu0 0
        %4572 = vmatpush2.bf16.xpose.msra.mxu0 0
        %4573 = vmatprep.subr.bf16.mxu0 0
        %4574 = vmatpush2.bf16.xpose.msra.mxu0 0
        %4575 = vmatprep.subr.bf16.mxu0 0
        %4576 = vmatpush2.bf16.xpose.msra.mxu0 0
        %4577 = vmatprep.subr.bf16.mxu0 0
        %4578 = vmatpush2.bf16.xpose.msra.mxu0 0
        %4579 = vmatprep.subr.bf16.mxu0 0
        %4580 = vmatpush2.bf16.xpose.msra.mxu0 0
        %4581 = vmatprep.subr.bf16.mxu0 0
        %4582 = vmatpush2.bf16.xpose.msra.mxu0 0
        %4583 = vmatprep.subr.bf16.mxu0 0
        %4584 = vmatpush2.bf16.xpose.msra.mxu0 0
        %4585 = vmatprep.mubr.bf16.mxu0 0
        %4586 = vmatmul.mubr.bf16.gmra.mxu0 %v4503
        %v4587 = vpop.f32.mrf.mxu0
        %v4588 = vadd.f32 0.0, %v4587
        %v4589 = vpop.f32.mrf.mxu0
        %v4590 = vpop.f32.mrf.mxu0
        %v4591 = vadd.f32 0.0, %v4590
        %v4592 = vpop.f32.mrf.mxu0
        %4593 = vmatprep.mubr.bf16.mxu0 0
        %4594 = vmatmul.mubr.bf16.gmra.mxu0 %v4506
        %v4595 = vpop.f32.mrf.mxu0
        %v4596 = vadd.f32 0.0, %v4595
        %v4597 = vpop.f32.mrf.mxu0
        %v4598 = vpop.f32.mrf.mxu0
        %v4599 = vadd.f32 0.0, %v4598
        %v4600 = vpop.f32.mrf.mxu0
        %4601 = vmatprep.mubr.bf16.mxu0 0
        %4602 = vmatmul.mubr.bf16.gmra.mxu0 %v4509
        %v4603 = vpop.f32.mrf.mxu0
        %v4604 = vadd.f32 0.0, %v4603
        %v4605 = vpop.f32.mrf.mxu0
        %v4606 = vpop.f32.mrf.mxu0
        %v4607 = vadd.f32 0.0, %v4606
        %v4608 = vpop.f32.mrf.mxu0
        %4609 = vmatprep.mubr.bf16.mxu0 0
        %4610 = vmatmul.mubr.bf16.gmra.mxu0 %v4512
        %v4611 = vpop.f32.mrf.mxu0
        %v4612 = vadd.f32 0.0, %v4611
        %v4613 = vpop.f32.mrf.mxu0
        %v4614 = vpop.f32.mrf.mxu0
        %v4615 = vadd.f32 0.0, %v4614
        %v4616 = vpop.f32.mrf.mxu0
        %4617 = vmatprep.mubr.bf16.mxu0 0
        %4618 = vmatmul.mubr.bf16.gmra.mxu0 %v4515
        %v4619 = vpop.f32.mrf.mxu0
        %v4620 = vadd.f32 0.0, %v4619
        %v4621 = vpop.f32.mrf.mxu0
        %v4622 = vpop.f32.mrf.mxu0
        %v4623 = vadd.f32 0.0, %v4622
        %v4624 = vpop.f32.mrf.mxu0
        %4625 = vmatprep.mubr.bf16.mxu0 0
        %4626 = vmatmul.mubr.bf16.gmra.mxu0 %v4518
        %v4627 = vpop.f32.mrf.mxu0
        %v4628 = vadd.f32 0.0, %v4627
        %v4629 = vpop.f32.mrf.mxu0
        %v4630 = vpop.f32.mrf.mxu0
        %v4631 = vadd.f32 0.0, %v4630
        %v4632 = vpop.f32.mrf.mxu0
        %4633 = vmatprep.mubr.bf16.mxu0 0
        %4634 = vmatmul.mubr.bf16.gmra.mxu0 %v4521
        %v4635 = vpop.f32.mrf.mxu0
        %v4636 = vadd.f32 0.0, %v4635
        %v4637 = vpop.f32.mrf.mxu0
        %v4638 = vpop.f32.mrf.mxu0
        %v4639 = vadd.f32 0.0, %v4638
        %v4640 = vpop.f32.mrf.mxu0
        %4641 = vmatprep.mubr.bf16.mxu0 0
        %4642 = vmatmul.mubr.bf16.gmra.mxu0 %v4524
        %v4643 = vpop.f32.mrf.mxu0
        %v4644 = vadd.f32 0.0, %v4643
        %v4645 = vpop.f32.mrf.mxu0
        %v4646 = vpop.f32.mrf.mxu0
        %v4647 = vadd.f32 0.0, %v4646
        %v4648 = vpop.f32.mrf.mxu0
        %4649 = vmatprep.mubr.bf16.mxu0 0
        %4650 = vmatmul.mubr.bf16.gmra.mxu0 %v4527
        %v4651 = vpop.f32.mrf.mxu0
        %v4652 = vadd.f32 0.0, %v4651
        %v4653 = vpop.f32.mrf.mxu0
        %v4654 = vpop.f32.mrf.mxu0
        %v4655 = vadd.f32 0.0, %v4654
        %v4656 = vpop.f32.mrf.mxu0
        %4657 = vmatprep.mubr.bf16.mxu0 0
        %4658 = vmatmul.mubr.bf16.gmra.mxu0 %v4530
        %v4659 = vpop.f32.mrf.mxu0
        %v4660 = vadd.f32 0.0, %v4659
        %v4661 = vpop.f32.mrf.mxu0
        %v4662 = vpop.f32.mrf.mxu0
        %v4663 = vadd.f32 0.0, %v4662
        %v4664 = vpop.f32.mrf.mxu0
        %4665 = vmatprep.mubr.bf16.mxu0 0
        %4666 = vmatmul.mubr.bf16.gmra.mxu0 %v4533
        %v4667 = vpop.f32.mrf.mxu0
        %v4668 = vadd.f32 0.0, %v4667
        %v4669 = vpop.f32.mrf.mxu0
        %v4670 = vpop.f32.mrf.mxu0
        %v4671 = vadd.f32 0.0, %v4670
        %v4672 = vpop.f32.mrf.mxu0
        %4673 = vmatprep.mubr.bf16.mxu0 0
        %4674 = vmatmul.mubr.bf16.gmra.mxu0 %v4536
        %v4675 = vpop.f32.mrf.mxu0
        %v4676 = vadd.f32 0.0, %v4675
        %v4677 = vpop.f32.mrf.mxu0
        %v4678 = vpop.f32.mrf.mxu0
        %v4679 = vadd.f32 0.0, %v4678
        %v4680 = vpop.f32.mrf.mxu0
        %4681 = vmatprep.mubr.bf16.mxu0 0
        %4682 = vmatmul.mubr.bf16.gmra.mxu0 %v4539
        %v4683 = vpop.f32.mrf.mxu0
        %v4684 = vadd.f32 0.0, %v4683
        %v4685 = vpop.f32.mrf.mxu0
        %v4686 = vpop.f32.mrf.mxu0
        %v4687 = vadd.f32 0.0, %v4686
        %v4688 = vpop.f32.mrf.mxu0
        %4689 = vmatprep.mubr.bf16.mxu0 0
        %4690 = vmatmul.mubr.bf16.gmra.mxu0 %v4542
        %v4691 = vpop.f32.mrf.mxu0
        %v4692 = vadd.f32 0.0, %v4691
        %v4693 = vpop.f32.mrf.mxu0
        %v4694 = vpop.f32.mrf.mxu0
        %v4695 = vadd.f32 0.0, %v4694
        %v4696 = vpop.f32.mrf.mxu0
        %4697 = vmatprep.mubr.bf16.mxu0 0
        %4698 = vmatmul.mubr.bf16.gmra.mxu0 %v4545
        %v4699 = vpop.f32.mrf.mxu0
        %v4700 = vadd.f32 0.0, %v4699
        %v4701 = vpop.f32.mrf.mxu0
        %v4702 = vpop.f32.mrf.mxu0
        %v4703 = vadd.f32 0.0, %v4702
        %v4704 = vpop.f32.mrf.mxu0
        %4705 = vmatprep.mubr.bf16.mxu0 0
        %4706 = vmatmul.mubr.bf16.gmra.mxu0 %v4548
        %v4707 = vpop.f32.mrf.mxu0
        %v4708 = vadd.f32 0.0, %v4707
        %v4709 = vpop.f32.mrf.mxu0
        %v4710 = vpop.f32.mrf.mxu0
        %v4711 = vadd.f32 0.0, %v4710
        %v4712 = vpop.f32.mrf.mxu0
        %4713 = vdwg.mxu0
        %4714 = vxpose.xlu0.b32.start [1/16] %v4588, 128
        %4715 = vxpose.xlu0.b32.cont [2/16] %v4591, 128
        %4716 = vxpose.xlu0.b32.cont [3/16] %v4596, 128
        %4717 = vxpose.xlu0.b32.cont [4/16] %v4599, 128
        %4718 = vxpose.xlu0.b32.cont [5/16] %v4604, 128
        %4719 = vxpose.xlu0.b32.cont [6/16] %v4607, 128
        %4720 = vxpose.xlu0.b32.cont [7/16] %v4612, 128
        %4721 = vxpose.xlu0.b32.cont [8/16] %v4615, 128
        %4722 = vxpose.xlu0.b32.cont [9/16] %v4620, 128
        %4723 = vxpose.xlu0.b32.cont [10/16] %v4623, 128
        %4724 = vxpose.xlu0.b32.cont [11/16] %v4628, 128
        %4725 = vxpose.xlu0.b32.cont [12/16] %v4631, 128
        %4726 = vxpose.xlu0.b32.cont [13/16] %v4636, 128
        %4727 = vxpose.xlu0.b32.cont [14/16] %v4639, 128
        %4728 = vxpose.xlu0.b32.cont [15/16] %v4644, 128
        %4729 = vxpose.xlu0.b32.end [16/16] %v4647, 128
        %v4730 = vpop.trf.xlu0
        %v4731 = vpop.trf.xlu0
        %v4732 = vpop.trf.xlu0
        %v4733 = vpop.trf.xlu0
        %v4734 = vpop.trf.xlu0
        %v4735 = vpop.trf.xlu0
        %v4736 = vpop.trf.xlu0
        %v4737 = vpop.trf.xlu0
        %v4738 = vpop.trf.xlu0
        %v4739 = vpop.trf.xlu0
        %v4740 = vpop.trf.xlu0
        %v4741 = vpop.trf.xlu0
        %v4742 = vpop.trf.xlu0
        %v4743 = vpop.trf.xlu0
        %v4744 = vpop.trf.xlu0
        %v4745 = vpop.trf.xlu0
        %4746 = vxpose.xlu0.b32.start [1/16] %v4652, 128
        %4747 = vxpose.xlu0.b32.cont [2/16] %v4655, 128
        %4748 = vxpose.xlu0.b32.cont [3/16] %v4660, 128
        %4749 = vxpose.xlu0.b32.cont [4/16] %v4663, 128
        %4750 = vxpose.xlu0.b32.cont [5/16] %v4668, 128
        %4751 = vxpose.xlu0.b32.cont [6/16] %v4671, 128
        %4752 = vxpose.xlu0.b32.cont [7/16] %v4676, 128
        %4753 = vxpose.xlu0.b32.cont [8/16] %v4679, 128
        %4754 = vxpose.xlu0.b32.cont [9/16] %v4684, 128
        %4755 = vxpose.xlu0.b32.cont [10/16] %v4687, 128
        %4756 = vxpose.xlu0.b32.cont [11/16] %v4692, 128
        %4757 = vxpose.xlu0.b32.cont [12/16] %v4695, 128
        %4758 = vxpose.xlu0.b32.cont [13/16] %v4700, 128
        %4759 = vxpose.xlu0.b32.cont [14/16] %v4703, 128
        %4760 = vxpose.xlu0.b32.cont [15/16] %v4708, 128
        %4761 = vxpose.xlu0.b32.end [16/16] %v4711, 128
        %v4762 = vpop.trf.xlu0
        %v4763 = vpop.trf.xlu0
        %v4764 = vpop.trf.xlu0
        %v4765 = vpop.trf.xlu0
        %v4766 = vpop.trf.xlu0
        %v4767 = vpop.trf.xlu0
        %v4768 = vpop.trf.xlu0
        %v4769 = vpop.trf.xlu0
        %v4770 = vpop.trf.xlu0
        %v4771 = vpop.trf.xlu0
        %v4772 = vpop.trf.xlu0
        %v4773 = vpop.trf.xlu0
        %v4774 = vpop.trf.xlu0
        %v4775 = vpop.trf.xlu0
        %v4776 = vpop.trf.xlu0
        %v4777 = vpop.trf.xlu0
        %v4778 = vld [vmem:[%s718] sm:$0xff]
        %v4779 = vld [vmem:[%s718 + $0x8] sm:$0xff]
        %4781 = vset.pattern.permute.xlu0 0
        %4782 = vperm.xlu0 %4781, %v4778
        %v4783 = vpop.permute.xlu0 %4782
        %4786 = vset.pattern.permute.xlu0 0
        %4787 = vperm.xlu0 %4786, %v4779
        %v4788 = vpop.permute.xlu0 %4787
        %v4790 = vadd.f32 %v4730, %v4783
        %v4791 = vadd.f32 %v4731, %v4788
        %v4792 = vadd.f32 %v4762, %v4783
        %v4793 = vadd.f32 %v4763, %v4788
        %v4794 = vmul.f32 %v1899, %v4790
        %v4795 = vmul.f32 %v1903, %v4791
        %v4796 = vmul.f32 %v1910, %v4792
        %v4797 = vmul.f32 %v1914, %v4793
        %v4798 = vadd.f32 %v3956, %v4794
        %v4799 = vadd.f32 %v3957, %v4795
        %v4800 = vadd.f32 %v3958, %v4796
        %v4801 = vadd.f32 %v3959, %v4797
        %4802 = vst [vmem:[#allocation2] sm:$0xff] %v4798
        %4803 = vst [vmem:[#allocation2 + $0x8] sm:$0xff] %v4799
        %4804 = vst [vmem:[#allocation2 + $0x10] sm:$0xff] %v4800
        %4805 = vst [vmem:[#allocation2 + $0x18] sm:$0xff] %v4801
        %p4806 = scmp.eq.s32.totalorder %s33, 1
        // Predicated region
        $region101: #{tpu_custom_call.1} parent=91 // pred_check
          %p4807 = pneg %p4806
        $region102: #{tpu_custom_call.1} parent=91 // pred_check_branch
          %4809 = sbr.rel (%p4807) target = $region104
        $region103: #{tpu_custom_call.1} parent=91 // pred_region
          %v4810 = vld [vmem:[%s16] sm:$0xf]
          %4811 = vxpose.xlu0.b32.start [1/16] %v4798, 128
          %4812 = vxpose.xlu0.b32.cont [2/16] %v4799, 128
          %4813 = vxpose.xlu0.b32.cont [3/16] 0.0, 128
          %4814 = vxpose.xlu0.b32.cont [4/16] 0.0, 128
          %4815 = vxpose.xlu0.b32.cont [5/16] 0.0, 128
          %4816 = vxpose.xlu0.b32.cont [6/16] 0.0, 128
          %4817 = vxpose.xlu0.b32.cont [7/16] 0.0, 128
          %4818 = vxpose.xlu0.b32.cont [8/16] 0.0, 128
          %4819 = vxpose.xlu0.b32.cont [9/16] 0.0, 128
          %4820 = vxpose.xlu0.b32.cont [10/16] 0.0, 128
          %4821 = vxpose.xlu0.b32.cont [11/16] 0.0, 128
          %4822 = vxpose.xlu0.b32.cont [12/16] 0.0, 128
          %4823 = vxpose.xlu0.b32.cont [13/16] 0.0, 128
          %4824 = vxpose.xlu0.b32.cont [14/16] 0.0, 128
          %4825 = vxpose.xlu0.b32.cont [15/16] 0.0, 128
          %4826 = vxpose.xlu0.b32.end [16/16] 0.0, 128
          %v4827 = vpop.trf.xlu0
          %v4828 = vpop.trf.xlu0
          %v4829 = vpop.trf.xlu0
          %v4830 = vpop.trf.xlu0
          %v4831 = vpop.trf.xlu0
          %v4832 = vpop.trf.xlu0
          %v4833 = vpop.trf.xlu0
          %v4834 = vpop.trf.xlu0
          %v4835 = vpop.trf.xlu0
          %v4836 = vpop.trf.xlu0
          %v4837 = vpop.trf.xlu0
          %v4838 = vpop.trf.xlu0
          %v4839 = vpop.trf.xlu0
          %v4840 = vpop.trf.xlu0
          %v4841 = vpop.trf.xlu0
          %v4842 = vpop.trf.xlu0
          %4843 = vxpose.xlu0.b32.start [1/16] %v4800, 128
          %4844 = vxpose.xlu0.b32.cont [2/16] %v4801, 128
          %4845 = vxpose.xlu0.b32.cont [3/16] 0.0, 128
          %4846 = vxpose.xlu0.b32.cont [4/16] 0.0, 128
          %4847 = vxpose.xlu0.b32.cont [5/16] 0.0, 128
          %4848 = vxpose.xlu0.b32.cont [6/16] 0.0, 128
          %4849 = vxpose.xlu0.b32.cont [7/16] 0.0, 128
          %4850 = vxpose.xlu0.b32.cont [8/16] 0.0, 128
          %4851 = vxpose.xlu0.b32.cont [9/16] 0.0, 128
          %4852 = vxpose.xlu0.b32.cont [10/16] 0.0, 128
          %4853 = vxpose.xlu0.b32.cont [11/16] 0.0, 128
          %4854 = vxpose.xlu0.b32.cont [12/16] 0.0, 128
          %4855 = vxpose.xlu0.b32.cont [13/16] 0.0, 128
          %4856 = vxpose.xlu0.b32.cont [14/16] 0.0, 128
          %4857 = vxpose.xlu0.b32.cont [15/16] 0.0, 128
          %4858 = vxpose.xlu0.b32.end [16/16] 0.0, 128
          %v4859 = vpop.trf.xlu0
          %v4860 = vpop.trf.xlu0
          %v4861 = vpop.trf.xlu0
          %v4862 = vpop.trf.xlu0
          %v4863 = vpop.trf.xlu0
          %v4864 = vpop.trf.xlu0
          %v4865 = vpop.trf.xlu0
          %v4866 = vpop.trf.xlu0
          %v4867 = vpop.trf.xlu0
          %v4868 = vpop.trf.xlu0
          %v4869 = vpop.trf.xlu0
          %v4870 = vpop.trf.xlu0
          %v4871 = vpop.trf.xlu0
          %v4872 = vpop.trf.xlu0
          %v4873 = vpop.trf.xlu0
          %v4874 = vpop.trf.xlu0
          %v4876 = vsel %vm1585, %v4827, 0
          %v4879 = vsel %vm1585, %v4828, 0
          %v4882 = vsel %vm1585, %v4829, 0
          %v4885 = vsel %vm1585, %v4830, 0
          %v4888 = vsel %vm1585, %v4831, 0
          %v4891 = vsel %vm1585, %v4832, 0
          %v4894 = vsel %vm1585, %v4833, 0
          %v4897 = vsel %vm1585, %v4834, 0
          %v4900 = vsel %vm1585, %v4835, 0
          %v4903 = vsel %vm1585, %v4836, 0
          %v4906 = vsel %vm1585, %v4837, 0
          %v4909 = vsel %vm1585, %v4838, 0
          %v4912 = vsel %vm1585, %v4839, 0
          %v4915 = vsel %vm1585, %v4840, 0
          %v4918 = vsel %vm1585, %v4841, 0
          %v4921 = vsel %vm1585, %v4842, 0
          %v4924 = vsel %vm1585, %v4859, 0
          %v4927 = vsel %vm1585, %v4860, 0
          %v4930 = vsel %vm1585, %v4861, 0
          %v4933 = vsel %vm1585, %v4862, 0
          %v4936 = vsel %vm1585, %v4863, 0
          %v4939 = vsel %vm1585, %v4864, 0
          %v4942 = vsel %vm1585, %v4865, 0
          %v4945 = vsel %vm1585, %v4866, 0
          %v4948 = vsel %vm1585, %v4867, 0
          %v4951 = vsel %vm1585, %v4868, 0
          %v4954 = vsel %vm1585, %v4869, 0
          %v4957 = vsel %vm1585, %v4870, 0
          %v4960 = vsel %vm1585, %v4871, 0
          %v4963 = vsel %vm1585, %v4872, 0
          %v4966 = vsel %vm1585, %v4873, 0
          %v4969 = vsel %vm1585, %v4874, 0
          %v4972 = vsel %vm1585, %v4810, 0
          %4974 = vmatprep.subr.mxu0 0.0
          %4975 = vmatpush1.xpose.msra.mxu0 0.0
          %4976 = vmatprep.subr.mxu0 0.0
          %4977 = vmatpush1.xpose.msra.mxu0 0.0
          %4978 = vmatprep.subr.mxu0 0.0
          %4979 = vmatpush1.xpose.msra.mxu0 0.0
          %4980 = vmatprep.subr.mxu0 0.0
          %4981 = vmatpush1.xpose.msra.mxu0 0.0
          %4982 = vmatprep.subr.mxu0 0.0
          %4983 = vmatpush1.xpose.msra.mxu0 0.0
          %4984 = vmatprep.subr.mxu0 0.0
          %4985 = vmatpush1.xpose.msra.mxu0 0.0
          %4986 = vmatprep.subr.mxu0 0.0
          %4987 = vmatpush1.xpose.msra.mxu0 0.0
          %4988 = vmatprep.subr.mxu0 0.0
          %4989 = vmatpush1.xpose.msra.mxu0 0.0
          %4990 = vmatprep.subr.mxu0 0.0
          %4991 = vmatpush1.xpose.msra.mxu0 0.0
          %4992 = vmatprep.subr.mxu0 0.0
          %4993 = vmatpush1.xpose.msra.mxu0 0.0
          %4994 = vmatprep.subr.mxu0 0.0
          %4995 = vmatpush1.xpose.msra.mxu0 0.0
          %4996 = vmatprep.subr.mxu0 0.0
          %4997 = vmatpush1.xpose.msra.mxu0 0.0
          %4998 = vmatprep.subr.mxu0 0.0
          %4999 = vmatpush1.xpose.msra.mxu0 0.0
          %5000 = vmatprep.subr.mxu0 0.0
          %5001 = vmatpush1.xpose.msra.mxu0 0.0
          %5002 = vmatprep.subr.mxu0 0.0
          %5003 = vmatpush1.xpose.msra.mxu0 0.0
          %5004 = vmatprep.subr.mxu0 0.0
          %5005 = vmatpush1.xpose.msra.mxu0 %v4972
          %5006 = vmatprep.subr.mxu0 0.0
          %5007 = vmatpush2.xpose.msra.mxu0 0.0
          %5008 = vmatprep.subr.mxu0 0.0
          %5009 = vmatpush2.xpose.msra.mxu0 0.0
          %5010 = vmatprep.subr.mxu0 0.0
          %5011 = vmatpush2.xpose.msra.mxu0 0.0
          %5012 = vmatprep.subr.mxu0 0.0
          %5013 = vmatpush2.xpose.msra.mxu0 0.0
          %5014 = vmatprep.subr.mxu0 0.0
          %5015 = vmatpush2.xpose.msra.mxu0 0.0
          %5016 = vmatprep.subr.mxu0 0.0
          %5017 = vmatpush2.xpose.msra.mxu0 0.0
          %5018 = vmatprep.subr.mxu0 0.0
          %5019 = vmatpush2.xpose.msra.mxu0 0.0
          %5020 = vmatprep.subr.mxu0 0.0
          %5021 = vmatpush2.xpose.msra.mxu0 0.0
          %5022 = vmatprep.subr.mxu0 0.0
          %5023 = vmatpush2.xpose.msra.mxu0 0.0
          %5024 = vmatprep.subr.mxu0 0.0
          %5025 = vmatpush2.xpose.msra.mxu0 0.0
          %5026 = vmatprep.subr.mxu0 0.0
          %5027 = vmatpush2.xpose.msra.mxu0 0.0
          %5028 = vmatprep.subr.mxu0 0.0
          %5029 = vmatpush2.xpose.msra.mxu0 0.0
          %5030 = vmatprep.subr.mxu0 0.0
          %5031 = vmatpush2.xpose.msra.mxu0 0.0
          %5032 = vmatprep.subr.mxu0 0.0
          %5033 = vmatpush2.xpose.msra.mxu0 0.0
          %5034 = vmatprep.subr.mxu0 0.0
          %5035 = vmatpush2.xpose.msra.mxu0 0.0
          %5036 = vmatprep.subr.mxu0 0.0
          %5037 = vmatpush2.xpose.msra.mxu0 0.0
          %5038 = vmatprep.mubr.f32.mxu0 0.0
          %5039 = vmatmul.mubr.f32.gmra.mxu0 %v4876
          %v5040 = vpop.f32.mrf.mxu0
          %v5041 = vadd.f32 0.0, %v5040
          %v5042 = vpop.f32.mrf.mxu0
          %5043 = vmatprep.mubr.f32.mxu0 0.0
          %5044 = vmatmul.mubr.f32.gmra.mxu0 %v4879
          %v5045 = vpop.f32.mrf.mxu0
          %v5046 = vadd.f32 0.0, %v5045
          %v5047 = vpop.f32.mrf.mxu0
          %5048 = vmatprep.mubr.f32.mxu0 0.0
          %5049 = vmatmul.mubr.f32.gmra.mxu0 %v4882
          %v5050 = vpop.f32.mrf.mxu0
          %v5051 = vadd.f32 0.0, %v5050
          %v5052 = vpop.f32.mrf.mxu0
          %5053 = vmatprep.mubr.f32.mxu0 0.0
          %5054 = vmatmul.mubr.f32.gmra.mxu0 %v4885
          %v5055 = vpop.f32.mrf.mxu0
          %v5056 = vadd.f32 0.0, %v5055
          %v5057 = vpop.f32.mrf.mxu0
          %5058 = vmatprep.mubr.f32.mxu0 0.0
          %5059 = vmatmul.mubr.f32.gmra.mxu0 %v4888
          %v5060 = vpop.f32.mrf.mxu0
          %v5061 = vadd.f32 0.0, %v5060
          %v5062 = vpop.f32.mrf.mxu0
          %5063 = vmatprep.mubr.f32.mxu0 0.0
          %5064 = vmatmul.mubr.f32.gmra.mxu0 %v4891
          %v5065 = vpop.f32.mrf.mxu0
          %v5066 = vadd.f32 0.0, %v5065
          %v5067 = vpop.f32.mrf.mxu0
          %5068 = vmatprep.mubr.f32.mxu0 0.0
          %5069 = vmatmul.mubr.f32.gmra.mxu0 %v4894
          %v5070 = vpop.f32.mrf.mxu0
          %v5071 = vadd.f32 0.0, %v5070
          %v5072 = vpop.f32.mrf.mxu0
          %5073 = vmatprep.mubr.f32.mxu0 0.0
          %5074 = vmatmul.mubr.f32.gmra.mxu0 %v4897
          %v5075 = vpop.f32.mrf.mxu0
          %v5076 = vadd.f32 0.0, %v5075
          %v5077 = vpop.f32.mrf.mxu0
          %5078 = vmatprep.mubr.f32.mxu0 0.0
          %5079 = vmatmul.mubr.f32.gmra.mxu0 %v4900
          %v5080 = vpop.f32.mrf.mxu0
          %v5081 = vadd.f32 0.0, %v5080
          %v5082 = vpop.f32.mrf.mxu0
          %5083 = vmatprep.mubr.f32.mxu0 0.0
          %5084 = vmatmul.mubr.f32.gmra.mxu0 %v4903
          %v5085 = vpop.f32.mrf.mxu0
          %v5086 = vadd.f32 0.0, %v5085
          %v5087 = vpop.f32.mrf.mxu0
          %5088 = vmatprep.mubr.f32.mxu0 0.0
          %5089 = vmatmul.mubr.f32.gmra.mxu0 %v4906
          %v5090 = vpop.f32.mrf.mxu0
          %v5091 = vadd.f32 0.0, %v5090
          %v5092 = vpop.f32.mrf.mxu0
          %5093 = vmatprep.mubr.f32.mxu0 0.0
          %5094 = vmatmul.mubr.f32.gmra.mxu0 %v4909
          %v5095 = vpop.f32.mrf.mxu0
          %v5096 = vadd.f32 0.0, %v5095
          %v5097 = vpop.f32.mrf.mxu0
          %5098 = vmatprep.mubr.f32.mxu0 0.0
          %5099 = vmatmul.mubr.f32.gmra.mxu0 %v4912
          %v5100 = vpop.f32.mrf.mxu0
          %v5101 = vadd.f32 0.0, %v5100
          %v5102 = vpop.f32.mrf.mxu0
          %5103 = vmatprep.mubr.f32.mxu0 0.0
          %5104 = vmatmul.mubr.f32.gmra.mxu0 %v4915
          %v5105 = vpop.f32.mrf.mxu0
          %v5106 = vadd.f32 0.0, %v5105
          %v5107 = vpop.f32.mrf.mxu0
          %5108 = vmatprep.mubr.f32.mxu0 0.0
          %5109 = vmatmul.mubr.f32.gmra.mxu0 %v4918
          %v5110 = vpop.f32.mrf.mxu0
          %v5111 = vadd.f32 0.0, %v5110
          %v5112 = vpop.f32.mrf.mxu0
          %5113 = vmatprep.mubr.f32.mxu0 0.0
          %5114 = vmatmul.mubr.f32.gmra.mxu0 %v4921
          %v5115 = vpop.f32.mrf.mxu0
          %v5116 = vadd.f32 0.0, %v5115
          %v5117 = vpop.f32.mrf.mxu0
          %5118 = vmatprep.mubr.f32.mxu0 0.0
          %5119 = vmatmul.mubr.f32.gmra.mxu0 %v4924
          %v5120 = vpop.f32.mrf.mxu0
          %v5121 = vadd.f32 0.0, %v5120
          %v5122 = vpop.f32.mrf.mxu0
          %5123 = vmatprep.mubr.f32.mxu0 0.0
          %5124 = vmatmul.mubr.f32.gmra.mxu0 %v4927
          %v5125 = vpop.f32.mrf.mxu0
          %v5126 = vadd.f32 0.0, %v5125
          %v5127 = vpop.f32.mrf.mxu0
          %5128 = vmatprep.mubr.f32.mxu0 0.0
          %5129 = vmatmul.mubr.f32.gmra.mxu0 %v4930
          %v5130 = vpop.f32.mrf.mxu0
          %v5131 = vadd.f32 0.0, %v5130
          %v5132 = vpop.f32.mrf.mxu0
          %5133 = vmatprep.mubr.f32.mxu0 0.0
          %5134 = vmatmul.mubr.f32.gmra.mxu0 %v4933
          %v5135 = vpop.f32.mrf.mxu0
          %v5136 = vadd.f32 0.0, %v5135
          %v5137 = vpop.f32.mrf.mxu0
          %5138 = vmatprep.mubr.f32.mxu0 0.0
          %5139 = vmatmul.mubr.f32.gmra.mxu0 %v4936
          %v5140 = vpop.f32.mrf.mxu0
          %v5141 = vadd.f32 0.0, %v5140
          %v5142 = vpop.f32.mrf.mxu0
          %5143 = vmatprep.mubr.f32.mxu0 0.0
          %5144 = vmatmul.mubr.f32.gmra.mxu0 %v4939
          %v5145 = vpop.f32.mrf.mxu0
          %v5146 = vadd.f32 0.0, %v5145
          %v5147 = vpop.f32.mrf.mxu0
          %5148 = vmatprep.mubr.f32.mxu0 0.0
          %5149 = vmatmul.mubr.f32.gmra.mxu0 %v4942
          %v5150 = vpop.f32.mrf.mxu0
          %v5151 = vadd.f32 0.0, %v5150
          %v5152 = vpop.f32.mrf.mxu0
          %5153 = vmatprep.mubr.f32.mxu0 0.0
          %5154 = vmatmul.mubr.f32.gmra.mxu0 %v4945
          %v5155 = vpop.f32.mrf.mxu0
          %v5156 = vadd.f32 0.0, %v5155
          %v5157 = vpop.f32.mrf.mxu0
          %5158 = vmatprep.mubr.f32.mxu0 0.0
          %5159 = vmatmul.mubr.f32.gmra.mxu0 %v4948
          %v5160 = vpop.f32.mrf.mxu0
          %v5161 = vadd.f32 0.0, %v5160
          %v5162 = vpop.f32.mrf.mxu0
          %5163 = vmatprep.mubr.f32.mxu0 0.0
          %5164 = vmatmul.mubr.f32.gmra.mxu0 %v4951
          %v5165 = vpop.f32.mrf.mxu0
          %v5166 = vadd.f32 0.0, %v5165
          %v5167 = vpop.f32.mrf.mxu0
          %5168 = vmatprep.mubr.f32.mxu0 0.0
          %5169 = vmatmul.mubr.f32.gmra.mxu0 %v4954
          %v5170 = vpop.f32.mrf.mxu0
          %v5171 = vadd.f32 0.0, %v5170
          %v5172 = vpop.f32.mrf.mxu0
          %5173 = vmatprep.mubr.f32.mxu0 0.0
          %5174 = vmatmul.mubr.f32.gmra.mxu0 %v4957
          %v5175 = vpop.f32.mrf.mxu0
          %v5176 = vadd.f32 0.0, %v5175
          %v5177 = vpop.f32.mrf.mxu0
          %5178 = vmatprep.mubr.f32.mxu0 0.0
          %5179 = vmatmul.mubr.f32.gmra.mxu0 %v4960
          %v5180 = vpop.f32.mrf.mxu0
          %v5181 = vadd.f32 0.0, %v5180
          %v5182 = vpop.f32.mrf.mxu0
          %5183 = vmatprep.mubr.f32.mxu0 0.0
          %5184 = vmatmul.mubr.f32.gmra.mxu0 %v4963
          %v5185 = vpop.f32.mrf.mxu0
          %v5186 = vadd.f32 0.0, %v5185
          %v5187 = vpop.f32.mrf.mxu0
          %5188 = vmatprep.mubr.f32.mxu0 0.0
          %5189 = vmatmul.mubr.f32.gmra.mxu0 %v4966
          %v5190 = vpop.f32.mrf.mxu0
          %v5191 = vadd.f32 0.0, %v5190
          %v5192 = vpop.f32.mrf.mxu0
          %5193 = vmatprep.mubr.f32.mxu0 0.0
          %5194 = vmatmul.mubr.f32.gmra.mxu0 %v4969
          %v5195 = vpop.f32.mrf.mxu0
          %v5196 = vadd.f32 0.0, %v5195
          %v5197 = vpop.f32.mrf.mxu0
          %5198 = vdwg.mxu0
          %5199 = vxpose.xlu0.b32.start [1/16] %v5041, 128
          %5200 = vxpose.xlu0.b32.cont [2/16] %v5046, 128
          %5201 = vxpose.xlu0.b32.cont [3/16] %v5051, 128
          %5202 = vxpose.xlu0.b32.cont [4/16] %v5056, 128
          %5203 = vxpose.xlu0.b32.cont [5/16] %v5061, 128
          %5204 = vxpose.xlu0.b32.cont [6/16] %v5066, 128
          %5205 = vxpose.xlu0.b32.cont [7/16] %v5071, 128
          %5206 = vxpose.xlu0.b32.cont [8/16] %v5076, 128
          %5207 = vxpose.xlu0.b32.cont [9/16] %v5081, 128
          %5208 = vxpose.xlu0.b32.cont [10/16] %v5086, 128
          %5209 = vxpose.xlu0.b32.cont [11/16] %v5091, 128
          %5210 = vxpose.xlu0.b32.cont [12/16] %v5096, 128
          %5211 = vxpose.xlu0.b32.cont [13/16] %v5101, 128
          %5212 = vxpose.xlu0.b32.cont [14/16] %v5106, 128
          %5213 = vxpose.xlu0.b32.cont [15/16] %v5111, 128
          %5214 = vxpose.xlu0.b32.end [16/16] %v5116, 128
          %v5215 = vpop.trf.xlu0
          %v5216 = vpop.trf.xlu0
          %v5217 = vpop.trf.xlu0
          %v5218 = vpop.trf.xlu0
          %v5219 = vpop.trf.xlu0
          %v5220 = vpop.trf.xlu0
          %v5221 = vpop.trf.xlu0
          %v5222 = vpop.trf.xlu0
          %v5223 = vpop.trf.xlu0
          %v5224 = vpop.trf.xlu0
          %v5225 = vpop.trf.xlu0
          %v5226 = vpop.trf.xlu0
          %v5227 = vpop.trf.xlu0
          %v5228 = vpop.trf.xlu0
          %v5229 = vpop.trf.xlu0
          %v5230 = vpop.trf.xlu0
          %5231 = vxpose.xlu0.b32.start [1/16] %v5121, 128
          %5232 = vxpose.xlu0.b32.cont [2/16] %v5126, 128
          %5233 = vxpose.xlu0.b32.cont [3/16] %v5131, 128
          %5234 = vxpose.xlu0.b32.cont [4/16] %v5136, 128
          %5235 = vxpose.xlu0.b32.cont [5/16] %v5141, 128
          %5236 = vxpose.xlu0.b32.cont [6/16] %v5146, 128
          %5237 = vxpose.xlu0.b32.cont [7/16] %v5151, 128
          %5238 = vxpose.xlu0.b32.cont [8/16] %v5156, 128
          %5239 = vxpose.xlu0.b32.cont [9/16] %v5161, 128
          %5240 = vxpose.xlu0.b32.cont [10/16] %v5166, 128
          %5241 = vxpose.xlu0.b32.cont [11/16] %v5171, 128
          %5242 = vxpose.xlu0.b32.cont [12/16] %v5176, 128
          %5243 = vxpose.xlu0.b32.cont [13/16] %v5181, 128
          %5244 = vxpose.xlu0.b32.cont [14/16] %v5186, 128
          %5245 = vxpose.xlu0.b32.cont [15/16] %v5191, 128
          %5246 = vxpose.xlu0.b32.end [16/16] %v5196, 128
          %v5247 = vpop.trf.xlu0
          %v5248 = vpop.trf.xlu0
          %v5249 = vpop.trf.xlu0
          %v5250 = vpop.trf.xlu0
          %v5251 = vpop.trf.xlu0
          %v5252 = vpop.trf.xlu0
          %v5253 = vpop.trf.xlu0
          %v5254 = vpop.trf.xlu0
          %v5255 = vpop.trf.xlu0
          %v5256 = vpop.trf.xlu0
          %v5257 = vpop.trf.xlu0
          %v5258 = vpop.trf.xlu0
          %v5259 = vpop.trf.xlu0
          %v5260 = vpop.trf.xlu0
          %v5261 = vpop.trf.xlu0
          %v5262 = vpop.trf.xlu0
          %v5263 = vld [vmem:[%s17] sm:$0xf]
          %5265 = vset.pattern.permute.xlu0 0
          %5266 = vperm.xlu0 %5265, %v5263
          %v5267 = vpop.permute.xlu0 %5266
          %v5269 = vadd.f32 %v5215, %v5267
          %v5270 = vadd.f32 %v5247, %v5267
          %5271 = vst [vmem:[#allocation7] sm:$0xf] %v5269
          %5272 = vst [vmem:[#allocation7 + $0x4] sm:$0xf] %v5270
        $region104: #{tpu_custom_call.1} parent=91 // pred_fallthru
          _
        // Predicated region
        $region105: #{tpu_custom_call.1} parent=91 // pred_check
          %p5273 = pneg %p464
        $region106: #{tpu_custom_call.1} parent=91 // pred_check_branch
          %5275 = sbr.rel (%p5273) target = $region108
        $region107: #{tpu_custom_call.1} parent=91 // pred_region
          %s5277 = ssub.s32 128, 128
          %5278 = vsyncadd [#allocation6], %s5277
          %s5279 = sshll.u32 [#allocation7], 4
          %s5280 = int_to_ptr.vmem [resolvable:$true] %s5279
          %5285 = dma.vmem_to_hbm [thread:$0]  %s5280, 128, %s18, [#allocation6], 64, 64, 4
        $region108: #{tpu_custom_call.1} parent=91 // pred_fallthru
          _
        // Predicated region
        $region109: #{tpu_custom_call.1} parent=91 // pred_check
          %p5286 = pneg %p464
        $region110: #{tpu_custom_call.1} parent=91 // pred_check_branch
          %5288 = sbr.rel (%p5286) target = $region112
        $region111: #{tpu_custom_call.1} parent=91 // pred_region
          %5289 = dma.done [#allocation6], 128
        $region112: #{tpu_custom_call.1} parent=91 // pred_fallthru
          _
      $region92: #{tpu_custom_call.1} parent=5 // pred_fallthru
        _
      %p5290 = scmp.le.s32.totalorder 2, %s28
      // Predicated region
      $region113: #{tpu_custom_call.1} parent=5 // pred_check
        %p5291 = pneg %p5290
      $region114: #{tpu_custom_call.1} parent=5 // pred_check_branch
        %5293 = sbr.rel (%p5291) target = $region116
      $region115: #{tpu_custom_call.1} parent=5 // pred_region
        %s5294 = ssub.s32 %s28, 2
      $region116: #{tpu_custom_call.1} parent=5 // pred_fallthru
        _
    $region6: #{tpu_custom_call.1} parent=1 // loop_footer
      %s32 = sadd.s32 1, %s28
    $region7: #{tpu_custom_call.1} parent=1 // loop_footer_branch
      %27 = sbr.rel target = $region3
    $region8: #{tpu_custom_call.1} parent=1 // loop_exit
      _
    %5295 = vsyncpa [#allocation5], 1
    %s5296 = scalar_lea.sflag [#allocation5], 1
    %5297 = vsyncpa %s5296, 1
    %5298 = vsyncpa [#allocation6], 1
    %s5299 = scalar_lea.sflag [#allocation6], 1
    %5300 = vsyncpa %s5299, 1

</llo_original>
